<compile_context>
chip_gen: v7x
topology: tpu7x:2x2x1
jax: 0.10.0
libtpu: 0.0.40
codegen_flags: <defaults>
</compile_context>

<pallas_src>
import functools

import jax
import jax.numpy as jnp
from jax.experimental import pallas as pl
from jax.experimental.pallas import tpu as pltpu

_GUARD = 8  # sublane-aligned guard rows around the conv scratch: masked taps may
            # read one token past either end; guards keep those reads in-bounds.
            # Guard rows are read uninitialized but ONLY behind jnp.where selects.


def _mixffn_kernel(xc_ref, xt_ref, xb_ref, w1_ref, b1_ref, dwk_ref, dwb_ref,
                   w2_ref, b2_ref, o_ref, hpad_ref, *, W, tile_rows, mm_dtype,
                   approx_gelu):
    """One grid step = `tile_rows` whole image rows of one batch element."""
    tile_n = tile_rows * W
    i = pl.program_id(1)
    n_tiles = pl.num_programs(1)
    c_hid_p = hpad_ref.shape[-1]

    # ---- fc1: ONE wide MXU matmul (bf16 in / f32 acc) over
    #      [top halo row | tile body | bottom halo row], one store to the scratch ----
    x_all = jnp.concatenate([xt_ref[0], xc_ref[0], xb_ref[0]], axis=0)
    h = jnp.dot(x_all.astype(mm_dtype), w1_ref[...],
                preferred_element_type=jnp.float32) + b1_ref[...]
    hpad_ref[pl.ds(_GUARD, tile_n + 2 * W), :] = h

    # At the top/bottom image border the halo row must be the conv's zero padding
    # (not fc1 of the clamped row) — overwrite it (W rows, border tiles only).
    @pl.when(i == 0)
    def _():
        hpad_ref[pl.ds(_GUARD, W), :] = jnp.zeros((W, c_hid_p), jnp.float32)

    @pl.when(i == n_tiles - 1)
    def _():
        hpad_ref[pl.ds(_GUARD + W + tile_n, W), :] = jnp.zeros((W, c_hid_p),
                                                               jnp.float32)

    # ---- depthwise 3x3 conv: 9 static-slice taps, 2 grouped selects total ----
    k = dwk_ref[...]                                            # (9, C_hid_p), f32
    col = jax.lax.broadcasted_iota(jnp.int32, (tile_n, 1), 0) % W
    mask_l = col >= 1          # left-neighbour read stays inside the image row
    mask_r = col < (W - 1)     # right-neighbour read stays inside the image row

    def tap(di, dj):           # conv input at (row+di, col+dj) for every body token
        return hpad_ref[pl.ds(_GUARD + (1 + di) * W + dj, tile_n), :]

    # centre column (dj == 0): never crosses a row boundary -> no select needed
    acc = tap(0, 0) * k[4:5, :] + tap(-1, 0) * k[1:2, :] + tap(1, 0) * k[7:8, :]
    # left / right neighbour columns: one grouped select each.  Keep jnp.where
    # (select) semantics — guard-row garbage must never escape via a multiply.
    left = tap(-1, -1) * k[0:1, :] + tap(0, -1) * k[3:4, :] + tap(1, -1) * k[6:7, :]
    right = tap(-1, 1) * k[2:3, :] + tap(0, 1) * k[5:6, :] + tap(1, 1) * k[8:9, :]
    acc = (acc + jnp.where(mask_l, left, 0.0) + jnp.where(mask_r, right, 0.0)
           + dwb_ref[...])

    # ---- GELU: exact erf by default (== nn.GELU()); tanh form is an opt-in change --
    if approx_gelu:
        g = 0.5 * acc * (1.0 + jnp.tanh(jnp.float32(0.7978845608028654)
                                        * (acc + 0.044715 * acc * acc * acc)))
    else:
        g = 0.5 * acc * (1.0 + jax.lax.erf(acc * jnp.float32(0.7071067811865476)))

    # ---- fc2 (MXU, bf16 in / f32 accumulate) ----
    out = jnp.dot(g.astype(mm_dtype), w2_ref[...],
                  preferred_element_type=jnp.float32) + b2_ref[...]
    o_ref[0] = out.astype(o_ref.dtype)


def _round_up(c, m):
    return ((c + m - 1) // m) * m


def _vmem_budget_bytes():
    """75% of this generation's VMEM (≈96 MiB on v5e/v6e, ≈48 MiB on v7x)."""
    cap = 64 * 1024 * 1024            # conservative default: v7x per-TensorCore VMEM
    try:
        info = pltpu.get_tpu_info()
        cap = int(getattr(info, "vmem_capacity_bytes", cap) or cap)
    except Exception:
        pass
    return (3 * cap) // 4             # leave headroom for compiler-internal scratch


def mixffn_pallas(x, params, H, W, *, tile_rows=None, mm_dtype=jnp.bfloat16,
                  approx_gelu=False):
    """x: (B, N, C_in) float32 with N == H*W."""
    B, N, C_in = x.shape
    assert N == H * W
    # TODO(synk): support W that is not a multiple of 8 (needs in-kernel column pad).
    assert W % 8 == 0, "this kernel requires W to be a multiple of 8 (sublanes)"

    w1, b1, dwk, dwb, w2, b2 = (params["w1"], params["b1"], params["dwk"],
                                params["dwb"], params["w2"], params["b2"])
    C_hid, C_out = w1.shape[1], w2.shape[1]

    # Only the (small) weights are padded on the hidden dim so the conv/GELU vector
    # work is lane-dense; the padded hidden channels are exact zeros end-to-end.
    # Activations (x, output) keep their native channel count (full-extent blocks).
    C_hid_p = _round_up(C_hid, 128)
    w1_p = jnp.pad(w1, ((0, 0), (0, C_hid_p - C_hid))).astype(mm_dtype)
    b1_p = jnp.pad(b1, ((0, 0), (0, C_hid_p - C_hid)))
    dwk_p = jnp.pad(dwk, ((0, 0), (0, C_hid_p - C_hid)))
    dwb_p = jnp.pad(dwb, ((0, 0), (0, C_hid_p - C_hid)))
    w2_p = jnp.pad(w2, ((0, C_hid_p - C_hid), (0, 0))).astype(mm_dtype)
    b2_p = b2

    vmem_budget = _vmem_budget_bytes()

    # Row-tile sizing: scale the token target by the generation's VMEM budget and the
    # per-token live footprint (scratch + ~4 f32 temps + double-buffered I/O blocks).
    # TODO(synk): chunk C_hid_p (~512-wide) with a persistent fc2 accumulator for very
    # large hidden sizes (C_hid_p >= 2048) on v7x's 64 MiB VMEM.
    auto_tile = tile_rows is None
    if auto_tile:
        per_token = 4 * (5 * C_hid_p + 3 * C_in + 2 * C_out)
        weight_bytes = 2 * 2 * (C_in * C_hid_p + C_hid_p * C_out)     # bf16, 2 bufs
        avail = max(vmem_budget - weight_bytes - (8 << 20), vmem_budget // 4)
        target_tokens = int(min(max(avail // per_token, 256), 8192))
        tile_rows = max(1, target_tokens // W)
    tile_rows = max(1, min(int(tile_rows), H))
    while H % tile_rows:
        tile_rows -= 1          # TODO(synk): ragged last row-tile for awkward H factors
    if auto_tile and B * (H // tile_rows) < 2 and H > 1:
        # v7x has 2 TensorCores sharded over the parallel grid axes: force >= 2 steps.
        tile_rows = max(d for d in range(1, H) if H % d == 0)
    n_tiles = H // tile_rows
    tile_n = tile_rows * W
    last_row = H - 1

    kernel = functools.partial(_mixffn_kernel, W=W, tile_rows=tile_rows,
                               mm_dtype=mm_dtype, approx_gelu=approx_gelu)

    def run(single_buffer_weights):
        def wspec(shape):
            idx = lambda b, i: (0,) * len(shape)
            if single_buffer_weights:
                # constant index map -> second pipeline buffer is pure VMEM waste
                return pl.BlockSpec(shape, idx, pipeline_mode=pl.Buffered(1))
            return pl.BlockSpec(shape, idx)

        return pl.pallas_call(
            kernel,
            out_shape=jax.ShapeDtypeStruct((B, N, C_out), x.dtype),
            grid_spec=pltpu.PrefetchScalarGridSpec(
                num_scalar_prefetch=0,
                grid=(B, n_tiles),
                in_specs=[
                    # tile body: tile_rows whole image rows
                    pl.BlockSpec((1, tile_n, C_in), lambda b, i: (b, i, 0)),
                    # one-row top / bottom halos (clamped at the image borders; the
                    # kernel zeroes their fc1 result there == conv zero padding)
                    pl.BlockSpec((1, W, C_in),
                                 lambda b, i: (b, jnp.maximum(i * tile_rows - 1, 0), 0)),
                    pl.BlockSpec((1, W, C_in),
                                 lambda b, i: (b, jnp.minimum((i + 1) * tile_rows,
                                                              last_row), 0)),
                    wspec((C_in, C_hid_p)),    # fc1 weight (bf16)
                    wspec((1, C_hid_p)),       # fc1 bias
                    wspec((9, C_hid_p)),       # dwconv weight, tap-major (t = 3*i + j)
                    wspec((1, C_hid_p)),       # dwconv bias
                    wspec((C_hid_p, C_out)),   # fc2 weight (bf16)
                    wspec((1, C_out)),         # fc2 bias
                ],
                out_specs=pl.BlockSpec((1, tile_n, C_out), lambda b, i: (b, i, 0)),
                scratch_shapes=[
                    pltpu.VMEM(((tile_rows + 2) * W + 2 * _GUARD, C_hid_p),
                               jnp.float32),
                ],
            ),
            compiler_params=pltpu.CompilerParams(
                dimension_semantics=("parallel", "parallel"),
                vmem_limit_bytes=vmem_budget,
            ),
        )(x, x, x, w1_p, b1_p, dwk_p, dwb_p, w2_p, b2_p)

    try:
        return run(True)
    except Exception:
        # pipeline_mode=pl.Buffered(1) may be unsupported by this JAX version for
        # top-level pallas_call BlockSpecs — fall back to default double buffering.
        return run(False)


def mixffn_reference(x, params, H, W):
    """Pure-JAX f32 reference with identical semantics (for sanity check)."""
    B, N, C_in = x.shape
    w1, b1, dwk, dwb, w2, b2 = (params["w1"], params["b1"], params["dwk"],
                                params["dwb"], params["w2"], params["b2"])
    C_hid = w1.shape[1]
    h = x @ w1 + b1                                        # (B, N, C_hid)
    img = h.transpose(0, 2, 1).reshape(B, C_hid, H, W)     # NCHW
    k = dwk.reshape(3, 3, C_hid).transpose(2, 0, 1)[:, None, :, :]
    conv = jax.lax.conv_general_dilated(
        img, k, window_strides=(1, 1), padding=((1, 1), (1, 1)),
        feature_group_count=C_hid,
        dimension_numbers=("NCHW", "OIHW", "NCHW"))
    conv = conv + dwb.reshape(1, C_hid, 1, 1)
    h2 = conv.reshape(B, C_hid, N).transpose(0, 2, 1)      # (B, N, C_hid)
    g = 0.5 * h2 * (1.0 + jax.lax.erf(h2 / jnp.sqrt(2.0)))
    return g @ w2 + b2


if __name__ == "__main__":
    # Small shapes consistent with the module's forward.
    B, H, W = 2, 8, 8
    N = H * W
    C_in, C_hid, C_out = 32, 64, 32

    key = jax.random.PRNGKey(0)
    kx, k1, k2, k3, k4, k5, k6 = jax.random.split(key, 7)

    x = jax.random.normal(kx, (B, N, C_in), dtype=jnp.float32)
    params = {
        # fc1: Linear(C_in -> C_hid); stored (in, out) for row-major matmul
        "w1": 0.1 * jax.random.normal(k1, (C_in, C_hid), dtype=jnp.float32),
        "b1": 0.1 * jax.random.normal(k2, (1, C_hid), dtype=jnp.float32),
        # dwconv: Conv2d(C_hid, C_hid, 3, groups=C_hid), tap-major (9, C_hid), t=3i+j
        "dwk": 0.1 * jax.random.normal(k3, (9, C_hid), dtype=jnp.float32),
        "dwb": 0.1 * jax.random.normal(k4, (1, C_hid), dtype=jnp.float32),
        # fc2: Linear(C_hid -> C_out)
        "w2": 0.1 * jax.random.normal(k5, (C_hid, C_out), dtype=jnp.float32),
        "b2": 0.1 * jax.random.normal(k6, (1, C_out), dtype=jnp.float32),
    }

    ref = jax.block_until_ready(mixffn_reference(x, params, H, W))

    # Auto tiling (full image per grid step at this small size; grid = (B, 1)).
    out = jax.block_until_ready(mixffn_pallas(x, params, H, W))
    assert out.shape == (B, N, C_out)
    assert jnp.allclose(out, ref, atol=2e-2, rtol=2e-2), "mismatch (auto tile)"

    # Multi-tile path: exercises the one-row halo exchange between row tiles.
    out_t = jax.block_until_ready(mixffn_pallas(x, params, H, W, tile_rows=2))
    assert jnp.allclose(out_t, ref, atol=2e-2, rtol=2e-2), "mismatch (tiled rows)"

    print("KERNEL_OK")
</pallas_src>

<mosaic_0001>
module attributes {stable_mosaic.version = 11 : i64} {
  func.func @_mixffn_kernel(%arg0: i32, %arg1: i32, %arg2: memref<1x64x32xf32, #tpu.memory_space<vmem>>, %arg3: memref<1x8x32xf32, #tpu.memory_space<vmem>>, %arg4: memref<1x8x32xf32, #tpu.memory_space<vmem>>, %arg5: memref<32x128xbf16, #tpu.memory_space<vmem>>, %arg6: memref<1x128xf32, #tpu.memory_space<vmem>>, %arg7: memref<9x128xf32, #tpu.memory_space<vmem>>, %arg8: memref<1x128xf32, #tpu.memory_space<vmem>>, %arg9: memref<128x32xbf16, #tpu.memory_space<vmem>>, %arg10: memref<1x32xf32, #tpu.memory_space<vmem>>, %arg11: memref<1x64x32xf32, #tpu.memory_space<vmem>>, %arg12: memref<96x128xf32, #tpu.memory_space<vmem>>) attributes {dimension_semantics = [#tpu.dimension_semantics<parallel>, #tpu.dimension_semantics<parallel>], iteration_bounds = array<i64: 2, 1>, scalar_prefetch = 0 : i64, scratch_operands = 1 : i64, tpu.core_type = #tpu.core_type<tc>, window_params = [{transform_indices = @transform_0, window_bounds = array<i64: 1, 64, 32>}, {transform_indices = @transform_1, window_bounds = array<i64: 1, 8, 32>}, {transform_indices = @transform_2, window_bounds = array<i64: 1, 8, 32>}, {pipeline_mode = #tpu.pipeline_mode<synchronous>, transform_indices = @transform_3, window_bounds = array<i64: 32, 128>}, {pipeline_mode = #tpu.pipeline_mode<synchronous>, transform_indices = @transform_4, window_bounds = array<i64: 1, 128>}, {pipeline_mode = #tpu.pipeline_mode<synchronous>, transform_indices = @transform_5, window_bounds = array<i64: 9, 128>}, {pipeline_mode = #tpu.pipeline_mode<synchronous>, transform_indices = @transform_6, window_bounds = array<i64: 1, 128>}, {pipeline_mode = #tpu.pipeline_mode<synchronous>, transform_indices = @transform_7, window_bounds = array<i64: 128, 32>}, {pipeline_mode = #tpu.pipeline_mode<synchronous>, transform_indices = @transform_8, window_bounds = array<i64: 1, 32>}, {transform_indices = @transform_9, window_bounds = array<i64: 1, 64, 32>}]} {
    %c0 = arith.constant 0 : index
    %c0_0 = arith.constant 0 : index
    %c0_1 = arith.constant 0 : index
    %0 = vector.load %arg3[%c0, %c0_0, %c0_1] : memref<1x8x32xf32, #tpu.memory_space<vmem>>, vector<1x8x32xf32>
    %1 = vector.shape_cast %0 : vector<1x8x32xf32> to vector<8x32xf32>
    %c0_2 = arith.constant 0 : index
    %c0_3 = arith.constant 0 : index
    %c0_4 = arith.constant 0 : index
    %2 = vector.load %arg2[%c0_2, %c0_3, %c0_4] : memref<1x64x32xf32, #tpu.memory_space<vmem>>, vector<1x64x32xf32>
    %3 = vector.shape_cast %2 : vector<1x64x32xf32> to vector<64x32xf32>
    %c0_5 = arith.constant 0 : index
    %c0_6 = arith.constant 0 : index
    %c0_7 = arith.constant 0 : index
    %4 = vector.load %arg4[%c0_5, %c0_6, %c0_7] : memref<1x8x32xf32, #tpu.memory_space<vmem>>, vector<1x8x32xf32>
    %5 = vector.shape_cast %4 : vector<1x8x32xf32> to vector<8x32xf32>
    %6 = tpu.concatenate %1, %3, %5 in 0 : vector<8x32xf32>, vector<64x32xf32>, vector<8x32xf32> -> vector<80x32xf32>
    %7 = arith.truncf %6 : vector<80x32xf32> to vector<80x32xbf16>
    %c0_8 = arith.constant 0 : index
    %c0_9 = arith.constant 0 : index
    %8 = vector.load %arg5[%c0_8, %c0_9] : memref<32x128xbf16, #tpu.memory_space<vmem>>, vector<32x128xbf16>
    %cst = arith.constant dense<0.000000e+00> : vector<80x128xf32>
    %9 = tpu.matmul %7, %8, %cst {dimension_numbers = #tpu.dot_dimension_numbers<[1], [0], [0], [1], [0, 0, 1, 1], [], []>} : vector<80x32xbf16>, vector<32x128xbf16>, vector<80x128xf32> -> vector<80x128xf32>
    %c0_10 = arith.constant 0 : index
    %c0_11 = arith.constant 0 : index
    %10 = vector.load %arg6[%c0_10, %c0_11] : memref<1x128xf32, #tpu.memory_space<vmem>>, vector<1x128xf32>
    %11 = vector.broadcast %10 : vector<1x128xf32> to vector<80x128xf32>
    %12 = arith.addf %9, %11 : vector<80x128xf32>
    %c8 = arith.constant 8 : index
    %c0_12 = arith.constant 0 : index
    %13 = vector.load %arg12[%c8, %c0_12] : memref<96x128xf32, #tpu.memory_space<vmem>>, vector<80x128xf32>
    tpu.vector_store %arg12[%c8, %c0_12], %12 {strides = array<i32>} : memref<96x128xf32, #tpu.memory_space<vmem>>, vector<80x128xf32>,
    %c0_i32 = arith.constant 0 : i32
    %14 = arith.cmpi eq, %arg1, %c0_i32 : i32
    %15 = arith.extui %14 : i1 to i32
    %c0_i32_13 = arith.constant 0 : i32
    %16 = arith.cmpi ne, %15, %c0_i32_13 : i32
    scf.if %16 {
      %cst_48 = arith.constant 0.000000e+00 : f32
      %114 = vector.broadcast %cst_48 : f32 to vector<8x128xf32>
      %c8_49 = arith.constant 8 : index
      %c0_50 = arith.constant 0 : index
      %115 = vector.load %arg12[%c8_49, %c0_50] : memref<96x128xf32, #tpu.memory_space<vmem>>, vector<8x128xf32>
      tpu.vector_store %arg12[%c8_49, %c0_50], %114 {strides = array<i32>} : memref<96x128xf32, #tpu.memory_space<vmem>>, vector<8x128xf32>,
    } else {
    }
    %c0_i32_14 = arith.constant 0 : i32
    %17 = arith.cmpi eq, %arg1, %c0_i32_14 : i32
    %18 = arith.extui %17 : i1 to i32
    %c0_i32_15 = arith.constant 0 : i32
    %19 = arith.cmpi ne, %18, %c0_i32_15 : i32
    scf.if %19 {
      %cst_48 = arith.constant 0.000000e+00 : f32
      %114 = vector.broadcast %cst_48 : f32 to vector<8x128xf32>
      %c80 = arith.constant 80 : index
      %c0_49 = arith.constant 0 : index
      %115 = vector.load %arg12[%c80, %c0_49] : memref<96x128xf32, #tpu.memory_space<vmem>>, vector<8x128xf32>
      tpu.vector_store %arg12[%c80, %c0_49], %114 {strides = array<i32>} : memref<96x128xf32, #tpu.memory_space<vmem>>, vector<8x128xf32>,
    } else {
    }
    %c0_16 = arith.constant 0 : index
    %c0_17 = arith.constant 0 : index
    %20 = vector.load %arg7[%c0_16, %c0_17] : memref<9x128xf32, #tpu.memory_space<vmem>>, vector<9x128xf32>
    %21 = tpu.iota {dimensions = array<i32: 0>} : vector<64x1xi32>
    %c8_i32 = arith.constant 8 : i32
    %c0_i32_18 = arith.constant 0 : i32
    %22 = arith.cmpi eq, %c8_i32, %c0_i32_18 : i32
    %c1_i32 = arith.constant 1 : i32
    %23 = arith.select %22, %c1_i32, %c8_i32 : i32
    %24 = vector.broadcast %23 : i32 to vector<64x1xi32>
    %25 = arith.remsi %21, %24 : vector<64x1xi32>
    %c0_i32_19 = arith.constant 0 : i32
    %26 = vector.broadcast %c0_i32_19 : i32 to vector<64x1xi32>
    %27 = arith.cmpi ne, %25, %26 : vector<64x1xi32>
    %c0_i32_20 = arith.constant 0 : i32
    %28 = vector.broadcast %c0_i32_20 : i32 to vector<64x1xi32>
    %29 = arith.cmpi slt, %25, %28 : vector<64x1xi32>
    %c0_i32_21 = arith.constant 0 : i32
    %30 = arith.cmpi slt, %23, %c0_i32_21 : i32
    %31 = vector.broadcast %30 : i1 to vector<64x1xi1>
    %32 = vector.broadcast %31 : vector<64x1xi1> to vector<64x1xi1>
    %33 = arith.xori %29, %32 : vector<64x1xi1>
    %34 = arith.andi %33, %27 : vector<64x1xi1>
    %35 = vector.broadcast %23 : i32 to vector<64x1xi32>
    %36 = arith.addi %25, %35 : vector<64x1xi32>
    %37 = arith.select %34, %36, %25 : vector<64x1xi1>, vector<64x1xi32>
    %c1_i32_22 = arith.constant 1 : i32
    %38 = vector.broadcast %c1_i32_22 : i32 to vector<64x1xi32>
    %39 = arith.cmpi sge, %37, %38 : vector<64x1xi32>
    %c7_i32 = arith.constant 7 : i32
    %40 = vector.broadcast %c7_i32 : i32 to vector<64x1xi32>
    %41 = arith.cmpi slt, %37, %40 : vector<64x1xi32>
    %c16 = arith.constant 16 : index
    %c0_23 = arith.constant 0 : index
    %42 = vector.load %arg12[%c16, %c0_23] : memref<96x128xf32, #tpu.memory_space<vmem>>, vector<64x128xf32>
    %43 = vector.extract_strided_slice %20 {offsets = [4, 0], sizes = [1, 128], strides = [1, 1]} : vector<9x128xf32> to vector<1x128xf32>
    %44 = vector.broadcast %43 : vector<1x128xf32> to vector<64x128xf32>
    %45 = arith.mulf %42, %44 : vector<64x128xf32>
    %c8_24 = arith.constant 8 : index
    %c0_25 = arith.constant 0 : index
    %46 = vector.load %arg12[%c8_24, %c0_25] : memref<96x128xf32, #tpu.memory_space<vmem>>, vector<64x128xf32>
    %47 = vector.extract_strided_slice %20 {offsets = [1, 0], sizes = [1, 128], strides = [1, 1]} : vector<9x128xf32> to vector<1x128xf32>
    %48 = vector.broadcast %47 : vector<1x128xf32> to vector<64x128xf32>
    %49 = arith.mulf %46, %48 : vector<64x128xf32>
    %50 = arith.addf %45, %49 : vector<64x128xf32>
    %c24 = arith.constant 24 : index
    %c0_26 = arith.constant 0 : index
    %51 = vector.load %arg12[%c24, %c0_26] : memref<96x128xf32, #tpu.memory_space<vmem>>, vector<64x128xf32>
    %52 = vector.extract_strided_slice %20 {offsets = [7, 0], sizes = [1, 128], strides = [1, 1]} : vector<9x128xf32> to vector<1x128xf32>
    %53 = vector.broadcast %52 : vector<1x128xf32> to vector<64x128xf32>
    %54 = arith.mulf %51, %53 : vector<64x128xf32>
    %55 = arith.addf %50, %54 : vector<64x128xf32>
    %c7 = arith.constant 7 : index
    %c0_27 = arith.constant 0 : index
    %56 = vector.load %arg12[%c7, %c0_27] : memref<96x128xf32, #tpu.memory_space<vmem>>, vector<64x128xf32>
    %57 = vector.extract_strided_slice %20 {offsets = [0, 0], sizes = [1, 128], strides = [1, 1]} : vector<9x128xf32> to vector<1x128xf32>
    %58 = vector.broadcast %57 : vector<1x128xf32> to vector<64x128xf32>
    %59 = arith.mulf %56, %58 : vector<64x128xf32>
    %c15 = arith.constant 15 : index
    %c0_28 = arith.constant 0 : index
    %60 = vector.load %arg12[%c15, %c0_28] : memref<96x128xf32, #tpu.memory_space<vmem>>, vector<64x128xf32>
    %61 = vector.extract_strided_slice %20 {offsets = [3, 0], sizes = [1, 128], strides = [1, 1]} : vector<9x128xf32> to vector<1x128xf32>
    %62 = vector.broadcast %61 : vector<1x128xf32> to vector<64x128xf32>
    %63 = arith.mulf %60, %62 : vector<64x128xf32>
    %64 = arith.addf %59, %63 : vector<64x128xf32>
    %c23 = arith.constant 23 : index
    %c0_29 = arith.constant 0 : index
    %65 = vector.load %arg12[%c23, %c0_29] : memref<96x128xf32, #tpu.memory_space<vmem>>, vector<64x128xf32>
    %66 = vector.extract_strided_slice %20 {offsets = [6, 0], sizes = [1, 128], strides = [1, 1]} : vector<9x128xf32> to vector<1x128xf32>
    %67 = vector.broadcast %66 : vector<1x128xf32> to vector<64x128xf32>
    %68 = arith.mulf %65, %67 : vector<64x128xf32>
    %69 = arith.addf %64, %68 : vector<64x128xf32>
    %c9 = arith.constant 9 : index
    %c0_30 = arith.constant 0 : index
    %70 = vector.load %arg12[%c9, %c0_30] : memref<96x128xf32, #tpu.memory_space<vmem>>, vector<64x128xf32>
    %71 = vector.extract_strided_slice %20 {offsets = [2, 0], sizes = [1, 128], strides = [1, 1]} : vector<9x128xf32> to vector<1x128xf32>
    %72 = vector.broadcast %71 : vector<1x128xf32> to vector<64x128xf32>
    %73 = arith.mulf %70, %72 : vector<64x128xf32>
    %c17 = arith.constant 17 : index
    %c0_31 = arith.constant 0 : index
    %74 = vector.load %arg12[%c17, %c0_31] : memref<96x128xf32, #tpu.memory_space<vmem>>, vector<64x128xf32>
    %75 = vector.extract_strided_slice %20 {offsets = [5, 0], sizes = [1, 128], strides = [1, 1]} : vector<9x128xf32> to vector<1x128xf32>
    %76 = vector.broadcast %75 : vector<1x128xf32> to vector<64x128xf32>
    %77 = arith.mulf %74, %76 : vector<64x128xf32>
    %78 = arith.addf %73, %77 : vector<64x128xf32>
    %c25 = arith.constant 25 : index
    %c0_32 = arith.constant 0 : index
    %79 = vector.load %arg12[%c25, %c0_32] : memref<96x128xf32, #tpu.memory_space<vmem>>, vector<64x128xf32>
    %80 = vector.extract_strided_slice %20 {offsets = [8, 0], sizes = [1, 128], strides = [1, 1]} : vector<9x128xf32> to vector<1x128xf32>
    %81 = vector.broadcast %80 : vector<1x128xf32> to vector<64x128xf32>
    %82 = arith.mulf %79, %81 : vector<64x128xf32>
    %83 = arith.addf %78, %82 : vector<64x128xf32>
    %cst_33 = arith.constant 0.000000e+00 : f32
    %84 = vector.shape_cast %39 : vector<64x1xi1> to vector<64x1xi1>
    %85 = vector.broadcast %84 : vector<64x1xi1> to vector<64x128xi1>
    %86 = vector.broadcast %cst_33 : f32 to vector<64x128xf32>
    %87 = arith.select %85, %69, %86 : vector<64x128xi1>, vector<64x128xf32>
    %88 = arith.addf %55, %87 : vector<64x128xf32>
    %cst_34 = arith.constant 0.000000e+00 : f32
    %89 = vector.shape_cast %41 : vector<64x1xi1> to vector<64x1xi1>
    %90 = vector.broadcast %89 : vector<64x1xi1> to vector<64x128xi1>
    %91 = vector.broadcast %cst_34 : f32 to vector<64x128xf32>
    %92 = arith.select %90, %83, %91 : vector<64x128xi1>, vector<64x128xf32>
    %93 = arith.addf %88, %92 : vector<64x128xf32>
    %c0_35 = arith.constant 0 : index
    %c0_36 = arith.constant 0 : index
    %94 = vector.load %arg8[%c0_35, %c0_36] : memref<1x128xf32, #tpu.memory_space<vmem>>, vector<1x128xf32>
    %95 = vector.broadcast %94 : vector<1x128xf32> to vector<64x128xf32>
    %96 = arith.addf %93, %95 : vector<64x128xf32>
    %cst_37 = arith.constant 5.000000e-01 : f32
    %97 = vector.broadcast %cst_37 : f32 to vector<64x128xf32>
    %98 = arith.mulf %97, %96 : vector<64x128xf32>
    %cst_38 = arith.constant 0.707106769 : f32
    %99 = vector.broadcast %cst_38 : f32 to vector<64x128xf32>
    %100 = arith.mulf %96, %99 : vector<64x128xf32>
    %101 = math.erf %100 : vector<64x128xf32>
    %cst_39 = arith.constant 1.000000e+00 : f32
    %102 = vector.broadcast %cst_39 : f32 to vector<64x128xf32>
    %103 = arith.addf %102, %101 : vector<64x128xf32>
    %104 = arith.mulf %98, %103 : vector<64x128xf32>
    %105 = arith.truncf %104 : vector<64x128xf32> to vector<64x128xbf16>
    %c0_40 = arith.constant 0 : index
    %c0_41 = arith.constant 0 : index
    %106 = vector.load %arg9[%c0_40, %c0_41] : memref<128x32xbf16, #tpu.memory_space<vmem>>, vector<128x32xbf16>
    %cst_42 = arith.constant dense<0.000000e+00> : vector<64x32xf32>
    %107 = tpu.matmul %105, %106, %cst_42 {dimension_numbers = #tpu.dot_dimension_numbers<[1], [0], [0], [1], [0, 0, 1, 1], [], []>} : vector<64x128xbf16>, vector<128x32xbf16>, vector<64x32xf32> -> vector<64x32xf32>
    %c0_43 = arith.constant 0 : index
    %c0_44 = arith.constant 0 : index
    %108 = vector.load %arg10[%c0_43, %c0_44] : memref<1x32xf32, #tpu.memory_space<vmem>>, vector<1x32xf32>
    %109 = vector.broadcast %108 : vector<1x32xf32> to vector<64x32xf32>
    %110 = arith.addf %107, %109 : vector<64x32xf32>
    %c0_45 = arith.constant 0 : index
    %c0_46 = arith.constant 0 : index
    %c0_47 = arith.constant 0 : index
    %111 = vector.load %arg11[%c0_45, %c0_46, %c0_47] : memref<1x64x32xf32, #tpu.memory_space<vmem>>, vector<1x64x32xf32>
    %112 = vector.shape_cast %111 : vector<1x64x32xf32> to vector<64x32xf32>
    %113 = vector.shape_cast %110 : vector<64x32xf32> to vector<1x64x32xf32>
    tpu.vector_store %arg11[%c0_45, %c0_46, %c0_47], %113 {strides = array<i32>} : memref<1x64x32xf32, #tpu.memory_space<vmem>>, vector<1x64x32xf32>,
    return
  }
  func.func @transform_0(%arg0: i32, %arg1: i32) -> (i32, i32, i32) {
    %c0_i32 = arith.constant 0 : i32
    %c0_i32_0 = arith.constant 0 : i32
    return %arg0, %arg1, %c0_i32 : i32, i32, i32
  }
  func.func @transform_1(%arg0: i32, %arg1: i32) -> (i32, i32, i32) {
    %c8_i32 = arith.constant 8 : i32
    %0 = arith.muli %arg1, %c8_i32 : i32
    %c1_i32 = arith.constant 1 : i32
    %1 = arith.subi %0, %c1_i32 : i32
    %c0_i32 = arith.constant 0 : i32
    %2 = arith.maxsi %1, %c0_i32 : i32
    %c0_i32_0 = arith.constant 0 : i32
    %c0_i32_1 = arith.constant 0 : i32
    return %arg0, %2, %c0_i32_0 : i32, i32, i32
  }
  func.func @transform_2(%arg0: i32, %arg1: i32) -> (i32, i32, i32) {
    %c1_i32 = arith.constant 1 : i32
    %0 = arith.addi %arg1, %c1_i32 : i32
    %c8_i32 = arith.constant 8 : i32
    %1 = arith.muli %0, %c8_i32 : i32
    %c7_i32 = arith.constant 7 : i32
    %2 = arith.minsi %1, %c7_i32 : i32
    %c0_i32 = arith.constant 0 : i32
    %c0_i32_0 = arith.constant 0 : i32
    return %arg0, %2, %c0_i32 : i32, i32, i32
  }
  func.func @transform_3(%arg0: i32, %arg1: i32) -> (i32, i32) {
    %c0_i32 = arith.constant 0 : i32
    %c0_i32_0 = arith.constant 0 : i32
    %c0_i32_1 = arith.constant 0 : i32
    return %c0_i32, %c0_i32_0 : i32, i32
  }
  func.func @transform_4(%arg0: i32, %arg1: i32) -> (i32, i32) {
    %c0_i32 = arith.constant 0 : i32
    %c0_i32_0 = arith.constant 0 : i32
    %c0_i32_1 = arith.constant 0 : i32
    return %c0_i32, %c0_i32_0 : i32, i32
  }
  func.func @transform_5(%arg0: i32, %arg1: i32) -> (i32, i32) {
    %c0_i32 = arith.constant 0 : i32
    %c0_i32_0 = arith.constant 0 : i32
    %c0_i32_1 = arith.constant 0 : i32
    return %c0_i32, %c0_i32_0 : i32, i32
  }
  func.func @transform_6(%arg0: i32, %arg1: i32) -> (i32, i32) {
    %c0_i32 = arith.constant 0 : i32
    %c0_i32_0 = arith.constant 0 : i32
    %c0_i32_1 = arith.constant 0 : i32
    return %c0_i32, %c0_i32_0 : i32, i32
  }
  func.func @transform_7(%arg0: i32, %arg1: i32) -> (i32, i32) {
    %c0_i32 = arith.constant 0 : i32
    %c0_i32_0 = arith.constant 0 : i32
    %c0_i32_1 = arith.constant 0 : i32
    return %c0_i32, %c0_i32_0 : i32, i32
  }
  func.func @transform_8(%arg0: i32, %arg1: i32) -> (i32, i32) {
    %c0_i32 = arith.constant 0 : i32
    %c0_i32_0 = arith.constant 0 : i32
    %c0_i32_1 = arith.constant 0 : i32
    return %c0_i32, %c0_i32_0 : i32, i32
  }
  func.func @transform_9(%arg0: i32, %arg1: i32) -> (i32, i32, i32) {
    %c0_i32 = arith.constant 0 : i32
    %c0_i32_0 = arith.constant 0 : i32
    return %arg0, %arg1, %c0_i32 : i32, i32, i32
  }
}

module attributes {stable_mosaic.version = 11 : i64} {
  func.func @_mixffn_kernel(%arg0: i32, %arg1: i32, %arg2: memref<1x64x32xf32, #tpu.memory_space<vmem>>, %arg3: memref<1x8x32xf32, #tpu.memory_space<vmem>>, %arg4: memref<1x8x32xf32, #tpu.memory_space<vmem>>, %arg5: memref<32x128xbf16, #tpu.memory_space<vmem>>, %arg6: memref<1x128xf32, #tpu.memory_space<vmem>>, %arg7: memref<9x128xf32, #tpu.memory_space<vmem>>, %arg8: memref<1x128xf32, #tpu.memory_space<vmem>>, %arg9: memref<128x32xbf16, #tpu.memory_space<vmem>>, %arg10: memref<1x32xf32, #tpu.memory_space<vmem>>, %arg11: memref<1x64x32xf32, #tpu.memory_space<vmem>>, %arg12: memref<96x128xf32, #tpu.memory_space<vmem>>) attributes {dimension_semantics = [#tpu.dimension_semantics<parallel>, #tpu.dimension_semantics<parallel>], iteration_bounds = array<i64: 2, 1>, scalar_prefetch = 0 : i64, scratch_operands = 1 : i64, tpu.core_type = #tpu.core_type<tc>, window_params = [{transform_indices = @transform_0, window_bounds = array<i64: 1, 64, 32>}, {transform_indices = @transform_1, window_bounds = array<i64: 1, 8, 32>}, {transform_indices = @transform_2, window_bounds = array<i64: 1, 8, 32>}, {pipeline_mode = #tpu.pipeline_mode<synchronous>, transform_indices = @transform_3, window_bounds = array<i64: 32, 128>}, {pipeline_mode = #tpu.pipeline_mode<synchronous>, transform_indices = @transform_4, window_bounds = array<i64: 1, 128>}, {pipeline_mode = #tpu.pipeline_mode<synchronous>, transform_indices = @transform_5, window_bounds = array<i64: 9, 128>}, {pipeline_mode = #tpu.pipeline_mode<synchronous>, transform_indices = @transform_6, window_bounds = array<i64: 1, 128>}, {pipeline_mode = #tpu.pipeline_mode<synchronous>, transform_indices = @transform_7, window_bounds = array<i64: 128, 32>}, {pipeline_mode = #tpu.pipeline_mode<synchronous>, transform_indices = @transform_8, window_bounds = array<i64: 1, 32>}, {transform_indices = @transform_9, window_bounds = array<i64: 1, 64, 32>}]} {
    %c0 = arith.constant 0 : index
    %c0_0 = arith.constant 0 : index
    %c0_1 = arith.constant 0 : index
    %0 = vector.load %arg3[%c0, %c0_0, %c0_1] : memref<1x8x32xf32, #tpu.memory_space<vmem>>, vector<1x8x32xf32>
    %1 = vector.shape_cast %0 : vector<1x8x32xf32> to vector<8x32xf32>
    %c0_2 = arith.constant 0 : index
    %c0_3 = arith.constant 0 : index
    %c0_4 = arith.constant 0 : index
    %2 = vector.load %arg2[%c0_2, %c0_3, %c0_4] : memref<1x64x32xf32, #tpu.memory_space<vmem>>, vector<1x64x32xf32>
    %3 = vector.shape_cast %2 : vector<1x64x32xf32> to vector<64x32xf32>
    %c0_5 = arith.constant 0 : index
    %c0_6 = arith.constant 0 : index
    %c0_7 = arith.constant 0 : index
    %4 = vector.load %arg4[%c0_5, %c0_6, %c0_7] : memref<1x8x32xf32, #tpu.memory_space<vmem>>, vector<1x8x32xf32>
    %5 = vector.shape_cast %4 : vector<1x8x32xf32> to vector<8x32xf32>
    %6 = tpu.concatenate %1, %3, %5 in 0 : vector<8x32xf32>, vector<64x32xf32>, vector<8x32xf32> -> vector<80x32xf32>
    %7 = arith.truncf %6 : vector<80x32xf32> to vector<80x32xbf16>
    %c0_8 = arith.constant 0 : index
    %c0_9 = arith.constant 0 : index
    %8 = vector.load %arg5[%c0_8, %c0_9] : memref<32x128xbf16, #tpu.memory_space<vmem>>, vector<32x128xbf16>
    %cst = arith.constant dense<0.000000e+00> : vector<80x128xf32>
    %9 = tpu.matmul %7, %8, %cst {dimension_numbers = #tpu.dot_dimension_numbers<[1], [0], [0], [1], [0, 0, 1, 1], [], []>} : vector<80x32xbf16>, vector<32x128xbf16>, vector<80x128xf32> -> vector<80x128xf32>
    %c0_10 = arith.constant 0 : index
    %c0_11 = arith.constant 0 : index
    %10 = vector.load %arg6[%c0_10, %c0_11] : memref<1x128xf32, #tpu.memory_space<vmem>>, vector<1x128xf32>
    %11 = vector.broadcast %10 : vector<1x128xf32> to vector<80x128xf32>
    %12 = arith.addf %9, %11 : vector<80x128xf32>
    %c8 = arith.constant 8 : index
    %c0_12 = arith.constant 0 : index
    %13 = vector.load %arg12[%c8, %c0_12] : memref<96x128xf32, #tpu.memory_space<vmem>>, vector<80x128xf32>
    tpu.vector_store %arg12[%c8, %c0_12], %12 {strides = array<i32>} : memref<96x128xf32, #tpu.memory_space<vmem>>, vector<80x128xf32>,
    %c0_i32 = arith.constant 0 : i32
    %14 = arith.cmpi eq, %arg1, %c0_i32 : i32
    %15 = arith.extui %14 : i1 to i32
    %c0_i32_13 = arith.constant 0 : i32
    %16 = arith.cmpi ne, %15, %c0_i32_13 : i32
    scf.if %16 {
      %cst_48 = arith.constant 0.000000e+00 : f32
      %114 = vector.broadcast %cst_48 : f32 to vector<8x128xf32>
      %c8_49 = arith.constant 8 : index
      %c0_50 = arith.constant 0 : index
      %115 = vector.load %arg12[%c8_49, %c0_50] : memref<96x128xf32, #tpu.memory_space<vmem>>, vector<8x128xf32>
      tpu.vector_store %arg12[%c8_49, %c0_50], %114 {strides = array<i32>} : memref<96x128xf32, #tpu.memory_space<vmem>>, vector<8x128xf32>,
    } else {
    }
    %c0_i32_14 = arith.constant 0 : i32
    %17 = arith.cmpi eq, %arg1, %c0_i32_14 : i32
    %18 = arith.extui %17 : i1 to i32
    %c0_i32_15 = arith.constant 0 : i32
    %19 = arith.cmpi ne, %18, %c0_i32_15 : i32
    scf.if %19 {
      %cst_48 = arith.constant 0.000000e+00 : f32
      %114 = vector.broadcast %cst_48 : f32 to vector<8x128xf32>
      %c80 = arith.constant 80 : index
      %c0_49 = arith.constant 0 : index
      %115 = vector.load %arg12[%c80, %c0_49] : memref<96x128xf32, #tpu.memory_space<vmem>>, vector<8x128xf32>
      tpu.vector_store %arg12[%c80, %c0_49], %114 {strides = array<i32>} : memref<96x128xf32, #tpu.memory_space<vmem>>, vector<8x128xf32>,
    } else {
    }
    %c0_16 = arith.constant 0 : index
    %c0_17 = arith.constant 0 : index
    %20 = vector.load %arg7[%c0_16, %c0_17] : memref<9x128xf32, #tpu.memory_space<vmem>>, vector<9x128xf32>
    %21 = tpu.iota {dimensions = array<i32: 0>} : vector<64x1xi32>
    %c8_i32 = arith.constant 8 : i32
    %c0_i32_18 = arith.constant 0 : i32
    %22 = arith.cmpi eq, %c8_i32, %c0_i32_18 : i32
    %c1_i32 = arith.constant 1 : i32
    %23 = arith.select %22, %c1_i32, %c8_i32 : i32
    %24 = vector.broadcast %23 : i32 to vector<64x1xi32>
    %25 = arith.remsi %21, %24 : vector<64x1xi32>
    %c0_i32_19 = arith.constant 0 : i32
    %26 = vector.broadcast %c0_i32_19 : i32 to vector<64x1xi32>
    %27 = arith.cmpi ne, %25, %26 : vector<64x1xi32>
    %c0_i32_20 = arith.constant 0 : i32
    %28 = vector.broadcast %c0_i32_20 : i32 to vector<64x1xi32>
    %29 = arith.cmpi slt, %25, %28 : vector<64x1xi32>
    %c0_i32_21 = arith.constant 0 : i32
    %30 = arith.cmpi slt, %23, %c0_i32_21 : i32
    %31 = vector.broadcast %30 : i1 to vector<64x1xi1>
    %32 = vector.broadcast %31 : vector<64x1xi1> to vector<64x1xi1>
    %33 = arith.xori %29, %32 : vector<64x1xi1>
    %34 = arith.andi %33, %27 : vector<64x1xi1>
    %35 = vector.broadcast %23 : i32 to vector<64x1xi32>
    %36 = arith.addi %25, %35 : vector<64x1xi32>
    %37 = arith.select %34, %36, %25 : vector<64x1xi1>, vector<64x1xi32>
    %c1_i32_22 = arith.constant 1 : i32
    %38 = vector.broadcast %c1_i32_22 : i32 to vector<64x1xi32>
    %39 = arith.cmpi sge, %37, %38 : vector<64x1xi32>
    %c7_i32 = arith.constant 7 : i32
    %40 = vector.broadcast %c7_i32 : i32 to vector<64x1xi32>
    %41 = arith.cmpi slt, %37, %40 : vector<64x1xi32>
    %c16 = arith.constant 16 : index
    %c0_23 = arith.constant 0 : index
    %42 = vector.load %arg12[%c16, %c0_23] : memref<96x128xf32, #tpu.memory_space<vmem>>, vector<64x128xf32>
    %43 = vector.extract_strided_slice %20 {offsets = [4, 0], sizes = [1, 128], strides = [1, 1]} : vector<9x128xf32> to vector<1x128xf32>
    %44 = vector.broadcast %43 : vector<1x128xf32> to vector<64x128xf32>
    %45 = arith.mulf %42, %44 : vector<64x128xf32>
    %c8_24 = arith.constant 8 : index
    %c0_25 = arith.constant 0 : index
    %46 = vector.load %arg12[%c8_24, %c0_25] : memref<96x128xf32, #tpu.memory_space<vmem>>, vector<64x128xf32>
    %47 = vector.extract_strided_slice %20 {offsets = [1, 0], sizes = [1, 128], strides = [1, 1]} : vector<9x128xf32> to vector<1x128xf32>
    %48 = vector.broadcast %47 : vector<1x128xf32> to vector<64x128xf32>
    %49 = arith.mulf %46, %48 : vector<64x128xf32>
    %50 = arith.addf %45, %49 : vector<64x128xf32>
    %c24 = arith.constant 24 : index
    %c0_26 = arith.constant 0 : index
    %51 = vector.load %arg12[%c24, %c0_26] : memref<96x128xf32, #tpu.memory_space<vmem>>, vector<64x128xf32>
    %52 = vector.extract_strided_slice %20 {offsets = [7, 0], sizes = [1, 128], strides = [1, 1]} : vector<9x128xf32> to vector<1x128xf32>
    %53 = vector.broadcast %52 : vector<1x128xf32> to vector<64x128xf32>
    %54 = arith.mulf %51, %53 : vector<64x128xf32>
    %55 = arith.addf %50, %54 : vector<64x128xf32>
    %c7 = arith.constant 7 : index
    %c0_27 = arith.constant 0 : index
    %56 = vector.load %arg12[%c7, %c0_27] : memref<96x128xf32, #tpu.memory_space<vmem>>, vector<64x128xf32>
    %57 = vector.extract_strided_slice %20 {offsets = [0, 0], sizes = [1, 128], strides = [1, 1]} : vector<9x128xf32> to vector<1x128xf32>
    %58 = vector.broadcast %57 : vector<1x128xf32> to vector<64x128xf32>
    %59 = arith.mulf %56, %58 : vector<64x128xf32>
    %c15 = arith.constant 15 : index
    %c0_28 = arith.constant 0 : index
    %60 = vector.load %arg12[%c15, %c0_28] : memref<96x128xf32, #tpu.memory_space<vmem>>, vector<64x128xf32>
    %61 = vector.extract_strided_slice %20 {offsets = [3, 0], sizes = [1, 128], strides = [1, 1]} : vector<9x128xf32> to vector<1x128xf32>
    %62 = vector.broadcast %61 : vector<1x128xf32> to vector<64x128xf32>
    %63 = arith.mulf %60, %62 : vector<64x128xf32>
    %64 = arith.addf %59, %63 : vector<64x128xf32>
    %c23 = arith.constant 23 : index
    %c0_29 = arith.constant 0 : index
    %65 = vector.load %arg12[%c23, %c0_29] : memref<96x128xf32, #tpu.memory_space<vmem>>, vector<64x128xf32>
    %66 = vector.extract_strided_slice %20 {offsets = [6, 0], sizes = [1, 128], strides = [1, 1]} : vector<9x128xf32> to vector<1x128xf32>
    %67 = vector.broadcast %66 : vector<1x128xf32> to vector<64x128xf32>
    %68 = arith.mulf %65, %67 : vector<64x128xf32>
    %69 = arith.addf %64, %68 : vector<64x128xf32>
    %c9 = arith.constant 9 : index
    %c0_30 = arith.constant 0 : index
    %70 = vector.load %arg12[%c9, %c0_30] : memref<96x128xf32, #tpu.memory_space<vmem>>, vector<64x128xf32>
    %71 = vector.extract_strided_slice %20 {offsets = [2, 0], sizes = [1, 128], strides = [1, 1]} : vector<9x128xf32> to vector<1x128xf32>
    %72 = vector.broadcast %71 : vector<1x128xf32> to vector<64x128xf32>
    %73 = arith.mulf %70, %72 : vector<64x128xf32>
    %c17 = arith.constant 17 : index
    %c0_31 = arith.constant 0 : index
    %74 = vector.load %arg12[%c17, %c0_31] : memref<96x128xf32, #tpu.memory_space<vmem>>, vector<64x128xf32>
    %75 = vector.extract_strided_slice %20 {offsets = [5, 0], sizes = [1, 128], strides = [1, 1]} : vector<9x128xf32> to vector<1x128xf32>
    %76 = vector.broadcast %75 : vector<1x128xf32> to vector<64x128xf32>
    %77 = arith.mulf %74, %76 : vector<64x128xf32>
    %78 = arith.addf %73, %77 : vector<64x128xf32>
    %c25 = arith.constant 25 : index
    %c0_32 = arith.constant 0 : index
    %79 = vector.load %arg12[%c25, %c0_32] : memref<96x128xf32, #tpu.memory_space<vmem>>, vector<64x128xf32>
    %80 = vector.extract_strided_slice %20 {offsets = [8, 0], sizes = [1, 128], strides = [1, 1]} : vector<9x128xf32> to vector<1x128xf32>
    %81 = vector.broadcast %80 : vector<1x128xf32> to vector<64x128xf32>
    %82 = arith.mulf %79, %81 : vector<64x128xf32>
    %83 = arith.addf %78, %82 : vector<64x128xf32>
    %cst_33 = arith.constant 0.000000e+00 : f32
    %84 = vector.shape_cast %39 : vector<64x1xi1> to vector<64x1xi1>
    %85 = vector.broadcast %84 : vector<64x1xi1> to vector<64x128xi1>
    %86 = vector.broadcast %cst_33 : f32 to vector<64x128xf32>
    %87 = arith.select %85, %69, %86 : vector<64x128xi1>, vector<64x128xf32>
    %88 = arith.addf %55, %87 : vector<64x128xf32>
    %cst_34 = arith.constant 0.000000e+00 : f32
    %89 = vector.shape_cast %41 : vector<64x1xi1> to vector<64x1xi1>
    %90 = vector.broadcast %89 : vector<64x1xi1> to vector<64x128xi1>
    %91 = vector.broadcast %cst_34 : f32 to vector<64x128xf32>
    %92 = arith.select %90, %83, %91 : vector<64x128xi1>, vector<64x128xf32>
    %93 = arith.addf %88, %92 : vector<64x128xf32>
    %c0_35 = arith.constant 0 : index
    %c0_36 = arith.constant 0 : index
    %94 = vector.load %arg8[%c0_35, %c0_36] : memref<1x128xf32, #tpu.memory_space<vmem>>, vector<1x128xf32>
    %95 = vector.broadcast %94 : vector<1x128xf32> to vector<64x128xf32>
    %96 = arith.addf %93, %95 : vector<64x128xf32>
    %cst_37 = arith.constant 5.000000e-01 : f32
    %97 = vector.broadcast %cst_37 : f32 to vector<64x128xf32>
    %98 = arith.mulf %97, %96 : vector<64x128xf32>
    %cst_38 = arith.constant 0.707106769 : f32
    %99 = vector.broadcast %cst_38 : f32 to vector<64x128xf32>
    %100 = arith.mulf %96, %99 : vector<64x128xf32>
    %101 = math.erf %100 : vector<64x128xf32>
    %cst_39 = arith.constant 1.000000e+00 : f32
    %102 = vector.broadcast %cst_39 : f32 to vector<64x128xf32>
    %103 = arith.addf %102, %101 : vector<64x128xf32>
    %104 = arith.mulf %98, %103 : vector<64x128xf32>
    %105 = arith.truncf %104 : vector<64x128xf32> to vector<64x128xbf16>
    %c0_40 = arith.constant 0 : index
    %c0_41 = arith.constant 0 : index
    %106 = vector.load %arg9[%c0_40, %c0_41] : memref<128x32xbf16, #tpu.memory_space<vmem>>, vector<128x32xbf16>
    %cst_42 = arith.constant dense<0.000000e+00> : vector<64x32xf32>
    %107 = tpu.matmul %105, %106, %cst_42 {dimension_numbers = #tpu.dot_dimension_numbers<[1], [0], [0], [1], [0, 0, 1, 1], [], []>} : vector<64x128xbf16>, vector<128x32xbf16>, vector<64x32xf32> -> vector<64x32xf32>
    %c0_43 = arith.constant 0 : index
    %c0_44 = arith.constant 0 : index
    %108 = vector.load %arg10[%c0_43, %c0_44] : memref<1x32xf32, #tpu.memory_space<vmem>>, vector<1x32xf32>
    %109 = vector.broadcast %108 : vector<1x32xf32> to vector<64x32xf32>
    %110 = arith.addf %107, %109 : vector<64x32xf32>
    %c0_45 = arith.constant 0 : index
    %c0_46 = arith.constant 0 : index
    %c0_47 = arith.constant 0 : index
    %111 = vector.load %arg11[%c0_45, %c0_46, %c0_47] : memref<1x64x32xf32, #tpu.memory_space<vmem>>, vector<1x64x32xf32>
    %112 = vector.shape_cast %111 : vector<1x64x32xf32> to vector<64x32xf32>
    %113 = vector.shape_cast %110 : vector<64x32xf32> to vector<1x64x32xf32>
    tpu.vector_store %arg11[%c0_45, %c0_46, %c0_47], %113 {strides = array<i32>} : memref<1x64x32xf32, #tpu.memory_space<vmem>>, vector<1x64x32xf32>,
    return
  }
  func.func @transform_0(%arg0: i32, %arg1: i32) -> (i32, i32, i32) {
    %c0_i32 = arith.constant 0 : i32
    %c0_i32_0 = arith.constant 0 : i32
    return %arg0, %arg1, %c0_i32 : i32, i32, i32
  }
  func.func @transform_1(%arg0: i32, %arg1: i32) -> (i32, i32, i32) {
    %c8_i32 = arith.constant 8 : i32
    %0 = arith.muli %arg1, %c8_i32 : i32
    %c1_i32 = arith.constant 1 : i32
    %1 = arith.subi %0, %c1_i32 : i32
    %c0_i32 = arith.constant 0 : i32
    %2 = arith.maxsi %1, %c0_i32 : i32
    %c0_i32_0 = arith.constant 0 : i32
    %c0_i32_1 = arith.constant 0 : i32
    return %arg0, %2, %c0_i32_0 : i32, i32, i32
  }
  func.func @transform_2(%arg0: i32, %arg1: i32) -> (i32, i32, i32) {
    %c1_i32 = arith.constant 1 : i32
    %0 = arith.addi %arg1, %c1_i32 : i32
    %c8_i32 = arith.constant 8 : i32
    %1 = arith.muli %0, %c8_i32 : i32
    %c7_i32 = arith.constant 7 : i32
    %2 = arith.minsi %1, %c7_i32 : i32
    %c0_i32 = arith.constant 0 : i32
    %c0_i32_0 = arith.constant 0 : i32
    return %arg0, %2, %c0_i32 : i32, i32, i32
  }
  func.func @transform_3(%arg0: i32, %arg1: i32) -> (i32, i32) {
    %c0_i32 = arith.constant 0 : i32
    %c0_i32_0 = arith.constant 0 : i32
    %c0_i32_1 = arith.constant 0 : i32
    return %c0_i32, %c0_i32_0 : i32, i32
  }
  func.func @transform_4(%arg0: i32, %arg1: i32) -> (i32, i32) {
    %c0_i32 = arith.constant 0 : i32
    %c0_i32_0 = arith.constant 0 : i32
    %c0_i32_1 = arith.constant 0 : i32
    return %c0_i32, %c0_i32_0 : i32, i32
  }
  func.func @transform_5(%arg0: i32, %arg1: i32) -> (i32, i32) {
    %c0_i32 = arith.constant 0 : i32
    %c0_i32_0 = arith.constant 0 : i32
    %c0_i32_1 = arith.constant 0 : i32
    return %c0_i32, %c0_i32_0 : i32, i32
  }
  func.func @transform_6(%arg0: i32, %arg1: i32) -> (i32, i32) {
    %c0_i32 = arith.constant 0 : i32
    %c0_i32_0 = arith.constant 0 : i32
    %c0_i32_1 = arith.constant 0 : i32
    return %c0_i32, %c0_i32_0 : i32, i32
  }
  func.func @transform_7(%arg0: i32, %arg1: i32) -> (i32, i32) {
    %c0_i32 = arith.constant 0 : i32
    %c0_i32_0 = arith.constant 0 : i32
    %c0_i32_1 = arith.constant 0 : i32
    return %c0_i32, %c0_i32_0 : i32, i32
  }
  func.func @transform_8(%arg0: i32, %arg1: i32) -> (i32, i32) {
    %c0_i32 = arith.constant 0 : i32
    %c0_i32_0 = arith.constant 0 : i32
    %c0_i32_1 = arith.constant 0 : i32
    return %c0_i32, %c0_i32_0 : i32, i32
  }
  func.func @transform_9(%arg0: i32, %arg1: i32) -> (i32, i32, i32) {
    %c0_i32 = arith.constant 0 : i32
    %c0_i32_0 = arith.constant 0 : i32
    return %arg0, %arg1, %c0_i32 : i32, i32, i32
  }
}

</mosaic_0001>

<llo_original>
// kernel: tpu_custom_call.1
$region0: #{tpu_custom_call.1}
  #allocation0 [shape = 'u32[]', space=smem, size = 0x4, offset = 0x4, fixed_abs, tag = 'smem constant byte address 0x4 - core index']
  #allocation1 [shape = 'u32[144,128]{1,0:T(1,128)}', space=vmem, size = 0x12000, scoped, tag = 'internal scratch']
  #allocation2 [shape = 'f32[96,128]{1,0:T(8,128)}', space=vmem, size = 0xc000, scoped, tag = 'scratch operand']
  %s0 = inlined_call_operand.vmem [shape: f32[2,64,32], index: 0, kind: input, shape index: {}]
  %s1 = inlined_call_operand.vmem [shape: f32[2,64,32], index: 1, kind: input, shape index: {}]
  %s2 = inlined_call_operand.vmem [shape: f32[2,64,32], index: 2, kind: input, shape index: {}]
  %s3 = inlined_call_operand.vmem [shape: bf16[32,128], index: 3, kind: input, shape index: {}]
  %s4 = inlined_call_operand.vmem [shape: f32[1,128], index: 4, kind: input, shape index: {}]
  %s5 = inlined_call_operand.vmem [shape: f32[9,128], index: 5, kind: input, shape index: {}]
  %s6 = inlined_call_operand.vmem [shape: f32[1,128], index: 6, kind: input, shape index: {}]
  %s7 = inlined_call_operand.vmem [shape: bf16[128,32], index: 7, kind: input, shape index: {}]
  %s8 = inlined_call_operand.vmem [shape: f32[1,32], index: 8, kind: input, shape index: {}]
  %s9 = inlined_call_operand.vmem [shape: f32[2,64,32], index: 9, kind: output, shape index: {}]
  %s10 = sld [smem:[#allocation0]]
  $region73: #{tpu_custom_call.1} parent=0
    _
  %s12 = ssub.s32 1, %s10
  %s13 = scalar_select 0, %s12, %s10
  loop: start=0, step=1, limit=4
  $region2: #{tpu_custom_call.1} parent=0 // loop_pre_header
    _
  $region3: #{tpu_custom_call.1} parent=0 // loop_header
    %s15 = sphi 0, %s19
    %p16 = scmp.ge.s32.totalorder %s15, 4
    %s22 = sphi 0, %s34
    %s23 = sphi 0, %s30
    %s24 = sphi 0, %s22
    %s25 = sphi 0, %s23
    %s26 = sphi 0, %s24
    %s27 = sphi 0, %s25
    %s39 = sphi 0, %s41
    %s42 = sphi 0, %s39
    %s43 = sphi 0, %s42
    %s59 = sphi 0, %s43
    %s75 = sphi 0, %s77
    %s78 = sphi 0, %s75
    %s79 = sphi 0, %s78
    %s95 = sphi 0, %s79
    %s111 = sphi 0, %s113
    %s114 = sphi 0, %s111
    %s115 = sphi 0, %s114
    %s131 = sphi 0, %s115
    %s135 = sphi 0, %s135
    %s137 = sphi 0, %s135
    %s138 = sphi 0, %s137
    %s152 = sphi 0, %s138
    %s156 = sphi 0, %s156
    %s158 = sphi 0, %s156
    %s159 = sphi 0, %s158
    %s173 = sphi 0, %s159
    %s177 = sphi 0, %s177
    %s179 = sphi 0, %s177
    %s180 = sphi 0, %s179
    %s194 = sphi 0, %s180
    %s198 = sphi 0, %s198
    %s200 = sphi 0, %s198
    %s201 = sphi 0, %s200
    %s215 = sphi 0, %s201
    %s219 = sphi 0, %s219
    %s221 = sphi 0, %s219
    %s222 = sphi 0, %s221
    %s236 = sphi 0, %s222
    %s240 = sphi 0, %s240
    %s242 = sphi 0, %s240
    %s243 = sphi 0, %s242
    %s257 = sphi 0, %s243
    %s265 = sphi 0, %s267
    %s268 = sphi 0, %s265
    %s269 = sphi 0, %s268
    %s285 = sphi 0, %s269
  $region4: #{tpu_custom_call.1} parent=0 // loop_header_branch
    %18 = sbr.rel (%p16) target = $region8
  $region5: #{tpu_custom_call.1} parent=0 // loop_body
    %s20 = ssub.s32 %s15, 1
    %s21 = ssub.s32 %s15, 2
    %s28 = sadd.s32 1, %s23
    %p29 = scmp.ge.s32.totalorder %s28, 1
    %s30 = scalar_select %p29, 0, %s28
    %s31 = sadd.s32 1, %s22
    %s32 = scalar_select %p29, %s31, %s22
    %p33 = scmp.ge.s32.totalorder %s32, 2
    %s34 = scalar_select %p33, 0, %s32
    %s35 = ssub.s32 %s22, %s34
    %s36 = ssub.s32 %s23, %s30
    %s37 = sor.u32 %s35, %s36
    %p38 = scmp.eq.s32.totalorder %s37, 0
    %s40 = sadd.s32 %s39, 1
    %s41 = scalar_select %p38, %s39, %s40
    %p44 = pneg %p38
    %p45 = scmp.eq.s32.totalorder %s15, 1
    %p46 = por %p44, %p45
    %p47 = scmp.ne.s32.totalorder %s39, %s42
    %p48 = scmp.eq.s32.totalorder %s15, 0
    %p49 = por %p47, %p48
    %p50 = scmp.ne.s32.totalorder %s39, %s42
    %p51 = scmp.eq.s32.totalorder %s20, 1
    %p52 = por %p50, %p51
    %p53 = scmp.ne.s32.totalorder %s42, %s43
    %p54 = scmp.eq.s32.totalorder %s20, 0
    %p55 = por %p53, %p54
    %p56 = scmp.ne.s32.totalorder %s42, %s43
    %p57 = scmp.eq.s32.totalorder %s21, 1
    %p58 = por %p56, %p57
    %p60 = scmp.ne.s32.totalorder %s43, %s59
    %p61 = scmp.eq.s32.totalorder %s21, 0
    %p62 = por %p60, %p61
    %s63 = smul.u32 %s23, 8
    %s64 = ssub.s32 %s63, 1
    %p65 = scmp.gt.s32.totalorder %s64, 0
    %s66 = scalar_select %p65, %s64, 0
    %s67 = smul.u32 %s30, 8
    %s68 = ssub.s32 %s67, 1
    %p69 = scmp.gt.s32.totalorder %s68, 0
    %s70 = scalar_select %p69, %s68, 0
    %s71 = ssub.s32 %s22, %s34
    %s72 = ssub.s32 %s66, %s70
    %s73 = sor.u32 %s71, %s72
    %p74 = scmp.eq.s32.totalorder %s73, 0
    %s76 = sadd.s32 %s75, 1
    %s77 = scalar_select %p74, %s75, %s76
    %p80 = pneg %p74
    %p81 = scmp.eq.s32.totalorder %s15, 1
    %p82 = por %p80, %p81
    %p83 = scmp.ne.s32.totalorder %s75, %s78
    %p84 = scmp.eq.s32.totalorder %s15, 0
    %p85 = por %p83, %p84
    %p86 = scmp.ne.s32.totalorder %s75, %s78
    %p87 = scmp.eq.s32.totalorder %s20, 1
    %p88 = por %p86, %p87
    %p89 = scmp.ne.s32.totalorder %s78, %s79
    %p90 = scmp.eq.s32.totalorder %s20, 0
    %p91 = por %p89, %p90
    %p92 = scmp.ne.s32.totalorder %s78, %s79
    %p93 = scmp.eq.s32.totalorder %s21, 1
    %p94 = por %p92, %p93
    %p96 = scmp.ne.s32.totalorder %s79, %s95
    %p97 = scmp.eq.s32.totalorder %s21, 0
    %p98 = por %p96, %p97
    %s99 = sadd.s32 %s23, 1
    %s100 = smul.u32 %s99, 8
    %p101 = scmp.lt.s32.totalorder %s100, 7
    %s102 = scalar_select %p101, %s100, 7
    %s103 = sadd.s32 %s30, 1
    %s104 = smul.u32 %s103, 8
    %p105 = scmp.lt.s32.totalorder %s104, 7
    %s106 = scalar_select %p105, %s104, 7
    %s107 = ssub.s32 %s22, %s34
    %s108 = ssub.s32 %s102, %s106
    %s109 = sor.u32 %s107, %s108
    %p110 = scmp.eq.s32.totalorder %s109, 0
    %s112 = sadd.s32 %s111, 1
    %s113 = scalar_select %p110, %s111, %s112
    %p116 = pneg %p110
    %p117 = scmp.eq.s32.totalorder %s15, 1
    %p118 = por %p116, %p117
    %p119 = scmp.ne.s32.totalorder %s111, %s114
    %p120 = scmp.eq.s32.totalorder %s15, 0
    %p121 = por %p119, %p120
    %p122 = scmp.ne.s32.totalorder %s111, %s114
    %p123 = scmp.eq.s32.totalorder %s20, 1
    %p124 = por %p122, %p123
    %p125 = scmp.ne.s32.totalorder %s114, %s115
    %p126 = scmp.eq.s32.totalorder %s20, 0
    %p127 = por %p125, %p126
    %p128 = scmp.ne.s32.totalorder %s114, %s115
    %p129 = scmp.eq.s32.totalorder %s21, 1
    %p130 = por %p128, %p129
    %p132 = scmp.ne.s32.totalorder %s115, %s131
    %p133 = scmp.eq.s32.totalorder %s21, 0
    %p134 = por %p132, %p133
    %s136 = sadd.s32 %s135, 1
    %p139 = scmp.eq.s32.totalorder %s15, 1
    %p140 = scmp.ne.s32.totalorder %s135, %s137
    %p141 = scmp.eq.s32.totalorder %s15, 0
    %p142 = por %p140, %p141
    %p143 = scmp.ne.s32.totalorder %s135, %s137
    %p144 = scmp.eq.s32.totalorder %s20, 1
    %p145 = por %p143, %p144
    %p146 = scmp.ne.s32.totalorder %s137, %s138
    %p147 = scmp.eq.s32.totalorder %s20, 0
    %p148 = por %p146, %p147
    %p149 = scmp.ne.s32.totalorder %s137, %s138
    %p150 = scmp.eq.s32.totalorder %s21, 1
    %p151 = por %p149, %p150
    %p153 = scmp.ne.s32.totalorder %s138, %s152
    %p154 = scmp.eq.s32.totalorder %s21, 0
    %p155 = por %p153, %p154
    %s157 = sadd.s32 %s156, 1
    %p160 = scmp.eq.s32.totalorder %s15, 1
    %p161 = scmp.ne.s32.totalorder %s156, %s158
    %p162 = scmp.eq.s32.totalorder %s15, 0
    %p163 = por %p161, %p162
    %p164 = scmp.ne.s32.totalorder %s156, %s158
    %p165 = scmp.eq.s32.totalorder %s20, 1
    %p166 = por %p164, %p165
    %p167 = scmp.ne.s32.totalorder %s158, %s159
    %p168 = scmp.eq.s32.totalorder %s20, 0
    %p169 = por %p167, %p168
    %p170 = scmp.ne.s32.totalorder %s158, %s159
    %p171 = scmp.eq.s32.totalorder %s21, 1
    %p172 = por %p170, %p171
    %p174 = scmp.ne.s32.totalorder %s159, %s173
    %p175 = scmp.eq.s32.totalorder %s21, 0
    %p176 = por %p174, %p175
    %s178 = sadd.s32 %s177, 1
    %p181 = scmp.eq.s32.totalorder %s15, 1
    %p182 = scmp.ne.s32.totalorder %s177, %s179
    %p183 = scmp.eq.s32.totalorder %s15, 0
    %p184 = por %p182, %p183
    %p185 = scmp.ne.s32.totalorder %s177, %s179
    %p186 = scmp.eq.s32.totalorder %s20, 1
    %p187 = por %p185, %p186
    %p188 = scmp.ne.s32.totalorder %s179, %s180
    %p189 = scmp.eq.s32.totalorder %s20, 0
    %p190 = por %p188, %p189
    %p191 = scmp.ne.s32.totalorder %s179, %s180
    %p192 = scmp.eq.s32.totalorder %s21, 1
    %p193 = por %p191, %p192
    %p195 = scmp.ne.s32.totalorder %s180, %s194
    %p196 = scmp.eq.s32.totalorder %s21, 0
    %p197 = por %p195, %p196
    %s199 = sadd.s32 %s198, 1
    %p202 = scmp.eq.s32.totalorder %s15, 1
    %p203 = scmp.ne.s32.totalorder %s198, %s200
    %p204 = scmp.eq.s32.totalorder %s15, 0
    %p205 = por %p203, %p204
    %p206 = scmp.ne.s32.totalorder %s198, %s200
    %p207 = scmp.eq.s32.totalorder %s20, 1
    %p208 = por %p206, %p207
    %p209 = scmp.ne.s32.totalorder %s200, %s201
    %p210 = scmp.eq.s32.totalorder %s20, 0
    %p211 = por %p209, %p210
    %p212 = scmp.ne.s32.totalorder %s200, %s201
    %p213 = scmp.eq.s32.totalorder %s21, 1
    %p214 = por %p212, %p213
    %p216 = scmp.ne.s32.totalorder %s201, %s215
    %p217 = scmp.eq.s32.totalorder %s21, 0
    %p218 = por %p216, %p217
    %s220 = sadd.s32 %s219, 1
    %p223 = scmp.eq.s32.totalorder %s15, 1
    %p224 = scmp.ne.s32.totalorder %s219, %s221
    %p225 = scmp.eq.s32.totalorder %s15, 0
    %p226 = por %p224, %p225
    %p227 = scmp.ne.s32.totalorder %s219, %s221
    %p228 = scmp.eq.s32.totalorder %s20, 1
    %p229 = por %p227, %p228
    %p230 = scmp.ne.s32.totalorder %s221, %s222
    %p231 = scmp.eq.s32.totalorder %s20, 0
    %p232 = por %p230, %p231
    %p233 = scmp.ne.s32.totalorder %s221, %s222
    %p234 = scmp.eq.s32.totalorder %s21, 1
    %p235 = por %p233, %p234
    %p237 = scmp.ne.s32.totalorder %s222, %s236
    %p238 = scmp.eq.s32.totalorder %s21, 0
    %p239 = por %p237, %p238
    %s241 = sadd.s32 %s240, 1
    %p244 = scmp.eq.s32.totalorder %s15, 1
    %p245 = scmp.ne.s32.totalorder %s240, %s242
    %p246 = scmp.eq.s32.totalorder %s15, 0
    %p247 = por %p245, %p246
    %p248 = scmp.ne.s32.totalorder %s240, %s242
    %p249 = scmp.eq.s32.totalorder %s20, 1
    %p250 = por %p248, %p249
    %p251 = scmp.ne.s32.totalorder %s242, %s243
    %p252 = scmp.eq.s32.totalorder %s20, 0
    %p253 = por %p251, %p252
    %p254 = scmp.ne.s32.totalorder %s242, %s243
    %p255 = scmp.eq.s32.totalorder %s21, 1
    %p256 = por %p254, %p255
    %p258 = scmp.ne.s32.totalorder %s243, %s257
    %p259 = scmp.eq.s32.totalorder %s21, 0
    %p260 = por %p258, %p259
    %s261 = ssub.s32 %s22, %s34
    %s262 = ssub.s32 %s23, %s30
    %s263 = sor.u32 %s261, %s262
    %p264 = scmp.eq.s32.totalorder %s263, 0
    %s266 = sadd.s32 %s265, 1
    %s267 = scalar_select %p264, %s265, %s266
    %p270 = pneg %p264
    %p271 = scmp.eq.s32.totalorder %s15, 1
    %p272 = por %p270, %p271
    %p273 = scmp.ne.s32.totalorder %s265, %s268
    %p274 = scmp.eq.s32.totalorder %s15, 0
    %p275 = por %p273, %p274
    %p276 = scmp.ne.s32.totalorder %s265, %s268
    %p277 = scmp.eq.s32.totalorder %s20, 1
    %p278 = por %p276, %p277
    %p279 = scmp.ne.s32.totalorder %s268, %s269
    %p280 = scmp.eq.s32.totalorder %s20, 0
    %p281 = por %p279, %p280
    %p282 = scmp.ne.s32.totalorder %s268, %s269
    %p283 = scmp.eq.s32.totalorder %s21, 1
    %p284 = por %p282, %p283
    %p286 = scmp.ne.s32.totalorder %s269, %s285
    %p287 = scmp.eq.s32.totalorder %s21, 0
    %p288 = por %p286, %p287
    %p289 = scmp.le.s32.totalorder 1, %s15
    %p290 = scmp.lt.s32.totalorder %s15, 3
    %p291 = pnand %p289, %p290
    %p292 = pneg %p291
    // Predicated region
    $region9: #{tpu_custom_call.1} parent=5 // pred_check
      _
    $region10: #{tpu_custom_call.1} parent=5 // pred_check_branch
      %294 = sbr.rel (%p291) target = $region12
    $region11: #{tpu_custom_call.1} parent=5 // pred_region
      %s295 = ssub.s32 %s15, 1
      // Predicated region
      $region13: #{tpu_custom_call.1} parent=11 // pred_check
        %p296 = pneg %p148
      $region14: #{tpu_custom_call.1} parent=11 // pred_check_branch
        %298 = sbr.rel (%p296) target = $region16
      $region15: #{tpu_custom_call.1} parent=11 // pred_region
        _
      $region16: #{tpu_custom_call.1} parent=11 // pred_fallthru
        _
      // Predicated region
      $region17: #{tpu_custom_call.1} parent=11 // pred_check
        %p299 = pneg %p169
      $region18: #{tpu_custom_call.1} parent=11 // pred_check_branch
        %301 = sbr.rel (%p299) target = $region20
      $region19: #{tpu_custom_call.1} parent=11 // pred_region
        _
      $region20: #{tpu_custom_call.1} parent=11 // pred_fallthru
        _
      // Predicated region
      $region21: #{tpu_custom_call.1} parent=11 // pred_check
        %p302 = pneg %p190
      $region22: #{tpu_custom_call.1} parent=11 // pred_check_branch
        %304 = sbr.rel (%p302) target = $region24
      $region23: #{tpu_custom_call.1} parent=11 // pred_region
        _
      $region24: #{tpu_custom_call.1} parent=11 // pred_fallthru
        _
      // Predicated region
      $region25: #{tpu_custom_call.1} parent=11 // pred_check
        %p305 = pneg %p211
      $region26: #{tpu_custom_call.1} parent=11 // pred_check_branch
        %307 = sbr.rel (%p305) target = $region28
      $region27: #{tpu_custom_call.1} parent=11 // pred_region
        _
      $region28: #{tpu_custom_call.1} parent=11 // pred_fallthru
        _
      // Predicated region
      $region29: #{tpu_custom_call.1} parent=11 // pred_check
        %p308 = pneg %p232
      $region30: #{tpu_custom_call.1} parent=11 // pred_check_branch
        %310 = sbr.rel (%p308) target = $region32
      $region31: #{tpu_custom_call.1} parent=11 // pred_region
        _
      $region32: #{tpu_custom_call.1} parent=11 // pred_fallthru
        _
      // Predicated region
      $region33: #{tpu_custom_call.1} parent=11 // pred_check
        %p311 = pneg %p253
      $region34: #{tpu_custom_call.1} parent=11 // pred_check_branch
        %313 = sbr.rel (%p311) target = $region36
      $region35: #{tpu_custom_call.1} parent=11 // pred_region
        _
      $region36: #{tpu_custom_call.1} parent=11 // pred_fallthru
        _
    $region12: #{tpu_custom_call.1} parent=5 // pred_fallthru
      _
    %p314 = scmp.lt.s32.totalorder %s15, 2
    // Predicated region
    $region37: #{tpu_custom_call.1} parent=5 // pred_check
      %p315 = pneg %p314
    $region38: #{tpu_custom_call.1} parent=5 // pred_check_branch
      %317 = sbr.rel (%p315) target = $region40
    $region39: #{tpu_custom_call.1} parent=5 // pred_region
      // Predicated region
      $region41: #{tpu_custom_call.1} parent=39 // pred_check
        %p318 = pneg %p49
      $region42: #{tpu_custom_call.1} parent=39 // pred_check_branch
        %320 = sbr.rel (%p318) target = $region44
      $region43: #{tpu_custom_call.1} parent=39 // pred_region
        %s321 = smul.u32 8, %s23
        %p322 = scmp.lt.s32.totalorder %s22, 1
        %s323 = scalar_select %p322, %s22, 1
        %p324 = scmp.lt.s32.totalorder %s321, 7
        %s325 = scalar_select %p324, %s321, 7
        %s326 = smul.addr %s323, 8
        %s327 = sadd.s32 %s325, %s326
        %s328 = smul.addr %s327, 8
        %s329 = scalar_lea.vmem %s0, %s328
        %s330 = smul.u32 8, %s23
      $region44: #{tpu_custom_call.1} parent=39 // pred_fallthru
        _
      // Predicated region
      $region45: #{tpu_custom_call.1} parent=39 // pred_check
        %p331 = pneg %p85
      $region46: #{tpu_custom_call.1} parent=39 // pred_check_branch
        %333 = sbr.rel (%p331) target = $region48
      $region47: #{tpu_custom_call.1} parent=39 // pred_region
        %s334 = smul.u32 %s23, 8
        %s335 = ssub.s32 %s334, 1
        %p336 = scmp.gt.s32.totalorder %s335, 0
        %s337 = scalar_select %p336, %s335, 0
        %p338 = scmp.lt.s32.totalorder %s22, 1
        %s339 = scalar_select %p338, %s22, 1
        %p340 = scmp.lt.s32.totalorder %s337, 7
        %s341 = scalar_select %p340, %s337, 7
        %s342 = smul.addr %s339, 8
        %s343 = sadd.s32 %s341, %s342
        %s344 = smul.addr %s343, 8
        %s345 = scalar_lea.vmem %s1, %s344
        %s346 = smul.u32 %s23, 8
        %s347 = ssub.s32 %s346, 1
        %p348 = scmp.gt.s32.totalorder %s347, 0
        %s349 = scalar_select %p348, %s347, 0
      $region48: #{tpu_custom_call.1} parent=39 // pred_fallthru
        _
      // Predicated region
      $region49: #{tpu_custom_call.1} parent=39 // pred_check
        %p350 = pneg %p121
      $region50: #{tpu_custom_call.1} parent=39 // pred_check_branch
        %352 = sbr.rel (%p350) target = $region52
      $region51: #{tpu_custom_call.1} parent=39 // pred_region
        %s353 = sadd.s32 %s23, 1
        %s354 = smul.u32 %s353, 8
        %p355 = scmp.lt.s32.totalorder %s354, 7
        %s356 = scalar_select %p355, %s354, 7
        %p357 = scmp.lt.s32.totalorder %s22, 1
        %s358 = scalar_select %p357, %s22, 1
        %p359 = scmp.lt.s32.totalorder %s356, 7
        %s360 = scalar_select %p359, %s356, 7
        %s361 = smul.addr %s358, 8
        %s362 = sadd.s32 %s360, %s361
        %s363 = smul.addr %s362, 8
        %s364 = scalar_lea.vmem %s2, %s363
        %s365 = sadd.s32 %s23, 1
        %s366 = smul.u32 %s365, 8
        %p367 = scmp.lt.s32.totalorder %s366, 7
        %s368 = scalar_select %p367, %s366, 7
      $region52: #{tpu_custom_call.1} parent=39 // pred_fallthru
        _
    $region40: #{tpu_custom_call.1} parent=5 // pred_fallthru
      _
    %p369 = scmp.le.s32.totalorder 1, %s15
    %p370 = scmp.lt.s32.totalorder %s15, 3
    %p371 = pnand %p369, %p370
    %p372 = pneg %p371
    // Predicated region
    $region53: #{tpu_custom_call.1} parent=5 // pred_check
      _
    $region54: #{tpu_custom_call.1} parent=5 // pred_check_branch
      %374 = sbr.rel (%p371) target = $region56
    $region55: #{tpu_custom_call.1} parent=5 // pred_region
      %s375 = ssub.s32 %s15, 1
      %s376 = smul.u32 8, %s25
      %p377 = scmp.lt.s32.totalorder %s24, 1
      %s378 = scalar_select %p377, %s24, 1
      %p379 = scmp.lt.s32.totalorder %s376, 7
      %s380 = scalar_select %p379, %s376, 7
      %s381 = smul.addr %s378, 8
      %s382 = sadd.s32 %s380, %s381
      %s383 = smul.addr %s382, 8
      %s384 = scalar_lea.vmem %s0, %s383
      %p385 = pneg %p55
      %p386 = pneg %p52
      %s387 = smul.u32 %s25, 8
      %s388 = ssub.s32 %s387, 1
      %p389 = scmp.gt.s32.totalorder %s388, 0
      %s390 = scalar_select %p389, %s388, 0
      %p391 = scmp.lt.s32.totalorder %s24, 1
      %s392 = scalar_select %p391, %s24, 1
      %p393 = scmp.lt.s32.totalorder %s390, 7
      %s394 = scalar_select %p393, %s390, 7
      %s395 = smul.addr %s392, 8
      %s396 = sadd.s32 %s394, %s395
      %s397 = smul.addr %s396, 8
      %s398 = scalar_lea.vmem %s1, %s397
      %p399 = pneg %p91
      %p400 = pneg %p88
      %s401 = sadd.s32 %s25, 1
      %s402 = smul.u32 %s401, 8
      %p403 = scmp.lt.s32.totalorder %s402, 7
      %s404 = scalar_select %p403, %s402, 7
      %p405 = scmp.lt.s32.totalorder %s24, 1
      %s406 = scalar_select %p405, %s24, 1
      %p407 = scmp.lt.s32.totalorder %s404, 7
      %s408 = scalar_select %p407, %s404, 7
      %s409 = smul.addr %s406, 8
      %s410 = sadd.s32 %s408, %s409
      %s411 = smul.addr %s410, 8
      %s412 = scalar_lea.vmem %s2, %s411
      %p413 = pneg %p127
      %p414 = pneg %p124
      %p415 = pneg %p148
      %p416 = pneg %p145
      %p417 = pneg %p169
      %p418 = pneg %p166
      %p419 = pneg %p190
      %p420 = pneg %p187
      %p421 = pneg %p211
      %p422 = pneg %p208
      %p423 = pneg %p232
      %p424 = pneg %p229
      %p425 = pneg %p253
      %p426 = pneg %p250
      %p427 = pneg %p281
      %p428 = pneg %p278
      %s429 = smul.u32 8, %s25
      %p430 = scmp.lt.s32.totalorder %s24, 1
      %s431 = scalar_select %p430, %s24, 1
      %p432 = scmp.lt.s32.totalorder %s429, 7
      %s433 = scalar_select %p432, %s429, 7
      %s434 = smul.addr %s431, 8
      %s435 = sadd.s32 %s433, %s434
      %s436 = smul.addr %s435, 8
      %s437 = scalar_lea.vmem %s9, %s436
      %s438 = smul.u32 8, %s25
      %p439 = scmp.lt.s32.totalorder %s24, 1
      %s440 = scalar_select %p439, %s24, 1
      %p441 = scmp.lt.s32.totalorder %s438, 7
      %s442 = scalar_select %p441, %s438, 7
      %s443 = smul.addr %s440, 8
      %s444 = sadd.s32 %s442, %s443
      %s445 = smul.addr %s444, 8
      %s446 = scalar_lea.vmem %s0, %s445
      %s447 = smul.u32 8, %s25
      %s448 = smul.u32 %s25, 8
      %s449 = ssub.s32 %s448, 1
      %p450 = scmp.gt.s32.totalorder %s449, 0
      %s451 = scalar_select %p450, %s449, 0
      %p452 = scmp.lt.s32.totalorder %s24, 1
      %s453 = scalar_select %p452, %s24, 1
      %p454 = scmp.lt.s32.totalorder %s451, 7
      %s455 = scalar_select %p454, %s451, 7
      %s456 = smul.addr %s453, 8
      %s457 = sadd.s32 %s455, %s456
      %s458 = smul.addr %s457, 8
      %s459 = scalar_lea.vmem %s1, %s458
      %s460 = smul.u32 %s25, 8
      %s461 = ssub.s32 %s460, 1
      %p462 = scmp.gt.s32.totalorder %s461, 0
      %s463 = scalar_select %p462, %s461, 0
      %s464 = sadd.s32 %s25, 1
      %s465 = smul.u32 %s464, 8
      %p466 = scmp.lt.s32.totalorder %s465, 7
      %s467 = scalar_select %p466, %s465, 7
      %p468 = scmp.lt.s32.totalorder %s24, 1
      %s469 = scalar_select %p468, %s24, 1
      %p470 = scmp.lt.s32.totalorder %s467, 7
      %s471 = scalar_select %p470, %s467, 7
      %s472 = smul.addr %s469, 8
      %s473 = sadd.s32 %s471, %s472
      %s474 = smul.addr %s473, 8
      %s475 = scalar_lea.vmem %s2, %s474
      %s476 = sadd.s32 %s25, 1
      %s477 = smul.u32 %s476, 8
      %p478 = scmp.lt.s32.totalorder %s477, 7
      %s479 = scalar_select %p478, %s477, 7
      %s480 = smul.u32 8, %s25
      %p481 = scmp.lt.s32.totalorder %s24, 1
      %s482 = scalar_select %p481, %s24, 1
      %p483 = scmp.lt.s32.totalorder %s480, 7
      %s484 = scalar_select %p483, %s480, 7
      %s485 = smul.addr %s482, 8
      %s486 = sadd.s32 %s484, %s485
      %s487 = smul.addr %s486, 8
      %s488 = scalar_lea.vmem %s9, %s487
      %s489 = smul.u32 8, %s25
      %v491 = vld [vmem:[%s459] sm:$0xff]
      %v492 = vld [vmem:[%s446] sm:$0xff]
      %v493 = vld [vmem:[%s446 + $0x8] sm:$0xff]
      %v494 = vld [vmem:[%s446 + $0x10] sm:$0xff]
      %v495 = vld [vmem:[%s446 + $0x18] sm:$0xff]
      %v496 = vld [vmem:[%s446 + $0x20] sm:$0xff]
      %v497 = vld [vmem:[%s446 + $0x28] sm:$0xff]
      %v498 = vld [vmem:[%s446 + $0x30] sm:$0xff]
      %v499 = vld [vmem:[%s446 + $0x38] sm:$0xff]
      %v500 = vld [vmem:[%s475] sm:$0xff]
      %v501 = vpack.c.bf16 %v492, %v491
      %v502 = vpack.c.bf16 %v494, %v493
      %v503 = vpack.c.bf16 %v496, %v495
      %v504 = vpack.c.bf16 %v498, %v497
      %v505 = vpack.c.bf16 %v500, %v499
      %v506 = vld [vmem:[%s3] sm:$0xf]
      %v507 = vld [vmem:[%s3 + $0x4] sm:$0xf]
      %v508 = vld [vmem:[%s3 + $0x8] sm:$0xf]
      %v509 = vld [vmem:[%s3 + $0xc] sm:$0xf]
      %v510 = vld [vmem:[%s4] sm:$0x1]
      %v512 = vlaneseq
      %v513 = vshrl.u32 %v512, 7
      %v514 = vsub.s32 0, %v513
      %v515 = vrot.slane %v510, %v514
      %v521 = vunpack.c.l.b16 %v506
      %v522 = vunpack.c.l.b16 %v507
      %v523 = vunpack.c.l.b16 %v508
      %v524 = vunpack.c.l.b16 %v509
      %v525 = vpack.c.b16 %v522, %v521
      %v526 = vpack.c.b16 %v524, %v523
      %vm529 = vcmask 261120
      %v531 = vsel %vm529, %v501, 0
      %v534 = vsel %vm529, %v502, 0
      %v537 = vsel %vm529, %v503, 0
      %v540 = vsel %vm529, %v504, 0
      %v543 = vsel %vm529, %v505, 0
      %545 = vmatprep.subr.bf16.mxu0 0
      %546 = vmatpush1.bf16.msra.mxu0 %v525
      %547 = vmatprep.subr.bf16.mxu0 0
      %548 = vmatpush1.bf16.msra.mxu0 %v526
      %549 = vmatprep.subr.bf16.mxu0 0
      %550 = vmatpush1.bf16.msra.mxu0 0
      %551 = vmatprep.subr.bf16.mxu0 0
      %552 = vmatpush1.bf16.msra.mxu0 0
      %553 = vmatprep.subr.bf16.mxu0 0
      %554 = vmatpush1.bf16.msra.mxu0 0
      %555 = vmatprep.subr.bf16.mxu0 0
      %556 = vmatpush1.bf16.msra.mxu0 0
      %557 = vmatprep.subr.bf16.mxu0 0
      %558 = vmatpush1.bf16.msra.mxu0 0
      %559 = vmatprep.subr.bf16.mxu0 0
      %560 = vmatpush1.bf16.msra.mxu0 0
      %561 = vmatprep.subr.bf16.mxu0 0
      %562 = vmatpush1.bf16.msra.mxu0 0
      %563 = vmatprep.subr.bf16.mxu0 0
      %564 = vmatpush1.bf16.msra.mxu0 0
      %565 = vmatprep.subr.bf16.mxu0 0
      %566 = vmatpush1.bf16.msra.mxu0 0
      %567 = vmatprep.subr.bf16.mxu0 0
      %568 = vmatpush1.bf16.msra.mxu0 0
      %569 = vmatprep.subr.bf16.mxu0 0
      %570 = vmatpush1.bf16.msra.mxu0 0
      %571 = vmatprep.subr.bf16.mxu0 0
      %572 = vmatpush1.bf16.msra.mxu0 0
      %573 = vmatprep.subr.bf16.mxu0 0
      %574 = vmatpush1.bf16.msra.mxu0 0
      %575 = vmatprep.subr.bf16.mxu0 0
      %576 = vmatpush1.bf16.msra.mxu0 0
      %577 = vmatprep.mubr.bf16.mxu0 0
      %578 = vmatmul.mubr.bf16.gmra.mrb[0].mxu0 %v531
      %v579 = vpop.f32.mrb[0].mxu0
      %v580 = vadd.f32 %v515, %v579
      %v581 = vpop.f32.mrb[0].mxu0
      %v582 = vpop.f32.mrb[0].mxu0
      %v583 = vadd.f32 %v515, %v582
      %v584 = vpop.f32.mrb[0].mxu0
      %585 = vmatprep.mubr.bf16.mxu0 0
      %586 = vmatmul.mubr.bf16.gmra.mrb[0].mxu0 %v534
      %v587 = vpop.f32.mrb[0].mxu0
      %v588 = vadd.f32 %v515, %v587
      %v589 = vpop.f32.mrb[0].mxu0
      %v590 = vpop.f32.mrb[0].mxu0
      %v591 = vadd.f32 %v515, %v590
      %v592 = vpop.f32.mrb[0].mxu0
      %593 = vmatprep.mubr.bf16.mxu0 0
      %594 = vmatmul.mubr.bf16.gmra.mrb[0].mxu0 %v537
      %v595 = vpop.f32.mrb[0].mxu0
      %v596 = vadd.f32 %v515, %v595
      %v597 = vpop.f32.mrb[0].mxu0
      %v598 = vpop.f32.mrb[0].mxu0
      %v599 = vadd.f32 %v515, %v598
      %v600 = vpop.f32.mrb[0].mxu0
      %601 = vmatprep.mubr.bf16.mxu0 0
      %602 = vmatmul.mubr.bf16.gmra.mrb[0].mxu0 %v540
      %v603 = vpop.f32.mrb[0].mxu0
      %v604 = vadd.f32 %v515, %v603
      %v605 = vpop.f32.mrb[0].mxu0
      %v606 = vpop.f32.mrb[0].mxu0
      %v607 = vadd.f32 %v515, %v606
      %v608 = vpop.f32.mrb[0].mxu0
      %609 = vmatprep.mubr.bf16.mxu0 0
      %610 = vmatmul.mubr.bf16.gmra.mrb[0].mxu0 %v543
      %v611 = vpop.f32.mrb[0].mxu0
      %v612 = vadd.f32 %v515, %v611
      %v613 = vpop.f32.mrb[0].mxu0
      %v614 = vpop.f32.mrb[0].mxu0
      %v615 = vadd.f32 %v515, %v614
      %v616 = vpop.f32.mrb[0].mxu0
      %617 = vdwg.mxu0
      %618 = vst [vmem:[#allocation2 + $0x8] sm:$0xff] %v580
      %619 = vst [vmem:[#allocation2 + $0x10] sm:$0xff] %v583
      %620 = vst [vmem:[#allocation2 + $0x18] sm:$0xff] %v588
      %621 = vst [vmem:[#allocation2 + $0x20] sm:$0xff] %v591
      %622 = vst [vmem:[#allocation2 + $0x28] sm:$0xff] %v596
      %623 = vst [vmem:[#allocation2 + $0x30] sm:$0xff] %v599
      %624 = vst [vmem:[#allocation2 + $0x38] sm:$0xff] %v604
      %625 = vst [vmem:[#allocation2 + $0x40] sm:$0xff] %v607
      %626 = vst [vmem:[#allocation2 + $0x48] sm:$0xff] %v612
      %627 = vst [vmem:[#allocation2 + $0x50] sm:$0xff] %v615
      %p628 = scmp.eq.s32.totalorder %s25, 0
      // Predicated region
      $region57: #{tpu_custom_call.1} parent=55 // pred_check
        %p629 = pneg %p628
      $region58: #{tpu_custom_call.1} parent=55 // pred_check_branch
        %631 = sbr.rel (%p629) target = $region60
      $region59: #{tpu_custom_call.1} parent=55 // pred_region
        %632 = vst [vmem:[#allocation2 + $0x8] sm:$0xff] 0.0
        %633 = vst [vmem:[#allocation2 + $0x50] sm:$0xff] 0.0
      $region60: #{tpu_custom_call.1} parent=55 // pred_fallthru
        _
      %v634 = vld [vmem:[%s5] sm:$0xff]
      %v635 = vld [vmem:[%s5 + $0x8] sm:$0x1]
      %v636 = vlaneseq
      %v637 = vshrl.u32 %v636, 7
      %v638 = vadd.s32 %v637, 8
      %v639 = vadd.s32 %v637, 16
      %v640 = vadd.s32 %v637, 24
      %v641 = vadd.s32 %v637, 32
      %v642 = vadd.s32 %v637, 40
      %v643 = vadd.s32 %v637, 48
      %v644 = vadd.s32 %v637, 56
      %vm645 = vcmp.lt.s32.totalorder %v637, 0
      %v646 = vsub.s32 0, %v637
      %v647 = vsel %vm645, %v646, %v637
      %v648 = vshrl.u32 %v647, 3
      %v649 = vand.u32 %v647, 7
      %v650 = vsub.s32 0, %v649
      %v651 = vsel %vm645, %v650, %v649
      %vm652 = vcmp.lt.s32.totalorder %v638, 0
      %v653 = vsub.s32 0, %v638
      %v654 = vsel %vm652, %v653, %v638
      %v655 = vshrl.u32 %v654, 3
      %v656 = vand.u32 %v654, 7
      %v657 = vsub.s32 0, %v656
      %v658 = vsel %vm652, %v657, %v656
      %vm659 = vcmp.lt.s32.totalorder %v639, 0
      %v660 = vsub.s32 0, %v639
      %v661 = vsel %vm659, %v660, %v639
      %v662 = vshrl.u32 %v661, 3
      %v663 = vand.u32 %v661, 7
      %v664 = vsub.s32 0, %v663
      %v665 = vsel %vm659, %v664, %v663
      %vm666 = vcmp.lt.s32.totalorder %v640, 0
      %v667 = vsub.s32 0, %v640
      %v668 = vsel %vm666, %v667, %v640
      %v669 = vshrl.u32 %v668, 3
      %v670 = vand.u32 %v668, 7
      %v671 = vsub.s32 0, %v670
      %v672 = vsel %vm666, %v671, %v670
      %vm673 = vcmp.lt.s32.totalorder %v641, 0
      %v674 = vsub.s32 0, %v641
      %v675 = vsel %vm673, %v674, %v641
      %v676 = vshrl.u32 %v675, 3
      %v677 = vand.u32 %v675, 7
      %v678 = vsub.s32 0, %v677
      %v679 = vsel %vm673, %v678, %v677
      %vm680 = vcmp.lt.s32.totalorder %v642, 0
      %v681 = vsub.s32 0, %v642
      %v682 = vsel %vm680, %v681, %v642
      %v683 = vshrl.u32 %v682, 3
      %v684 = vand.u32 %v682, 7
      %v685 = vsub.s32 0, %v684
      %v686 = vsel %vm680, %v685, %v684
      %vm687 = vcmp.lt.s32.totalorder %v643, 0
      %v688 = vsub.s32 0, %v643
      %v689 = vsel %vm687, %v688, %v643
      %v690 = vshrl.u32 %v689, 3
      %v691 = vand.u32 %v689, 7
      %v692 = vsub.s32 0, %v691
      %v693 = vsel %vm687, %v692, %v691
      %vm694 = vcmp.lt.s32.totalorder %v644, 0
      %v695 = vsub.s32 0, %v644
      %v696 = vsel %vm694, %v695, %v644
      %v697 = vshrl.u32 %v696, 3
      %v698 = vand.u32 %v696, 7
      %v699 = vsub.s32 0, %v698
      %v700 = vsel %vm694, %v699, %v698
      %vm701 = vcmp.ne.s32.totalorder %v651, 0
      %vm702 = vcmp.ne.s32.totalorder %v658, 0
      %vm703 = vcmp.ne.s32.totalorder %v665, 0
      %vm704 = vcmp.ne.s32.totalorder %v672, 0
      %vm705 = vcmp.ne.s32.totalorder %v679, 0
      %vm706 = vcmp.ne.s32.totalorder %v686, 0
      %vm707 = vcmp.ne.s32.totalorder %v693, 0
      %vm708 = vcmp.ne.s32.totalorder %v700, 0
      %vm709 = vcmp.lt.s32.totalorder %v651, 0
      %vm710 = vcmp.lt.s32.totalorder %v658, 0
      %vm711 = vcmp.lt.s32.totalorder %v665, 0
      %vm712 = vcmp.lt.s32.totalorder %v672, 0
      %vm713 = vcmp.lt.s32.totalorder %v679, 0
      %vm714 = vcmp.lt.s32.totalorder %v686, 0
      %vm715 = vcmp.lt.s32.totalorder %v693, 0
      %vm716 = vcmp.lt.s32.totalorder %v700, 0
      %vm717 = vmand %vm709, %vm701
      %vm718 = vmand %vm710, %vm702
      %vm719 = vmand %vm711, %vm703
      %vm720 = vmand %vm712, %vm704
      %vm721 = vmand %vm713, %vm705
      %vm722 = vmand %vm714, %vm706
      %vm723 = vmand %vm715, %vm707
      %vm724 = vmand %vm716, %vm708
      %v725 = vadd.s32 %v651, 8
      %v726 = vadd.s32 %v658, 8
      %v727 = vadd.s32 %v665, 8
      %v728 = vadd.s32 %v672, 8
      %v729 = vadd.s32 %v679, 8
      %v730 = vadd.s32 %v686, 8
      %v731 = vadd.s32 %v693, 8
      %v732 = vadd.s32 %v700, 8
      %v733 = vsel %vm717, %v725, %v651
      %v734 = vsel %vm718, %v726, %v658
      %v735 = vsel %vm719, %v727, %v665
      %v736 = vsel %vm720, %v728, %v672
      %v737 = vsel %vm721, %v729, %v679
      %v738 = vsel %vm722, %v730, %v686
      %v739 = vsel %vm723, %v731, %v693
      %v740 = vsel %vm724, %v732, %v700
      %vm741 = vcmp.ge.s32.totalorder %v733, 1
      %vm742 = vcmp.ge.s32.totalorder %v734, 1
      %vm743 = vcmp.ge.s32.totalorder %v735, 1
      %vm744 = vcmp.ge.s32.totalorder %v736, 1
      %vm745 = vcmp.ge.s32.totalorder %v737, 1
      %vm746 = vcmp.ge.s32.totalorder %v738, 1
      %vm747 = vcmp.ge.s32.totalorder %v739, 1
      %vm748 = vcmp.ge.s32.totalorder %v740, 1
      %vm749 = vcmp.lt.s32.totalorder %v733, 7
      %vm750 = vcmp.lt.s32.totalorder %v734, 7
      %vm751 = vcmp.lt.s32.totalorder %v735, 7
      %vm752 = vcmp.lt.s32.totalorder %v736, 7
      %vm753 = vcmp.lt.s32.totalorder %v737, 7
      %vm754 = vcmp.lt.s32.totalorder %v738, 7
      %vm755 = vcmp.lt.s32.totalorder %v739, 7
      %vm756 = vcmp.lt.s32.totalorder %v740, 7
      %v757 = vld [vmem:[#allocation2 + $0x10] sm:$0xff]
      %v758 = vld [vmem:[#allocation2 + $0x18] sm:$0xff]
      %v759 = vld [vmem:[#allocation2 + $0x20] sm:$0xff]
      %v760 = vld [vmem:[#allocation2 + $0x28] sm:$0xff]
      %v761 = vld [vmem:[#allocation2 + $0x30] sm:$0xff]
      %v762 = vld [vmem:[#allocation2 + $0x38] sm:$0xff]
      %v763 = vld [vmem:[#allocation2 + $0x40] sm:$0xff]
      %v764 = vld [vmem:[#allocation2 + $0x48] sm:$0xff]
      %v765 = vlaneseq
      %v766 = vshrl.u32 %v765, 7
      %v767 = vsub.s32 4, %v766
      %v768 = vrot.slane %v634, %v767
      %v769 = vmul.f32 %v757, %v768
      %v770 = vmul.f32 %v758, %v768
      %v771 = vmul.f32 %v759, %v768
      %v772 = vmul.f32 %v760, %v768
      %v773 = vmul.f32 %v761, %v768
      %v774 = vmul.f32 %v762, %v768
      %v775 = vmul.f32 %v763, %v768
      %v776 = vmul.f32 %v764, %v768
      %v777 = vld [vmem:[#allocation2 + $0x8] sm:$0xff]
      %v778 = vlaneseq
      %v779 = vshrl.u32 %v778, 7
      %v780 = vsub.s32 1, %v779
      %v781 = vrot.slane %v634, %v780
      %v782 = vmul.f32 %v777, %v781
      %v783 = vmul.f32 %v757, %v781
      %v784 = vmul.f32 %v758, %v781
      %v785 = vmul.f32 %v759, %v781
      %v786 = vmul.f32 %v760, %v781
      %v787 = vmul.f32 %v761, %v781
      %v788 = vmul.f32 %v762, %v781
      %v789 = vmul.f32 %v763, %v781
      %v790 = vadd.f32 %v769, %v782
      %v791 = vadd.f32 %v770, %v783
      %v792 = vadd.f32 %v771, %v784
      %v793 = vadd.f32 %v772, %v785
      %v794 = vadd.f32 %v773, %v786
      %v795 = vadd.f32 %v774, %v787
      %v796 = vadd.f32 %v775, %v788
      %v797 = vadd.f32 %v776, %v789
      %v798 = vld [vmem:[#allocation2 + $0x50] sm:$0xff]
      %v799 = vlaneseq
      %v800 = vshrl.u32 %v799, 7
      %v801 = vsub.s32 7, %v800
      %v802 = vrot.slane %v634, %v801
      %v803 = vmul.f32 %v758, %v802
      %v804 = vmul.f32 %v759, %v802
      %v805 = vmul.f32 %v760, %v802
      %v806 = vmul.f32 %v761, %v802
      %v807 = vmul.f32 %v762, %v802
      %v808 = vmul.f32 %v763, %v802
      %v809 = vmul.f32 %v764, %v802
      %v810 = vmul.f32 %v798, %v802
      %v811 = vadd.f32 %v790, %v803
      %v812 = vadd.f32 %v791, %v804
      %v813 = vadd.f32 %v792, %v805
      %v814 = vadd.f32 %v793, %v806
      %v815 = vadd.f32 %v794, %v807
      %v816 = vadd.f32 %v795, %v808
      %v817 = vadd.f32 %v796, %v809
      %v818 = vadd.f32 %v797, %v810
      %v819 = vld [vmem:[#allocation2 + $0x7] sm:$0xff]
      %v820 = vld [vmem:[#allocation2 + $0xf] sm:$0xff]
      %v821 = vld [vmem:[#allocation2 + $0x17] sm:$0xff]
      %v822 = vld [vmem:[#allocation2 + $0x1f] sm:$0xff]
      %v823 = vld [vmem:[#allocation2 + $0x27] sm:$0xff]
      %v824 = vld [vmem:[#allocation2 + $0x2f] sm:$0xff]
      %v825 = vld [vmem:[#allocation2 + $0x37] sm:$0xff]
      %v826 = vld [vmem:[#allocation2 + $0x3f] sm:$0xff]
      %v827 = vlaneseq
      %v828 = vshrl.u32 %v827, 7
      %v829 = vsub.s32 0, %v828
      %v830 = vrot.slane %v634, %v829
      %v831 = vmul.f32 %v819, %v830
      %v832 = vmul.f32 %v820, %v830
      %v833 = vmul.f32 %v821, %v830
      %v834 = vmul.f32 %v822, %v830
      %v835 = vmul.f32 %v823, %v830
      %v836 = vmul.f32 %v824, %v830
      %v837 = vmul.f32 %v825, %v830
      %v838 = vmul.f32 %v826, %v830
      %v839 = vld [vmem:[#allocation2 + $0x47] sm:$0xff]
      %v840 = vlaneseq
      %v841 = vshrl.u32 %v840, 7
      %v842 = vsub.s32 3, %v841
      %v843 = vrot.slane %v634, %v842
      %v844 = vmul.f32 %v820, %v843
      %v845 = vmul.f32 %v821, %v843
      %v846 = vmul.f32 %v822, %v843
      %v847 = vmul.f32 %v823, %v843
      %v848 = vmul.f32 %v824, %v843
      %v849 = vmul.f32 %v825, %v843
      %v850 = vmul.f32 %v826, %v843
      %v851 = vmul.f32 %v839, %v843
      %v852 = vadd.f32 %v831, %v844
      %v853 = vadd.f32 %v832, %v845
      %v854 = vadd.f32 %v833, %v846
      %v855 = vadd.f32 %v834, %v847
      %v856 = vadd.f32 %v835, %v848
      %v857 = vadd.f32 %v836, %v849
      %v858 = vadd.f32 %v837, %v850
      %v859 = vadd.f32 %v838, %v851
      %v860 = vld [vmem:[#allocation2 + $0x4f] sm:$0xff]
      %v861 = vlaneseq
      %v862 = vshrl.u32 %v861, 7
      %v863 = vsub.s32 6, %v862
      %v864 = vrot.slane %v634, %v863
      %v865 = vmul.f32 %v821, %v864
      %v866 = vmul.f32 %v822, %v864
      %v867 = vmul.f32 %v823, %v864
      %v868 = vmul.f32 %v824, %v864
      %v869 = vmul.f32 %v825, %v864
      %v870 = vmul.f32 %v826, %v864
      %v871 = vmul.f32 %v839, %v864
      %v872 = vmul.f32 %v860, %v864
      %v873 = vadd.f32 %v852, %v865
      %v874 = vadd.f32 %v853, %v866
      %v875 = vadd.f32 %v854, %v867
      %v876 = vadd.f32 %v855, %v868
      %v877 = vadd.f32 %v856, %v869
      %v878 = vadd.f32 %v857, %v870
      %v879 = vadd.f32 %v858, %v871
      %v880 = vadd.f32 %v859, %v872
      %v881 = vld [vmem:[#allocation2 + $0x9] sm:$0xff]
      %v882 = vld [vmem:[#allocation2 + $0x11] sm:$0xff]
      %v883 = vld [vmem:[#allocation2 + $0x19] sm:$0xff]
      %v884 = vld [vmem:[#allocation2 + $0x21] sm:$0xff]
      %v885 = vld [vmem:[#allocation2 + $0x29] sm:$0xff]
      %v886 = vld [vmem:[#allocation2 + $0x31] sm:$0xff]
      %v887 = vld [vmem:[#allocation2 + $0x39] sm:$0xff]
      %v888 = vld [vmem:[#allocation2 + $0x41] sm:$0xff]
      %v889 = vlaneseq
      %v890 = vshrl.u32 %v889, 7
      %v891 = vsub.s32 2, %v890
      %v892 = vrot.slane %v634, %v891
      %v893 = vmul.f32 %v881, %v892
      %v894 = vmul.f32 %v882, %v892
      %v895 = vmul.f32 %v883, %v892
      %v896 = vmul.f32 %v884, %v892
      %v897 = vmul.f32 %v885, %v892
      %v898 = vmul.f32 %v886, %v892
      %v899 = vmul.f32 %v887, %v892
      %v900 = vmul.f32 %v888, %v892
      %v901 = vld [vmem:[#allocation2 + $0x49] sm:$0xff]
      %v902 = vlaneseq
      %v903 = vshrl.u32 %v902, 7
      %v904 = vsub.s32 5, %v903
      %v905 = vrot.slane %v634, %v904
      %v906 = vmul.f32 %v882, %v905
      %v907 = vmul.f32 %v883, %v905
      %v908 = vmul.f32 %v884, %v905
      %v909 = vmul.f32 %v885, %v905
      %v910 = vmul.f32 %v886, %v905
      %v911 = vmul.f32 %v887, %v905
      %v912 = vmul.f32 %v888, %v905
      %v913 = vmul.f32 %v901, %v905
      %v914 = vadd.f32 %v893, %v906
      %v915 = vadd.f32 %v894, %v907
      %v916 = vadd.f32 %v895, %v908
      %v917 = vadd.f32 %v896, %v909
      %v918 = vadd.f32 %v897, %v910
      %v919 = vadd.f32 %v898, %v911
      %v920 = vadd.f32 %v899, %v912
      %v921 = vadd.f32 %v900, %v913
      %v922 = vld [vmem:[#allocation2 + $0x51] sm:$0xff]
      %v923 = vlaneseq
      %v924 = vshrl.u32 %v923, 7
      %v925 = vsub.s32 0, %v924
      %v926 = vrot.slane %v635, %v925
      %v927 = vmul.f32 %v883, %v926
      %v928 = vmul.f32 %v884, %v926
      %v929 = vmul.f32 %v885, %v926
      %v930 = vmul.f32 %v886, %v926
      %v931 = vmul.f32 %v887, %v926
      %v932 = vmul.f32 %v888, %v926
      %v933 = vmul.f32 %v901, %v926
      %v934 = vmul.f32 %v922, %v926
      %v935 = vadd.f32 %v914, %v927
      %v936 = vadd.f32 %v915, %v928
      %v937 = vadd.f32 %v916, %v929
      %v938 = vadd.f32 %v917, %v930
      %v939 = vadd.f32 %v918, %v931
      %v940 = vadd.f32 %v919, %v932
      %v941 = vadd.f32 %v920, %v933
      %v942 = vadd.f32 %v921, %v934
      %v943 = vsel %vm741, 1, 0
      %v944 = vsel %vm742, 1, 0
      %v945 = vsel %vm743, 1, 0
      %v946 = vsel %vm744, 1, 0
      %v947 = vsel %vm745, 1, 0
      %v948 = vsel %vm746, 1, 0
      %v949 = vsel %vm747, 1, 0
      %v950 = vsel %vm748, 1, 0
      %vm951 = vcmp.eq.s32.totalorder %v943, 1
      %vm952 = vcmp.eq.s32.totalorder %v944, 1
      %vm953 = vcmp.eq.s32.totalorder %v945, 1
      %vm954 = vcmp.eq.s32.totalorder %v946, 1
      %vm955 = vcmp.eq.s32.totalorder %v947, 1
      %vm956 = vcmp.eq.s32.totalorder %v948, 1
      %vm957 = vcmp.eq.s32.totalorder %v949, 1
      %vm958 = vcmp.eq.s32.totalorder %v950, 1
      %v959 = vsel %vm951, %v873, 0.0
      %v960 = vsel %vm952, %v874, 0.0
      %v961 = vsel %vm953, %v875, 0.0
      %v962 = vsel %vm954, %v876, 0.0
      %v963 = vsel %vm955, %v877, 0.0
      %v964 = vsel %vm956, %v878, 0.0
      %v965 = vsel %vm957, %v879, 0.0
      %v966 = vsel %vm958, %v880, 0.0
      %v967 = vadd.f32 %v811, %v959
      %v968 = vadd.f32 %v812, %v960
      %v969 = vadd.f32 %v813, %v961
      %v970 = vadd.f32 %v814, %v962
      %v971 = vadd.f32 %v815, %v963
      %v972 = vadd.f32 %v816, %v964
      %v973 = vadd.f32 %v817, %v965
      %v974 = vadd.f32 %v818, %v966
      %v975 = vsel %vm749, 1, 0
      %v976 = vsel %vm750, 1, 0
      %v977 = vsel %vm751, 1, 0
      %v978 = vsel %vm752, 1, 0
      %v979 = vsel %vm753, 1, 0
      %v980 = vsel %vm754, 1, 0
      %v981 = vsel %vm755, 1, 0
      %v982 = vsel %vm756, 1, 0
      %vm983 = vcmp.eq.s32.totalorder %v975, 1
      %vm984 = vcmp.eq.s32.totalorder %v976, 1
      %vm985 = vcmp.eq.s32.totalorder %v977, 1
      %vm986 = vcmp.eq.s32.totalorder %v978, 1
      %vm987 = vcmp.eq.s32.totalorder %v979, 1
      %vm988 = vcmp.eq.s32.totalorder %v980, 1
      %vm989 = vcmp.eq.s32.totalorder %v981, 1
      %vm990 = vcmp.eq.s32.totalorder %v982, 1
      %v991 = vsel %vm983, %v935, 0.0
      %v992 = vsel %vm984, %v936, 0.0
      %v993 = vsel %vm985, %v937, 0.0
      %v994 = vsel %vm986, %v938, 0.0
      %v995 = vsel %vm987, %v939, 0.0
      %v996 = vsel %vm988, %v940, 0.0
      %v997 = vsel %vm989, %v941, 0.0
      %v998 = vsel %vm990, %v942, 0.0
      %v999 = vadd.f32 %v967, %v991
      %v1000 = vadd.f32 %v968, %v992
      %v1001 = vadd.f32 %v969, %v993
      %v1002 = vadd.f32 %v970, %v994
      %v1003 = vadd.f32 %v971, %v995
      %v1004 = vadd.f32 %v972, %v996
      %v1005 = vadd.f32 %v973, %v997
      %v1006 = vadd.f32 %v974, %v998
      %v1007 = vld [vmem:[%s6] sm:$0x1]
      %v1009 = vlaneseq
      %v1010 = vshrl.u32 %v1009, 7
      %v1011 = vsub.s32 0, %v1010
      %v1012 = vrot.slane %v1007, %v1011
      %v1014 = vadd.f32 %v999, %v1012
      %v1015 = vadd.f32 %v1000, %v1012
      %v1016 = vadd.f32 %v1001, %v1012
      %v1017 = vadd.f32 %v1002, %v1012
      %v1018 = vadd.f32 %v1003, %v1012
      %v1019 = vadd.f32 %v1004, %v1012
      %v1020 = vadd.f32 %v1005, %v1012
      %v1021 = vadd.f32 %v1006, %v1012
      %v1022 = vmul.f32 %v1014, 0.5
      %v1023 = vmul.f32 %v1015, 0.5
      %v1024 = vmul.f32 %v1016, 0.5
      %v1025 = vmul.f32 %v1017, 0.5
      %v1026 = vmul.f32 %v1018, 0.5
      %v1027 = vmul.f32 %v1019, 0.5
      %v1028 = vmul.f32 %v1020, 0.5
      %v1029 = vmul.f32 %v1021, 0.5
      %v1030 = vmul.f32 %v1014, 0.70710677
      %v1031 = vmul.f32 %v1015, 0.70710677
      %v1032 = vmul.f32 %v1016, 0.70710677
      %v1033 = vmul.f32 %v1017, 0.70710677
      %v1034 = vmul.f32 %v1018, 0.70710677
      %v1035 = vmul.f32 %v1019, 0.70710677
      %v1036 = vmul.f32 %v1020, 0.70710677
      %v1037 = vmul.f32 %v1021, 0.70710677
      %v1038 = verf.f32.pop %v1030
      %v1039 = verf.f32.pop %v1031
      %v1040 = verf.f32.pop %v1032
      %v1041 = verf.f32.pop %v1033
      %v1042 = verf.f32.pop %v1034
      %v1043 = verf.f32.pop %v1035
      %v1044 = verf.f32.pop %v1036
      %v1045 = verf.f32.pop %v1037
      %v1046 = vadd.f32 %v1038, 1.0
      %v1047 = vadd.f32 %v1039, 1.0
      %v1048 = vadd.f32 %v1040, 1.0
      %v1049 = vadd.f32 %v1041, 1.0
      %v1050 = vadd.f32 %v1042, 1.0
      %v1051 = vadd.f32 %v1043, 1.0
      %v1052 = vadd.f32 %v1044, 1.0
      %v1053 = vadd.f32 %v1045, 1.0
      %v1054 = vmul.f32 %v1022, %v1046
      %v1055 = vmul.f32 %v1023, %v1047
      %v1056 = vmul.f32 %v1024, %v1048
      %v1057 = vmul.f32 %v1025, %v1049
      %v1058 = vmul.f32 %v1026, %v1050
      %v1059 = vmul.f32 %v1027, %v1051
      %v1060 = vmul.f32 %v1028, %v1052
      %v1061 = vmul.f32 %v1029, %v1053
      %v1062 = vpack.c.bf16 %v1055, %v1054
      %v1063 = vpack.c.bf16 %v1057, %v1056
      %v1064 = vpack.c.bf16 %v1059, %v1058
      %v1065 = vpack.c.bf16 %v1061, %v1060
      %v1066 = vld [vmem:[%s7] sm:$0xf]
      %v1067 = vld [vmem:[%s7 + $0x4] sm:$0xf]
      %v1068 = vld [vmem:[%s7 + $0x8] sm:$0xf]
      %v1069 = vld [vmem:[%s7 + $0xc] sm:$0xf]
      %v1070 = vld [vmem:[%s7 + $0x10] sm:$0xf]
      %v1071 = vld [vmem:[%s7 + $0x14] sm:$0xf]
      %v1072 = vld [vmem:[%s7 + $0x18] sm:$0xf]
      %v1073 = vld [vmem:[%s7 + $0x1c] sm:$0xf]
      %v1074 = vld [vmem:[%s7 + $0x20] sm:$0xf]
      %v1075 = vld [vmem:[%s7 + $0x24] sm:$0xf]
      %v1076 = vld [vmem:[%s7 + $0x28] sm:$0xf]
      %v1077 = vld [vmem:[%s7 + $0x2c] sm:$0xf]
      %v1078 = vld [vmem:[%s7 + $0x30] sm:$0xf]
      %v1079 = vld [vmem:[%s7 + $0x34] sm:$0xf]
      %v1080 = vld [vmem:[%s7 + $0x38] sm:$0xf]
      %v1081 = vld [vmem:[%s7 + $0x3c] sm:$0xf]
      %v1082 = vld [vmem:[%s8] sm:$0x1]
      %v1084 = vlaneseq
      %v1085 = vshrl.u32 %v1084, 7
      %v1086 = vsub.s32 0, %v1085
      %v1087 = vrot.slane %v1082, %v1086
      %v1105 = vunpack.c.l.b16 %v1066
      %v1106 = vunpack.c.l.b16 %v1067
      %v1107 = vunpack.c.l.b16 %v1068
      %v1108 = vunpack.c.l.b16 %v1069
      %v1109 = vunpack.c.l.b16 %v1070
      %v1110 = vunpack.c.l.b16 %v1071
      %v1111 = vunpack.c.l.b16 %v1072
      %v1112 = vunpack.c.l.b16 %v1073
      %v1113 = vunpack.c.l.b16 %v1074
      %v1114 = vunpack.c.l.b16 %v1075
      %v1115 = vunpack.c.l.b16 %v1076
      %v1116 = vunpack.c.l.b16 %v1077
      %v1117 = vunpack.c.l.b16 %v1078
      %v1118 = vunpack.c.l.b16 %v1079
      %v1119 = vunpack.c.l.b16 %v1080
      %v1120 = vunpack.c.l.b16 %v1081
      %v1121 = vpack.c.b16 %v1106, %v1105
      %v1122 = vpack.c.b16 %v1108, %v1107
      %v1123 = vpack.c.b16 %v1110, %v1109
      %v1124 = vpack.c.b16 %v1112, %v1111
      %v1125 = vpack.c.b16 %v1114, %v1113
      %v1126 = vpack.c.b16 %v1116, %v1115
      %v1127 = vpack.c.b16 %v1118, %v1117
      %v1128 = vpack.c.b16 %v1120, %v1119
      %1137 = vmatprep.subr.bf16.mxu0 0
      %1138 = vmatpush1.bf16.msra.mxu0 %v1121
      %1139 = vmatprep.subr.bf16.mxu0 0
      %1140 = vmatpush1.bf16.msra.mxu0 %v1122
      %1141 = vmatprep.subr.bf16.mxu0 0
      %1142 = vmatpush1.bf16.msra.mxu0 %v1123
      %1143 = vmatprep.subr.bf16.mxu0 0
      %1144 = vmatpush1.bf16.msra.mxu0 %v1124
      %1145 = vmatprep.subr.bf16.mxu0 0
      %1146 = vmatpush1.bf16.msra.mxu0 %v1125
      %1147 = vmatprep.subr.bf16.mxu0 0
      %1148 = vmatpush1.bf16.msra.mxu0 %v1126
      %1149 = vmatprep.subr.bf16.mxu0 0
      %1150 = vmatpush1.bf16.msra.mxu0 %v1127
      %1151 = vmatprep.subr.bf16.mxu0 0
      %1152 = vmatpush1.bf16.msra.mxu0 %v1128
      %1153 = vmatprep.subr.bf16.mxu0 0
      %1154 = vmatpush1.bf16.msra.mxu0 0
      %1155 = vmatprep.subr.bf16.mxu0 0
      %1156 = vmatpush1.bf16.msra.mxu0 0
      %1157 = vmatprep.subr.bf16.mxu0 0
      %1158 = vmatpush1.bf16.msra.mxu0 0
      %1159 = vmatprep.subr.bf16.mxu0 0
      %1160 = vmatpush1.bf16.msra.mxu0 0
      %1161 = vmatprep.subr.bf16.mxu0 0
      %1162 = vmatpush1.bf16.msra.mxu0 0
      %1163 = vmatprep.subr.bf16.mxu0 0
      %1164 = vmatpush1.bf16.msra.mxu0 0
      %1165 = vmatprep.subr.bf16.mxu0 0
      %1166 = vmatpush1.bf16.msra.mxu0 0
      %1167 = vmatprep.subr.bf16.mxu0 0
      %1168 = vmatpush1.bf16.msra.mxu0 0
      %1169 = vmatprep.mubr.bf16.mxu0 0
      %1170 = vmatmul.mubr.bf16.gmra.mrb[0].mxu0 %v1062
      %v1171 = vpop.f32.mrb[0].mxu0
      %v1172 = vadd.f32 %v1087, %v1171
      %v1173 = vpop.f32.mrb[0].mxu0
      %v1174 = vpop.f32.mrb[0].mxu0
      %v1175 = vadd.f32 %v1087, %v1174
      %v1176 = vpop.f32.mrb[0].mxu0
      %1177 = vmatprep.mubr.bf16.mxu0 0
      %1178 = vmatmul.mubr.bf16.gmra.mrb[0].mxu0 %v1063
      %v1179 = vpop.f32.mrb[0].mxu0
      %v1180 = vadd.f32 %v1087, %v1179
      %v1181 = vpop.f32.mrb[0].mxu0
      %v1182 = vpop.f32.mrb[0].mxu0
      %v1183 = vadd.f32 %v1087, %v1182
      %v1184 = vpop.f32.mrb[0].mxu0
      %1185 = vmatprep.mubr.bf16.mxu0 0
      %1186 = vmatmul.mubr.bf16.gmra.mrb[0].mxu0 %v1064
      %v1187 = vpop.f32.mrb[0].mxu0
      %v1188 = vadd.f32 %v1087, %v1187
      %v1189 = vpop.f32.mrb[0].mxu0
      %v1190 = vpop.f32.mrb[0].mxu0
      %v1191 = vadd.f32 %v1087, %v1190
      %v1192 = vpop.f32.mrb[0].mxu0
      %1193 = vmatprep.mubr.bf16.mxu0 0
      %1194 = vmatmul.mubr.bf16.gmra.mrb[0].mxu0 %v1065
      %v1195 = vpop.f32.mrb[0].mxu0
      %v1196 = vadd.f32 %v1087, %v1195
      %v1197 = vpop.f32.mrb[0].mxu0
      %v1198 = vpop.f32.mrb[0].mxu0
      %v1199 = vadd.f32 %v1087, %v1198
      %v1200 = vpop.f32.mrb[0].mxu0
      %1201 = vdwg.mxu0
      %1202 = vst.msk [vmem:[%s488] sm:$0xff] %vm529, %v1172
      %1203 = vst.msk [vmem:[%s488 + $0x8] sm:$0xff] %vm529, %v1175
      %1204 = vst.msk [vmem:[%s488 + $0x10] sm:$0xff] %vm529, %v1180
      %1205 = vst.msk [vmem:[%s488 + $0x18] sm:$0xff] %vm529, %v1183
      %1206 = vst.msk [vmem:[%s488 + $0x20] sm:$0xff] %vm529, %v1188
      %1207 = vst.msk [vmem:[%s488 + $0x28] sm:$0xff] %vm529, %v1191
      %1208 = vst.msk [vmem:[%s488 + $0x30] sm:$0xff] %vm529, %v1196
      %1209 = vst.msk [vmem:[%s488 + $0x38] sm:$0xff] %vm529, %v1199
      %s1210 = smul.u32 8, %s25
      %p1211 = scmp.lt.s32.totalorder %s24, 1
      %s1212 = scalar_select %p1211, %s24, 1
      %p1213 = scmp.lt.s32.totalorder %s1210, 7
      %s1214 = scalar_select %p1213, %s1210, 7
      %s1215 = smul.addr %s1212, 8
      %s1216 = sadd.s32 %s1214, %s1215
      %s1217 = smul.addr %s1216, 8
      %s1218 = scalar_lea.vmem %s9, %s1217
      // Predicated region
      $region61: #{tpu_custom_call.1} parent=55 // pred_check
        %p1219 = pneg %p278
      $region62: #{tpu_custom_call.1} parent=55 // pred_check_branch
        %1221 = sbr.rel (%p1219) target = $region64
      $region63: #{tpu_custom_call.1} parent=55 // pred_region
        %s1222 = smul.u32 8, %s25
      $region64: #{tpu_custom_call.1} parent=55 // pred_fallthru
        _
    $region56: #{tpu_custom_call.1} parent=5 // pred_fallthru
      _
    %p1223 = scmp.le.s32.totalorder 2, %s15
    // Predicated region
    $region65: #{tpu_custom_call.1} parent=5 // pred_check
      %p1224 = pneg %p1223
    $region66: #{tpu_custom_call.1} parent=5 // pred_check_branch
      %1226 = sbr.rel (%p1224) target = $region68
    $region67: #{tpu_custom_call.1} parent=5 // pred_region
      %s1227 = ssub.s32 %s15, 2
      // Predicated region
      $region69: #{tpu_custom_call.1} parent=67 // pred_check
        %p1228 = pneg %p284
      $region70: #{tpu_custom_call.1} parent=67 // pred_check_branch
        %1230 = sbr.rel (%p1228) target = $region72
      $region71: #{tpu_custom_call.1} parent=67 // pred_region
        %s1231 = smul.u32 8, %s27
        %p1232 = scmp.lt.s32.totalorder %s26, 1
        %s1233 = scalar_select %p1232, %s26, 1
        %p1234 = scmp.lt.s32.totalorder %s1231, 7
        %s1235 = scalar_select %p1234, %s1231, 7
        %s1236 = smul.addr %s1233, 8
        %s1237 = sadd.s32 %s1235, %s1236
        %s1238 = smul.addr %s1237, 8
        %s1239 = scalar_lea.vmem %s9, %s1238
      $region72: #{tpu_custom_call.1} parent=67 // pred_fallthru
        _
    $region68: #{tpu_custom_call.1} parent=5 // pred_fallthru
      _
  $region6: #{tpu_custom_call.1} parent=0 // loop_footer
    %s19 = sadd.s32 1, %s15
  $region7: #{tpu_custom_call.1} parent=0 // loop_footer_branch
    %14 = sbr.rel target = $region3
  $region8: #{tpu_custom_call.1} parent=0 // loop_exit
    _

// kernel: tpu_custom_call.1
$region0: #{tpu_custom_call.1}
  #allocation0 [shape = 'u32[]', space=smem, size = 0x4, offset = 0x4, fixed_abs, tag = 'smem constant byte address 0x4 - core index']
  #allocation1 [shape = 'u32[144,128]{1,0:T(1,128)}', space=vmem, size = 0x12000, scoped, tag = 'internal scratch']
  #allocation2 [shape = 'f32[96,128]{1,0:T(8,128)}', space=vmem, size = 0xc000, scoped, tag = 'scratch operand']
  %s0 = inlined_call_operand.vmem [shape: f32[2,64,32], index: 0, kind: input, shape index: {}]
  %s1 = inlined_call_operand.vmem [shape: f32[2,64,32], index: 1, kind: input, shape index: {}]
  %s2 = inlined_call_operand.vmem [shape: f32[2,64,32], index: 2, kind: input, shape index: {}]
  %s3 = inlined_call_operand.vmem [shape: bf16[32,128], index: 3, kind: input, shape index: {}]
  %s4 = inlined_call_operand.vmem [shape: f32[1,128], index: 4, kind: input, shape index: {}]
  %s5 = inlined_call_operand.vmem [shape: f32[9,128], index: 5, kind: input, shape index: {}]
  %s6 = inlined_call_operand.vmem [shape: f32[1,128], index: 6, kind: input, shape index: {}]
  %s7 = inlined_call_operand.vmem [shape: bf16[128,32], index: 7, kind: input, shape index: {}]
  %s8 = inlined_call_operand.vmem [shape: f32[1,32], index: 8, kind: input, shape index: {}]
  %s9 = inlined_call_operand.vmem [shape: f32[2,64,32], index: 9, kind: output, shape index: {}]
  %s10 = sld [smem:[#allocation0]]
  $region73: #{tpu_custom_call.1} parent=0
    _
  %s12 = ssub.s32 1, %s10
  %s13 = scalar_select 0, %s12, %s10
  loop: start=0, step=1, limit=4
  $region2: #{tpu_custom_call.1} parent=0 // loop_pre_header
    _
  $region3: #{tpu_custom_call.1} parent=0 // loop_header
    %s15 = sphi 0, %s19
    %p16 = scmp.ge.s32.totalorder %s15, 4
    %s22 = sphi 0, %s34
    %s23 = sphi 0, %s30
    %s24 = sphi 0, %s22
    %s25 = sphi 0, %s23
    %s26 = sphi 0, %s24
    %s27 = sphi 0, %s25
    %s39 = sphi 0, %s41
    %s42 = sphi 0, %s39
    %s43 = sphi 0, %s42
    %s59 = sphi 0, %s43
    %s75 = sphi 0, %s77
    %s78 = sphi 0, %s75
    %s79 = sphi 0, %s78
    %s95 = sphi 0, %s79
    %s111 = sphi 0, %s113
    %s114 = sphi 0, %s111
    %s115 = sphi 0, %s114
    %s131 = sphi 0, %s115
    %s135 = sphi 0, %s135
    %s137 = sphi 0, %s135
    %s138 = sphi 0, %s137
    %s152 = sphi 0, %s138
    %s156 = sphi 0, %s156
    %s158 = sphi 0, %s156
    %s159 = sphi 0, %s158
    %s173 = sphi 0, %s159
    %s177 = sphi 0, %s177
    %s179 = sphi 0, %s177
    %s180 = sphi 0, %s179
    %s194 = sphi 0, %s180
    %s198 = sphi 0, %s198
    %s200 = sphi 0, %s198
    %s201 = sphi 0, %s200
    %s215 = sphi 0, %s201
    %s219 = sphi 0, %s219
    %s221 = sphi 0, %s219
    %s222 = sphi 0, %s221
    %s236 = sphi 0, %s222
    %s240 = sphi 0, %s240
    %s242 = sphi 0, %s240
    %s243 = sphi 0, %s242
    %s257 = sphi 0, %s243
    %s265 = sphi 0, %s267
    %s268 = sphi 0, %s265
    %s269 = sphi 0, %s268
    %s285 = sphi 0, %s269
  $region4: #{tpu_custom_call.1} parent=0 // loop_header_branch
    %18 = sbr.rel (%p16) target = $region8
  $region5: #{tpu_custom_call.1} parent=0 // loop_body
    %s20 = ssub.s32 %s15, 1
    %s21 = ssub.s32 %s15, 2
    %s28 = sadd.s32 1, %s23
    %p29 = scmp.ge.s32.totalorder %s28, 1
    %s30 = scalar_select %p29, 0, %s28
    %s31 = sadd.s32 1, %s22
    %s32 = scalar_select %p29, %s31, %s22
    %p33 = scmp.ge.s32.totalorder %s32, 2
    %s34 = scalar_select %p33, 0, %s32
    %s35 = ssub.s32 %s22, %s34
    %s36 = ssub.s32 %s23, %s30
    %s37 = sor.u32 %s35, %s36
    %p38 = scmp.eq.s32.totalorder %s37, 0
    %s40 = sadd.s32 %s39, 1
    %s41 = scalar_select %p38, %s39, %s40
    %p44 = pneg %p38
    %p45 = scmp.eq.s32.totalorder %s15, 1
    %p46 = por %p44, %p45
    %p47 = scmp.ne.s32.totalorder %s39, %s42
    %p48 = scmp.eq.s32.totalorder %s15, 0
    %p49 = por %p47, %p48
    %p50 = scmp.ne.s32.totalorder %s39, %s42
    %p51 = scmp.eq.s32.totalorder %s20, 1
    %p52 = por %p50, %p51
    %p53 = scmp.ne.s32.totalorder %s42, %s43
    %p54 = scmp.eq.s32.totalorder %s20, 0
    %p55 = por %p53, %p54
    %p56 = scmp.ne.s32.totalorder %s42, %s43
    %p57 = scmp.eq.s32.totalorder %s21, 1
    %p58 = por %p56, %p57
    %p60 = scmp.ne.s32.totalorder %s43, %s59
    %p61 = scmp.eq.s32.totalorder %s21, 0
    %p62 = por %p60, %p61
    %s63 = smul.u32 %s23, 8
    %s64 = ssub.s32 %s63, 1
    %p65 = scmp.gt.s32.totalorder %s64, 0
    %s66 = scalar_select %p65, %s64, 0
    %s67 = smul.u32 %s30, 8
    %s68 = ssub.s32 %s67, 1
    %p69 = scmp.gt.s32.totalorder %s68, 0
    %s70 = scalar_select %p69, %s68, 0
    %s71 = ssub.s32 %s22, %s34
    %s72 = ssub.s32 %s66, %s70
    %s73 = sor.u32 %s71, %s72
    %p74 = scmp.eq.s32.totalorder %s73, 0
    %s76 = sadd.s32 %s75, 1
    %s77 = scalar_select %p74, %s75, %s76
    %p80 = pneg %p74
    %p81 = scmp.eq.s32.totalorder %s15, 1
    %p82 = por %p80, %p81
    %p83 = scmp.ne.s32.totalorder %s75, %s78
    %p84 = scmp.eq.s32.totalorder %s15, 0
    %p85 = por %p83, %p84
    %p86 = scmp.ne.s32.totalorder %s75, %s78
    %p87 = scmp.eq.s32.totalorder %s20, 1
    %p88 = por %p86, %p87
    %p89 = scmp.ne.s32.totalorder %s78, %s79
    %p90 = scmp.eq.s32.totalorder %s20, 0
    %p91 = por %p89, %p90
    %p92 = scmp.ne.s32.totalorder %s78, %s79
    %p93 = scmp.eq.s32.totalorder %s21, 1
    %p94 = por %p92, %p93
    %p96 = scmp.ne.s32.totalorder %s79, %s95
    %p97 = scmp.eq.s32.totalorder %s21, 0
    %p98 = por %p96, %p97
    %s99 = sadd.s32 %s23, 1
    %s100 = smul.u32 %s99, 8
    %p101 = scmp.lt.s32.totalorder %s100, 7
    %s102 = scalar_select %p101, %s100, 7
    %s103 = sadd.s32 %s30, 1
    %s104 = smul.u32 %s103, 8
    %p105 = scmp.lt.s32.totalorder %s104, 7
    %s106 = scalar_select %p105, %s104, 7
    %s107 = ssub.s32 %s22, %s34
    %s108 = ssub.s32 %s102, %s106
    %s109 = sor.u32 %s107, %s108
    %p110 = scmp.eq.s32.totalorder %s109, 0
    %s112 = sadd.s32 %s111, 1
    %s113 = scalar_select %p110, %s111, %s112
    %p116 = pneg %p110
    %p117 = scmp.eq.s32.totalorder %s15, 1
    %p118 = por %p116, %p117
    %p119 = scmp.ne.s32.totalorder %s111, %s114
    %p120 = scmp.eq.s32.totalorder %s15, 0
    %p121 = por %p119, %p120
    %p122 = scmp.ne.s32.totalorder %s111, %s114
    %p123 = scmp.eq.s32.totalorder %s20, 1
    %p124 = por %p122, %p123
    %p125 = scmp.ne.s32.totalorder %s114, %s115
    %p126 = scmp.eq.s32.totalorder %s20, 0
    %p127 = por %p125, %p126
    %p128 = scmp.ne.s32.totalorder %s114, %s115
    %p129 = scmp.eq.s32.totalorder %s21, 1
    %p130 = por %p128, %p129
    %p132 = scmp.ne.s32.totalorder %s115, %s131
    %p133 = scmp.eq.s32.totalorder %s21, 0
    %p134 = por %p132, %p133
    %s136 = sadd.s32 %s135, 1
    %p139 = scmp.eq.s32.totalorder %s15, 1
    %p140 = scmp.ne.s32.totalorder %s135, %s137
    %p141 = scmp.eq.s32.totalorder %s15, 0
    %p142 = por %p140, %p141
    %p143 = scmp.ne.s32.totalorder %s135, %s137
    %p144 = scmp.eq.s32.totalorder %s20, 1
    %p145 = por %p143, %p144
    %p146 = scmp.ne.s32.totalorder %s137, %s138
    %p147 = scmp.eq.s32.totalorder %s20, 0
    %p148 = por %p146, %p147
    %p149 = scmp.ne.s32.totalorder %s137, %s138
    %p150 = scmp.eq.s32.totalorder %s21, 1
    %p151 = por %p149, %p150
    %p153 = scmp.ne.s32.totalorder %s138, %s152
    %p154 = scmp.eq.s32.totalorder %s21, 0
    %p155 = por %p153, %p154
    %s157 = sadd.s32 %s156, 1
    %p160 = scmp.eq.s32.totalorder %s15, 1
    %p161 = scmp.ne.s32.totalorder %s156, %s158
    %p162 = scmp.eq.s32.totalorder %s15, 0
    %p163 = por %p161, %p162
    %p164 = scmp.ne.s32.totalorder %s156, %s158
    %p165 = scmp.eq.s32.totalorder %s20, 1
    %p166 = por %p164, %p165
    %p167 = scmp.ne.s32.totalorder %s158, %s159
    %p168 = scmp.eq.s32.totalorder %s20, 0
    %p169 = por %p167, %p168
    %p170 = scmp.ne.s32.totalorder %s158, %s159
    %p171 = scmp.eq.s32.totalorder %s21, 1
    %p172 = por %p170, %p171
    %p174 = scmp.ne.s32.totalorder %s159, %s173
    %p175 = scmp.eq.s32.totalorder %s21, 0
    %p176 = por %p174, %p175
    %s178 = sadd.s32 %s177, 1
    %p181 = scmp.eq.s32.totalorder %s15, 1
    %p182 = scmp.ne.s32.totalorder %s177, %s179
    %p183 = scmp.eq.s32.totalorder %s15, 0
    %p184 = por %p182, %p183
    %p185 = scmp.ne.s32.totalorder %s177, %s179
    %p186 = scmp.eq.s32.totalorder %s20, 1
    %p187 = por %p185, %p186
    %p188 = scmp.ne.s32.totalorder %s179, %s180
    %p189 = scmp.eq.s32.totalorder %s20, 0
    %p190 = por %p188, %p189
    %p191 = scmp.ne.s32.totalorder %s179, %s180
    %p192 = scmp.eq.s32.totalorder %s21, 1
    %p193 = por %p191, %p192
    %p195 = scmp.ne.s32.totalorder %s180, %s194
    %p196 = scmp.eq.s32.totalorder %s21, 0
    %p197 = por %p195, %p196
    %s199 = sadd.s32 %s198, 1
    %p202 = scmp.eq.s32.totalorder %s15, 1
    %p203 = scmp.ne.s32.totalorder %s198, %s200
    %p204 = scmp.eq.s32.totalorder %s15, 0
    %p205 = por %p203, %p204
    %p206 = scmp.ne.s32.totalorder %s198, %s200
    %p207 = scmp.eq.s32.totalorder %s20, 1
    %p208 = por %p206, %p207
    %p209 = scmp.ne.s32.totalorder %s200, %s201
    %p210 = scmp.eq.s32.totalorder %s20, 0
    %p211 = por %p209, %p210
    %p212 = scmp.ne.s32.totalorder %s200, %s201
    %p213 = scmp.eq.s32.totalorder %s21, 1
    %p214 = por %p212, %p213
    %p216 = scmp.ne.s32.totalorder %s201, %s215
    %p217 = scmp.eq.s32.totalorder %s21, 0
    %p218 = por %p216, %p217
    %s220 = sadd.s32 %s219, 1
    %p223 = scmp.eq.s32.totalorder %s15, 1
    %p224 = scmp.ne.s32.totalorder %s219, %s221
    %p225 = scmp.eq.s32.totalorder %s15, 0
    %p226 = por %p224, %p225
    %p227 = scmp.ne.s32.totalorder %s219, %s221
    %p228 = scmp.eq.s32.totalorder %s20, 1
    %p229 = por %p227, %p228
    %p230 = scmp.ne.s32.totalorder %s221, %s222
    %p231 = scmp.eq.s32.totalorder %s20, 0
    %p232 = por %p230, %p231
    %p233 = scmp.ne.s32.totalorder %s221, %s222
    %p234 = scmp.eq.s32.totalorder %s21, 1
    %p235 = por %p233, %p234
    %p237 = scmp.ne.s32.totalorder %s222, %s236
    %p238 = scmp.eq.s32.totalorder %s21, 0
    %p239 = por %p237, %p238
    %s241 = sadd.s32 %s240, 1
    %p244 = scmp.eq.s32.totalorder %s15, 1
    %p245 = scmp.ne.s32.totalorder %s240, %s242
    %p246 = scmp.eq.s32.totalorder %s15, 0
    %p247 = por %p245, %p246
    %p248 = scmp.ne.s32.totalorder %s240, %s242
    %p249 = scmp.eq.s32.totalorder %s20, 1
    %p250 = por %p248, %p249
    %p251 = scmp.ne.s32.totalorder %s242, %s243
    %p252 = scmp.eq.s32.totalorder %s20, 0
    %p253 = por %p251, %p252
    %p254 = scmp.ne.s32.totalorder %s242, %s243
    %p255 = scmp.eq.s32.totalorder %s21, 1
    %p256 = por %p254, %p255
    %p258 = scmp.ne.s32.totalorder %s243, %s257
    %p259 = scmp.eq.s32.totalorder %s21, 0
    %p260 = por %p258, %p259
    %s261 = ssub.s32 %s22, %s34
    %s262 = ssub.s32 %s23, %s30
    %s263 = sor.u32 %s261, %s262
    %p264 = scmp.eq.s32.totalorder %s263, 0
    %s266 = sadd.s32 %s265, 1
    %s267 = scalar_select %p264, %s265, %s266
    %p270 = pneg %p264
    %p271 = scmp.eq.s32.totalorder %s15, 1
    %p272 = por %p270, %p271
    %p273 = scmp.ne.s32.totalorder %s265, %s268
    %p274 = scmp.eq.s32.totalorder %s15, 0
    %p275 = por %p273, %p274
    %p276 = scmp.ne.s32.totalorder %s265, %s268
    %p277 = scmp.eq.s32.totalorder %s20, 1
    %p278 = por %p276, %p277
    %p279 = scmp.ne.s32.totalorder %s268, %s269
    %p280 = scmp.eq.s32.totalorder %s20, 0
    %p281 = por %p279, %p280
    %p282 = scmp.ne.s32.totalorder %s268, %s269
    %p283 = scmp.eq.s32.totalorder %s21, 1
    %p284 = por %p282, %p283
    %p286 = scmp.ne.s32.totalorder %s269, %s285
    %p287 = scmp.eq.s32.totalorder %s21, 0
    %p288 = por %p286, %p287
    %p289 = scmp.le.s32.totalorder 1, %s15
    %p290 = scmp.lt.s32.totalorder %s15, 3
    %p291 = pnand %p289, %p290
    %p292 = pneg %p291
    // Predicated region
    $region9: #{tpu_custom_call.1} parent=5 // pred_check
      _
    $region10: #{tpu_custom_call.1} parent=5 // pred_check_branch
      %294 = sbr.rel (%p291) target = $region12
    $region11: #{tpu_custom_call.1} parent=5 // pred_region
      %s295 = ssub.s32 %s15, 1
      // Predicated region
      $region13: #{tpu_custom_call.1} parent=11 // pred_check
        %p296 = pneg %p148
      $region14: #{tpu_custom_call.1} parent=11 // pred_check_branch
        %298 = sbr.rel (%p296) target = $region16
      $region15: #{tpu_custom_call.1} parent=11 // pred_region
        _
      $region16: #{tpu_custom_call.1} parent=11 // pred_fallthru
        _
      // Predicated region
      $region17: #{tpu_custom_call.1} parent=11 // pred_check
        %p299 = pneg %p169
      $region18: #{tpu_custom_call.1} parent=11 // pred_check_branch
        %301 = sbr.rel (%p299) target = $region20
      $region19: #{tpu_custom_call.1} parent=11 // pred_region
        _
      $region20: #{tpu_custom_call.1} parent=11 // pred_fallthru
        _
      // Predicated region
      $region21: #{tpu_custom_call.1} parent=11 // pred_check
        %p302 = pneg %p190
      $region22: #{tpu_custom_call.1} parent=11 // pred_check_branch
        %304 = sbr.rel (%p302) target = $region24
      $region23: #{tpu_custom_call.1} parent=11 // pred_region
        _
      $region24: #{tpu_custom_call.1} parent=11 // pred_fallthru
        _
      // Predicated region
      $region25: #{tpu_custom_call.1} parent=11 // pred_check
        %p305 = pneg %p211
      $region26: #{tpu_custom_call.1} parent=11 // pred_check_branch
        %307 = sbr.rel (%p305) target = $region28
      $region27: #{tpu_custom_call.1} parent=11 // pred_region
        _
      $region28: #{tpu_custom_call.1} parent=11 // pred_fallthru
        _
      // Predicated region
      $region29: #{tpu_custom_call.1} parent=11 // pred_check
        %p308 = pneg %p232
      $region30: #{tpu_custom_call.1} parent=11 // pred_check_branch
        %310 = sbr.rel (%p308) target = $region32
      $region31: #{tpu_custom_call.1} parent=11 // pred_region
        _
      $region32: #{tpu_custom_call.1} parent=11 // pred_fallthru
        _
      // Predicated region
      $region33: #{tpu_custom_call.1} parent=11 // pred_check
        %p311 = pneg %p253
      $region34: #{tpu_custom_call.1} parent=11 // pred_check_branch
        %313 = sbr.rel (%p311) target = $region36
      $region35: #{tpu_custom_call.1} parent=11 // pred_region
        _
      $region36: #{tpu_custom_call.1} parent=11 // pred_fallthru
        _
    $region12: #{tpu_custom_call.1} parent=5 // pred_fallthru
      _
    %p314 = scmp.lt.s32.totalorder %s15, 2
    // Predicated region
    $region37: #{tpu_custom_call.1} parent=5 // pred_check
      %p315 = pneg %p314
    $region38: #{tpu_custom_call.1} parent=5 // pred_check_branch
      %317 = sbr.rel (%p315) target = $region40
    $region39: #{tpu_custom_call.1} parent=5 // pred_region
      // Predicated region
      $region41: #{tpu_custom_call.1} parent=39 // pred_check
        %p318 = pneg %p49
      $region42: #{tpu_custom_call.1} parent=39 // pred_check_branch
        %320 = sbr.rel (%p318) target = $region44
      $region43: #{tpu_custom_call.1} parent=39 // pred_region
        %s321 = smul.u32 8, %s23
        %p322 = scmp.lt.s32.totalorder %s22, 1
        %s323 = scalar_select %p322, %s22, 1
        %p324 = scmp.lt.s32.totalorder %s321, 7
        %s325 = scalar_select %p324, %s321, 7
        %s326 = smul.addr %s323, 8
        %s327 = sadd.s32 %s325, %s326
        %s328 = smul.addr %s327, 8
        %s329 = scalar_lea.vmem %s0, %s328
        %s330 = smul.u32 8, %s23
      $region44: #{tpu_custom_call.1} parent=39 // pred_fallthru
        _
      // Predicated region
      $region45: #{tpu_custom_call.1} parent=39 // pred_check
        %p331 = pneg %p85
      $region46: #{tpu_custom_call.1} parent=39 // pred_check_branch
        %333 = sbr.rel (%p331) target = $region48
      $region47: #{tpu_custom_call.1} parent=39 // pred_region
        %s334 = smul.u32 %s23, 8
        %s335 = ssub.s32 %s334, 1
        %p336 = scmp.gt.s32.totalorder %s335, 0
        %s337 = scalar_select %p336, %s335, 0
        %p338 = scmp.lt.s32.totalorder %s22, 1
        %s339 = scalar_select %p338, %s22, 1
        %p340 = scmp.lt.s32.totalorder %s337, 7
        %s341 = scalar_select %p340, %s337, 7
        %s342 = smul.addr %s339, 8
        %s343 = sadd.s32 %s341, %s342
        %s344 = smul.addr %s343, 8
        %s345 = scalar_lea.vmem %s1, %s344
        %s346 = smul.u32 %s23, 8
        %s347 = ssub.s32 %s346, 1
        %p348 = scmp.gt.s32.totalorder %s347, 0
        %s349 = scalar_select %p348, %s347, 0
      $region48: #{tpu_custom_call.1} parent=39 // pred_fallthru
        _
      // Predicated region
      $region49: #{tpu_custom_call.1} parent=39 // pred_check
        %p350 = pneg %p121
      $region50: #{tpu_custom_call.1} parent=39 // pred_check_branch
        %352 = sbr.rel (%p350) target = $region52
      $region51: #{tpu_custom_call.1} parent=39 // pred_region
        %s353 = sadd.s32 %s23, 1
        %s354 = smul.u32 %s353, 8
        %p355 = scmp.lt.s32.totalorder %s354, 7
        %s356 = scalar_select %p355, %s354, 7
        %p357 = scmp.lt.s32.totalorder %s22, 1
        %s358 = scalar_select %p357, %s22, 1
        %p359 = scmp.lt.s32.totalorder %s356, 7
        %s360 = scalar_select %p359, %s356, 7
        %s361 = smul.addr %s358, 8
        %s362 = sadd.s32 %s360, %s361
        %s363 = smul.addr %s362, 8
        %s364 = scalar_lea.vmem %s2, %s363
        %s365 = sadd.s32 %s23, 1
        %s366 = smul.u32 %s365, 8
        %p367 = scmp.lt.s32.totalorder %s366, 7
        %s368 = scalar_select %p367, %s366, 7
      $region52: #{tpu_custom_call.1} parent=39 // pred_fallthru
        _
    $region40: #{tpu_custom_call.1} parent=5 // pred_fallthru
      _
    %p369 = scmp.le.s32.totalorder 1, %s15
    %p370 = scmp.lt.s32.totalorder %s15, 3
    %p371 = pnand %p369, %p370
    %p372 = pneg %p371
    // Predicated region
    $region53: #{tpu_custom_call.1} parent=5 // pred_check
      _
    $region54: #{tpu_custom_call.1} parent=5 // pred_check_branch
      %374 = sbr.rel (%p371) target = $region56
    $region55: #{tpu_custom_call.1} parent=5 // pred_region
      %s375 = ssub.s32 %s15, 1
      %s376 = smul.u32 8, %s25
      %p377 = scmp.lt.s32.totalorder %s24, 1
      %s378 = scalar_select %p377, %s24, 1
      %p379 = scmp.lt.s32.totalorder %s376, 7
      %s380 = scalar_select %p379, %s376, 7
      %s381 = smul.addr %s378, 8
      %s382 = sadd.s32 %s380, %s381
      %s383 = smul.addr %s382, 8
      %s384 = scalar_lea.vmem %s0, %s383
      %p385 = pneg %p55
      %p386 = pneg %p52
      %s387 = smul.u32 %s25, 8
      %s388 = ssub.s32 %s387, 1
      %p389 = scmp.gt.s32.totalorder %s388, 0
      %s390 = scalar_select %p389, %s388, 0
      %p391 = scmp.lt.s32.totalorder %s24, 1
      %s392 = scalar_select %p391, %s24, 1
      %p393 = scmp.lt.s32.totalorder %s390, 7
      %s394 = scalar_select %p393, %s390, 7
      %s395 = smul.addr %s392, 8
      %s396 = sadd.s32 %s394, %s395
      %s397 = smul.addr %s396, 8
      %s398 = scalar_lea.vmem %s1, %s397
      %p399 = pneg %p91
      %p400 = pneg %p88
      %s401 = sadd.s32 %s25, 1
      %s402 = smul.u32 %s401, 8
      %p403 = scmp.lt.s32.totalorder %s402, 7
      %s404 = scalar_select %p403, %s402, 7
      %p405 = scmp.lt.s32.totalorder %s24, 1
      %s406 = scalar_select %p405, %s24, 1
      %p407 = scmp.lt.s32.totalorder %s404, 7
      %s408 = scalar_select %p407, %s404, 7
      %s409 = smul.addr %s406, 8
      %s410 = sadd.s32 %s408, %s409
      %s411 = smul.addr %s410, 8
      %s412 = scalar_lea.vmem %s2, %s411
      %p413 = pneg %p127
      %p414 = pneg %p124
      %p415 = pneg %p148
      %p416 = pneg %p145
      %p417 = pneg %p169
      %p418 = pneg %p166
      %p419 = pneg %p190
      %p420 = pneg %p187
      %p421 = pneg %p211
      %p422 = pneg %p208
      %p423 = pneg %p232
      %p424 = pneg %p229
      %p425 = pneg %p253
      %p426 = pneg %p250
      %p427 = pneg %p281
      %p428 = pneg %p278
      %s429 = smul.u32 8, %s25
      %p430 = scmp.lt.s32.totalorder %s24, 1
      %s431 = scalar_select %p430, %s24, 1
      %p432 = scmp.lt.s32.totalorder %s429, 7
      %s433 = scalar_select %p432, %s429, 7
      %s434 = smul.addr %s431, 8
      %s435 = sadd.s32 %s433, %s434
      %s436 = smul.addr %s435, 8
      %s437 = scalar_lea.vmem %s9, %s436
      %s438 = smul.u32 8, %s25
      %p439 = scmp.lt.s32.totalorder %s24, 1
      %s440 = scalar_select %p439, %s24, 1
      %p441 = scmp.lt.s32.totalorder %s438, 7
      %s442 = scalar_select %p441, %s438, 7
      %s443 = smul.addr %s440, 8
      %s444 = sadd.s32 %s442, %s443
      %s445 = smul.addr %s444, 8
      %s446 = scalar_lea.vmem %s0, %s445
      %s447 = smul.u32 8, %s25
      %s448 = smul.u32 %s25, 8
      %s449 = ssub.s32 %s448, 1
      %p450 = scmp.gt.s32.totalorder %s449, 0
      %s451 = scalar_select %p450, %s449, 0
      %p452 = scmp.lt.s32.totalorder %s24, 1
      %s453 = scalar_select %p452, %s24, 1
      %p454 = scmp.lt.s32.totalorder %s451, 7
      %s455 = scalar_select %p454, %s451, 7
      %s456 = smul.addr %s453, 8
      %s457 = sadd.s32 %s455, %s456
      %s458 = smul.addr %s457, 8
      %s459 = scalar_lea.vmem %s1, %s458
      %s460 = smul.u32 %s25, 8
      %s461 = ssub.s32 %s460, 1
      %p462 = scmp.gt.s32.totalorder %s461, 0
      %s463 = scalar_select %p462, %s461, 0
      %s464 = sadd.s32 %s25, 1
      %s465 = smul.u32 %s464, 8
      %p466 = scmp.lt.s32.totalorder %s465, 7
      %s467 = scalar_select %p466, %s465, 7
      %p468 = scmp.lt.s32.totalorder %s24, 1
      %s469 = scalar_select %p468, %s24, 1
      %p470 = scmp.lt.s32.totalorder %s467, 7
      %s471 = scalar_select %p470, %s467, 7
      %s472 = smul.addr %s469, 8
      %s473 = sadd.s32 %s471, %s472
      %s474 = smul.addr %s473, 8
      %s475 = scalar_lea.vmem %s2, %s474
      %s476 = sadd.s32 %s25, 1
      %s477 = smul.u32 %s476, 8
      %p478 = scmp.lt.s32.totalorder %s477, 7
      %s479 = scalar_select %p478, %s477, 7
      %s480 = smul.u32 8, %s25
      %p481 = scmp.lt.s32.totalorder %s24, 1
      %s482 = scalar_select %p481, %s24, 1
      %p483 = scmp.lt.s32.totalorder %s480, 7
      %s484 = scalar_select %p483, %s480, 7
      %s485 = smul.addr %s482, 8
      %s486 = sadd.s32 %s484, %s485
      %s487 = smul.addr %s486, 8
      %s488 = scalar_lea.vmem %s9, %s487
      %s489 = smul.u32 8, %s25
      %v491 = vld [vmem:[%s459] sm:$0xff]
      %v492 = vld [vmem:[%s446] sm:$0xff]
      %v493 = vld [vmem:[%s446 + $0x8] sm:$0xff]
      %v494 = vld [vmem:[%s446 + $0x10] sm:$0xff]
      %v495 = vld [vmem:[%s446 + $0x18] sm:$0xff]
      %v496 = vld [vmem:[%s446 + $0x20] sm:$0xff]
      %v497 = vld [vmem:[%s446 + $0x28] sm:$0xff]
      %v498 = vld [vmem:[%s446 + $0x30] sm:$0xff]
      %v499 = vld [vmem:[%s446 + $0x38] sm:$0xff]
      %v500 = vld [vmem:[%s475] sm:$0xff]
      %v501 = vpack.c.bf16 %v492, %v491
      %v502 = vpack.c.bf16 %v494, %v493
      %v503 = vpack.c.bf16 %v496, %v495
      %v504 = vpack.c.bf16 %v498, %v497
      %v505 = vpack.c.bf16 %v500, %v499
      %v506 = vld [vmem:[%s3] sm:$0xf]
      %v507 = vld [vmem:[%s3 + $0x4] sm:$0xf]
      %v508 = vld [vmem:[%s3 + $0x8] sm:$0xf]
      %v509 = vld [vmem:[%s3 + $0xc] sm:$0xf]
      %v510 = vld [vmem:[%s4] sm:$0x1]
      %v512 = vlaneseq
      %v513 = vshrl.u32 %v512, 7
      %v514 = vsub.s32 0, %v513
      %v515 = vrot.slane %v510, %v514
      %v521 = vunpack.c.l.b16 %v506
      %v522 = vunpack.c.l.b16 %v507
      %v523 = vunpack.c.l.b16 %v508
      %v524 = vunpack.c.l.b16 %v509
      %v525 = vpack.c.b16 %v522, %v521
      %v526 = vpack.c.b16 %v524, %v523
      %vm529 = vcmask 261120
      %v531 = vsel %vm529, %v501, 0
      %v534 = vsel %vm529, %v502, 0
      %v537 = vsel %vm529, %v503, 0
      %v540 = vsel %vm529, %v504, 0
      %v543 = vsel %vm529, %v505, 0
      %545 = vmatprep.subr.bf16.mxu0 0
      %546 = vmatpush1.bf16.msra.mxu0 %v525
      %547 = vmatprep.subr.bf16.mxu0 0
      %548 = vmatpush1.bf16.msra.mxu0 %v526
      %549 = vmatprep.subr.bf16.mxu0 0
      %550 = vmatpush1.bf16.msra.mxu0 0
      %551 = vmatprep.subr.bf16.mxu0 0
      %552 = vmatpush1.bf16.msra.mxu0 0
      %553 = vmatprep.subr.bf16.mxu0 0
      %554 = vmatpush1.bf16.msra.mxu0 0
      %555 = vmatprep.subr.bf16.mxu0 0
      %556 = vmatpush1.bf16.msra.mxu0 0
      %557 = vmatprep.subr.bf16.mxu0 0
      %558 = vmatpush1.bf16.msra.mxu0 0
      %559 = vmatprep.subr.bf16.mxu0 0
      %560 = vmatpush1.bf16.msra.mxu0 0
      %561 = vmatprep.subr.bf16.mxu0 0
      %562 = vmatpush1.bf16.msra.mxu0 0
      %563 = vmatprep.subr.bf16.mxu0 0
      %564 = vmatpush1.bf16.msra.mxu0 0
      %565 = vmatprep.subr.bf16.mxu0 0
      %566 = vmatpush1.bf16.msra.mxu0 0
      %567 = vmatprep.subr.bf16.mxu0 0
      %568 = vmatpush1.bf16.msra.mxu0 0
      %569 = vmatprep.subr.bf16.mxu0 0
      %570 = vmatpush1.bf16.msra.mxu0 0
      %571 = vmatprep.subr.bf16.mxu0 0
      %572 = vmatpush1.bf16.msra.mxu0 0
      %573 = vmatprep.subr.bf16.mxu0 0
      %574 = vmatpush1.bf16.msra.mxu0 0
      %575 = vmatprep.subr.bf16.mxu0 0
      %576 = vmatpush1.bf16.msra.mxu0 0
      %577 = vmatprep.mubr.bf16.mxu0 0
      %578 = vmatmul.mubr.bf16.gmra.mrb[0].mxu0 %v531
      %v579 = vpop.f32.mrb[0].mxu0
      %v580 = vadd.f32 %v515, %v579
      %v581 = vpop.f32.mrb[0].mxu0
      %v582 = vpop.f32.mrb[0].mxu0
      %v583 = vadd.f32 %v515, %v582
      %v584 = vpop.f32.mrb[0].mxu0
      %585 = vmatprep.mubr.bf16.mxu0 0
      %586 = vmatmul.mubr.bf16.gmra.mrb[0].mxu0 %v534
      %v587 = vpop.f32.mrb[0].mxu0
      %v588 = vadd.f32 %v515, %v587
      %v589 = vpop.f32.mrb[0].mxu0
      %v590 = vpop.f32.mrb[0].mxu0
      %v591 = vadd.f32 %v515, %v590
      %v592 = vpop.f32.mrb[0].mxu0
      %593 = vmatprep.mubr.bf16.mxu0 0
      %594 = vmatmul.mubr.bf16.gmra.mrb[0].mxu0 %v537
      %v595 = vpop.f32.mrb[0].mxu0
      %v596 = vadd.f32 %v515, %v595
      %v597 = vpop.f32.mrb[0].mxu0
      %v598 = vpop.f32.mrb[0].mxu0
      %v599 = vadd.f32 %v515, %v598
      %v600 = vpop.f32.mrb[0].mxu0
      %601 = vmatprep.mubr.bf16.mxu0 0
      %602 = vmatmul.mubr.bf16.gmra.mrb[0].mxu0 %v540
      %v603 = vpop.f32.mrb[0].mxu0
      %v604 = vadd.f32 %v515, %v603
      %v605 = vpop.f32.mrb[0].mxu0
      %v606 = vpop.f32.mrb[0].mxu0
      %v607 = vadd.f32 %v515, %v606
      %v608 = vpop.f32.mrb[0].mxu0
      %609 = vmatprep.mubr.bf16.mxu0 0
      %610 = vmatmul.mubr.bf16.gmra.mrb[0].mxu0 %v543
      %v611 = vpop.f32.mrb[0].mxu0
      %v612 = vadd.f32 %v515, %v611
      %v613 = vpop.f32.mrb[0].mxu0
      %v614 = vpop.f32.mrb[0].mxu0
      %v615 = vadd.f32 %v515, %v614
      %v616 = vpop.f32.mrb[0].mxu0
      %617 = vdwg.mxu0
      %618 = vst [vmem:[#allocation2 + $0x8] sm:$0xff] %v580
      %619 = vst [vmem:[#allocation2 + $0x10] sm:$0xff] %v583
      %620 = vst [vmem:[#allocation2 + $0x18] sm:$0xff] %v588
      %621 = vst [vmem:[#allocation2 + $0x20] sm:$0xff] %v591
      %622 = vst [vmem:[#allocation2 + $0x28] sm:$0xff] %v596
      %623 = vst [vmem:[#allocation2 + $0x30] sm:$0xff] %v599
      %624 = vst [vmem:[#allocation2 + $0x38] sm:$0xff] %v604
      %625 = vst [vmem:[#allocation2 + $0x40] sm:$0xff] %v607
      %626 = vst [vmem:[#allocation2 + $0x48] sm:$0xff] %v612
      %627 = vst [vmem:[#allocation2 + $0x50] sm:$0xff] %v615
      %p628 = scmp.eq.s32.totalorder %s25, 0
      // Predicated region
      $region57: #{tpu_custom_call.1} parent=55 // pred_check
        %p629 = pneg %p628
      $region58: #{tpu_custom_call.1} parent=55 // pred_check_branch
        %631 = sbr.rel (%p629) target = $region60
      $region59: #{tpu_custom_call.1} parent=55 // pred_region
        %632 = vst [vmem:[#allocation2 + $0x8] sm:$0xff] 0.0
        %633 = vst [vmem:[#allocation2 + $0x50] sm:$0xff] 0.0
      $region60: #{tpu_custom_call.1} parent=55 // pred_fallthru
        _
      %v634 = vld [vmem:[%s5] sm:$0xff]
      %v635 = vld [vmem:[%s5 + $0x8] sm:$0x1]
      %v636 = vlaneseq
      %v637 = vshrl.u32 %v636, 7
      %v638 = vadd.s32 %v637, 8
      %v639 = vadd.s32 %v637, 16
      %v640 = vadd.s32 %v637, 24
      %v641 = vadd.s32 %v637, 32
      %v642 = vadd.s32 %v637, 40
      %v643 = vadd.s32 %v637, 48
      %v644 = vadd.s32 %v637, 56
      %vm645 = vcmp.lt.s32.totalorder %v637, 0
      %v646 = vsub.s32 0, %v637
      %v647 = vsel %vm645, %v646, %v637
      %v648 = vshrl.u32 %v647, 3
      %v649 = vand.u32 %v647, 7
      %v650 = vsub.s32 0, %v649
      %v651 = vsel %vm645, %v650, %v649
      %vm652 = vcmp.lt.s32.totalorder %v638, 0
      %v653 = vsub.s32 0, %v638
      %v654 = vsel %vm652, %v653, %v638
      %v655 = vshrl.u32 %v654, 3
      %v656 = vand.u32 %v654, 7
      %v657 = vsub.s32 0, %v656
      %v658 = vsel %vm652, %v657, %v656
      %vm659 = vcmp.lt.s32.totalorder %v639, 0
      %v660 = vsub.s32 0, %v639
      %v661 = vsel %vm659, %v660, %v639
      %v662 = vshrl.u32 %v661, 3
      %v663 = vand.u32 %v661, 7
      %v664 = vsub.s32 0, %v663
      %v665 = vsel %vm659, %v664, %v663
      %vm666 = vcmp.lt.s32.totalorder %v640, 0
      %v667 = vsub.s32 0, %v640
      %v668 = vsel %vm666, %v667, %v640
      %v669 = vshrl.u32 %v668, 3
      %v670 = vand.u32 %v668, 7
      %v671 = vsub.s32 0, %v670
      %v672 = vsel %vm666, %v671, %v670
      %vm673 = vcmp.lt.s32.totalorder %v641, 0
      %v674 = vsub.s32 0, %v641
      %v675 = vsel %vm673, %v674, %v641
      %v676 = vshrl.u32 %v675, 3
      %v677 = vand.u32 %v675, 7
      %v678 = vsub.s32 0, %v677
      %v679 = vsel %vm673, %v678, %v677
      %vm680 = vcmp.lt.s32.totalorder %v642, 0
      %v681 = vsub.s32 0, %v642
      %v682 = vsel %vm680, %v681, %v642
      %v683 = vshrl.u32 %v682, 3
      %v684 = vand.u32 %v682, 7
      %v685 = vsub.s32 0, %v684
      %v686 = vsel %vm680, %v685, %v684
      %vm687 = vcmp.lt.s32.totalorder %v643, 0
      %v688 = vsub.s32 0, %v643
      %v689 = vsel %vm687, %v688, %v643
      %v690 = vshrl.u32 %v689, 3
      %v691 = vand.u32 %v689, 7
      %v692 = vsub.s32 0, %v691
      %v693 = vsel %vm687, %v692, %v691
      %vm694 = vcmp.lt.s32.totalorder %v644, 0
      %v695 = vsub.s32 0, %v644
      %v696 = vsel %vm694, %v695, %v644
      %v697 = vshrl.u32 %v696, 3
      %v698 = vand.u32 %v696, 7
      %v699 = vsub.s32 0, %v698
      %v700 = vsel %vm694, %v699, %v698
      %vm701 = vcmp.ne.s32.totalorder %v651, 0
      %vm702 = vcmp.ne.s32.totalorder %v658, 0
      %vm703 = vcmp.ne.s32.totalorder %v665, 0
      %vm704 = vcmp.ne.s32.totalorder %v672, 0
      %vm705 = vcmp.ne.s32.totalorder %v679, 0
      %vm706 = vcmp.ne.s32.totalorder %v686, 0
      %vm707 = vcmp.ne.s32.totalorder %v693, 0
      %vm708 = vcmp.ne.s32.totalorder %v700, 0
      %vm709 = vcmp.lt.s32.totalorder %v651, 0
      %vm710 = vcmp.lt.s32.totalorder %v658, 0
      %vm711 = vcmp.lt.s32.totalorder %v665, 0
      %vm712 = vcmp.lt.s32.totalorder %v672, 0
      %vm713 = vcmp.lt.s32.totalorder %v679, 0
      %vm714 = vcmp.lt.s32.totalorder %v686, 0
      %vm715 = vcmp.lt.s32.totalorder %v693, 0
      %vm716 = vcmp.lt.s32.totalorder %v700, 0
      %vm717 = vmand %vm709, %vm701
      %vm718 = vmand %vm710, %vm702
      %vm719 = vmand %vm711, %vm703
      %vm720 = vmand %vm712, %vm704
      %vm721 = vmand %vm713, %vm705
      %vm722 = vmand %vm714, %vm706
      %vm723 = vmand %vm715, %vm707
      %vm724 = vmand %vm716, %vm708
      %v725 = vadd.s32 %v651, 8
      %v726 = vadd.s32 %v658, 8
      %v727 = vadd.s32 %v665, 8
      %v728 = vadd.s32 %v672, 8
      %v729 = vadd.s32 %v679, 8
      %v730 = vadd.s32 %v686, 8
      %v731 = vadd.s32 %v693, 8
      %v732 = vadd.s32 %v700, 8
      %v733 = vsel %vm717, %v725, %v651
      %v734 = vsel %vm718, %v726, %v658
      %v735 = vsel %vm719, %v727, %v665
      %v736 = vsel %vm720, %v728, %v672
      %v737 = vsel %vm721, %v729, %v679
      %v738 = vsel %vm722, %v730, %v686
      %v739 = vsel %vm723, %v731, %v693
      %v740 = vsel %vm724, %v732, %v700
      %vm741 = vcmp.ge.s32.totalorder %v733, 1
      %vm742 = vcmp.ge.s32.totalorder %v734, 1
      %vm743 = vcmp.ge.s32.totalorder %v735, 1
      %vm744 = vcmp.ge.s32.totalorder %v736, 1
      %vm745 = vcmp.ge.s32.totalorder %v737, 1
      %vm746 = vcmp.ge.s32.totalorder %v738, 1
      %vm747 = vcmp.ge.s32.totalorder %v739, 1
      %vm748 = vcmp.ge.s32.totalorder %v740, 1
      %vm749 = vcmp.lt.s32.totalorder %v733, 7
      %vm750 = vcmp.lt.s32.totalorder %v734, 7
      %vm751 = vcmp.lt.s32.totalorder %v735, 7
      %vm752 = vcmp.lt.s32.totalorder %v736, 7
      %vm753 = vcmp.lt.s32.totalorder %v737, 7
      %vm754 = vcmp.lt.s32.totalorder %v738, 7
      %vm755 = vcmp.lt.s32.totalorder %v739, 7
      %vm756 = vcmp.lt.s32.totalorder %v740, 7
      %v757 = vld [vmem:[#allocation2 + $0x10] sm:$0xff]
      %v758 = vld [vmem:[#allocation2 + $0x18] sm:$0xff]
      %v759 = vld [vmem:[#allocation2 + $0x20] sm:$0xff]
      %v760 = vld [vmem:[#allocation2 + $0x28] sm:$0xff]
      %v761 = vld [vmem:[#allocation2 + $0x30] sm:$0xff]
      %v762 = vld [vmem:[#allocation2 + $0x38] sm:$0xff]
      %v763 = vld [vmem:[#allocation2 + $0x40] sm:$0xff]
      %v764 = vld [vmem:[#allocation2 + $0x48] sm:$0xff]
      %v765 = vlaneseq
      %v766 = vshrl.u32 %v765, 7
      %v767 = vsub.s32 4, %v766
      %v768 = vrot.slane %v634, %v767
      %v769 = vmul.f32 %v757, %v768
      %v770 = vmul.f32 %v758, %v768
      %v771 = vmul.f32 %v759, %v768
      %v772 = vmul.f32 %v760, %v768
      %v773 = vmul.f32 %v761, %v768
      %v774 = vmul.f32 %v762, %v768
      %v775 = vmul.f32 %v763, %v768
      %v776 = vmul.f32 %v764, %v768
      %v777 = vld [vmem:[#allocation2 + $0x8] sm:$0xff]
      %v778 = vlaneseq
      %v779 = vshrl.u32 %v778, 7
      %v780 = vsub.s32 1, %v779
      %v781 = vrot.slane %v634, %v780
      %v782 = vmul.f32 %v777, %v781
      %v783 = vmul.f32 %v757, %v781
      %v784 = vmul.f32 %v758, %v781
      %v785 = vmul.f32 %v759, %v781
      %v786 = vmul.f32 %v760, %v781
      %v787 = vmul.f32 %v761, %v781
      %v788 = vmul.f32 %v762, %v781
      %v789 = vmul.f32 %v763, %v781
      %v790 = vadd.f32 %v769, %v782
      %v791 = vadd.f32 %v770, %v783
      %v792 = vadd.f32 %v771, %v784
      %v793 = vadd.f32 %v772, %v785
      %v794 = vadd.f32 %v773, %v786
      %v795 = vadd.f32 %v774, %v787
      %v796 = vadd.f32 %v775, %v788
      %v797 = vadd.f32 %v776, %v789
      %v798 = vld [vmem:[#allocation2 + $0x50] sm:$0xff]
      %v799 = vlaneseq
      %v800 = vshrl.u32 %v799, 7
      %v801 = vsub.s32 7, %v800
      %v802 = vrot.slane %v634, %v801
      %v803 = vmul.f32 %v758, %v802
      %v804 = vmul.f32 %v759, %v802
      %v805 = vmul.f32 %v760, %v802
      %v806 = vmul.f32 %v761, %v802
      %v807 = vmul.f32 %v762, %v802
      %v808 = vmul.f32 %v763, %v802
      %v809 = vmul.f32 %v764, %v802
      %v810 = vmul.f32 %v798, %v802
      %v811 = vadd.f32 %v790, %v803
      %v812 = vadd.f32 %v791, %v804
      %v813 = vadd.f32 %v792, %v805
      %v814 = vadd.f32 %v793, %v806
      %v815 = vadd.f32 %v794, %v807
      %v816 = vadd.f32 %v795, %v808
      %v817 = vadd.f32 %v796, %v809
      %v818 = vadd.f32 %v797, %v810
      %v819 = vld [vmem:[#allocation2 + $0x7] sm:$0xff]
      %v820 = vld [vmem:[#allocation2 + $0xf] sm:$0xff]
      %v821 = vld [vmem:[#allocation2 + $0x17] sm:$0xff]
      %v822 = vld [vmem:[#allocation2 + $0x1f] sm:$0xff]
      %v823 = vld [vmem:[#allocation2 + $0x27] sm:$0xff]
      %v824 = vld [vmem:[#allocation2 + $0x2f] sm:$0xff]
      %v825 = vld [vmem:[#allocation2 + $0x37] sm:$0xff]
      %v826 = vld [vmem:[#allocation2 + $0x3f] sm:$0xff]
      %v827 = vlaneseq
      %v828 = vshrl.u32 %v827, 7
      %v829 = vsub.s32 0, %v828
      %v830 = vrot.slane %v634, %v829
      %v831 = vmul.f32 %v819, %v830
      %v832 = vmul.f32 %v820, %v830
      %v833 = vmul.f32 %v821, %v830
      %v834 = vmul.f32 %v822, %v830
      %v835 = vmul.f32 %v823, %v830
      %v836 = vmul.f32 %v824, %v830
      %v837 = vmul.f32 %v825, %v830
      %v838 = vmul.f32 %v826, %v830
      %v839 = vld [vmem:[#allocation2 + $0x47] sm:$0xff]
      %v840 = vlaneseq
      %v841 = vshrl.u32 %v840, 7
      %v842 = vsub.s32 3, %v841
      %v843 = vrot.slane %v634, %v842
      %v844 = vmul.f32 %v820, %v843
      %v845 = vmul.f32 %v821, %v843
      %v846 = vmul.f32 %v822, %v843
      %v847 = vmul.f32 %v823, %v843
      %v848 = vmul.f32 %v824, %v843
      %v849 = vmul.f32 %v825, %v843
      %v850 = vmul.f32 %v826, %v843
      %v851 = vmul.f32 %v839, %v843
      %v852 = vadd.f32 %v831, %v844
      %v853 = vadd.f32 %v832, %v845
      %v854 = vadd.f32 %v833, %v846
      %v855 = vadd.f32 %v834, %v847
      %v856 = vadd.f32 %v835, %v848
      %v857 = vadd.f32 %v836, %v849
      %v858 = vadd.f32 %v837, %v850
      %v859 = vadd.f32 %v838, %v851
      %v860 = vld [vmem:[#allocation2 + $0x4f] sm:$0xff]
      %v861 = vlaneseq
      %v862 = vshrl.u32 %v861, 7
      %v863 = vsub.s32 6, %v862
      %v864 = vrot.slane %v634, %v863
      %v865 = vmul.f32 %v821, %v864
      %v866 = vmul.f32 %v822, %v864
      %v867 = vmul.f32 %v823, %v864
      %v868 = vmul.f32 %v824, %v864
      %v869 = vmul.f32 %v825, %v864
      %v870 = vmul.f32 %v826, %v864
      %v871 = vmul.f32 %v839, %v864
      %v872 = vmul.f32 %v860, %v864
      %v873 = vadd.f32 %v852, %v865
      %v874 = vadd.f32 %v853, %v866
      %v875 = vadd.f32 %v854, %v867
      %v876 = vadd.f32 %v855, %v868
      %v877 = vadd.f32 %v856, %v869
      %v878 = vadd.f32 %v857, %v870
      %v879 = vadd.f32 %v858, %v871
      %v880 = vadd.f32 %v859, %v872
      %v881 = vld [vmem:[#allocation2 + $0x9] sm:$0xff]
      %v882 = vld [vmem:[#allocation2 + $0x11] sm:$0xff]
      %v883 = vld [vmem:[#allocation2 + $0x19] sm:$0xff]
      %v884 = vld [vmem:[#allocation2 + $0x21] sm:$0xff]
      %v885 = vld [vmem:[#allocation2 + $0x29] sm:$0xff]
      %v886 = vld [vmem:[#allocation2 + $0x31] sm:$0xff]
      %v887 = vld [vmem:[#allocation2 + $0x39] sm:$0xff]
      %v888 = vld [vmem:[#allocation2 + $0x41] sm:$0xff]
      %v889 = vlaneseq
      %v890 = vshrl.u32 %v889, 7
      %v891 = vsub.s32 2, %v890
      %v892 = vrot.slane %v634, %v891
      %v893 = vmul.f32 %v881, %v892
      %v894 = vmul.f32 %v882, %v892
      %v895 = vmul.f32 %v883, %v892
      %v896 = vmul.f32 %v884, %v892
      %v897 = vmul.f32 %v885, %v892
      %v898 = vmul.f32 %v886, %v892
      %v899 = vmul.f32 %v887, %v892
      %v900 = vmul.f32 %v888, %v892
      %v901 = vld [vmem:[#allocation2 + $0x49] sm:$0xff]
      %v902 = vlaneseq
      %v903 = vshrl.u32 %v902, 7
      %v904 = vsub.s32 5, %v903
      %v905 = vrot.slane %v634, %v904
      %v906 = vmul.f32 %v882, %v905
      %v907 = vmul.f32 %v883, %v905
      %v908 = vmul.f32 %v884, %v905
      %v909 = vmul.f32 %v885, %v905
      %v910 = vmul.f32 %v886, %v905
      %v911 = vmul.f32 %v887, %v905
      %v912 = vmul.f32 %v888, %v905
      %v913 = vmul.f32 %v901, %v905
      %v914 = vadd.f32 %v893, %v906
      %v915 = vadd.f32 %v894, %v907
      %v916 = vadd.f32 %v895, %v908
      %v917 = vadd.f32 %v896, %v909
      %v918 = vadd.f32 %v897, %v910
      %v919 = vadd.f32 %v898, %v911
      %v920 = vadd.f32 %v899, %v912
      %v921 = vadd.f32 %v900, %v913
      %v922 = vld [vmem:[#allocation2 + $0x51] sm:$0xff]
      %v923 = vlaneseq
      %v924 = vshrl.u32 %v923, 7
      %v925 = vsub.s32 0, %v924
      %v926 = vrot.slane %v635, %v925
      %v927 = vmul.f32 %v883, %v926
      %v928 = vmul.f32 %v884, %v926
      %v929 = vmul.f32 %v885, %v926
      %v930 = vmul.f32 %v886, %v926
      %v931 = vmul.f32 %v887, %v926
      %v932 = vmul.f32 %v888, %v926
      %v933 = vmul.f32 %v901, %v926
      %v934 = vmul.f32 %v922, %v926
      %v935 = vadd.f32 %v914, %v927
      %v936 = vadd.f32 %v915, %v928
      %v937 = vadd.f32 %v916, %v929
      %v938 = vadd.f32 %v917, %v930
      %v939 = vadd.f32 %v918, %v931
      %v940 = vadd.f32 %v919, %v932
      %v941 = vadd.f32 %v920, %v933
      %v942 = vadd.f32 %v921, %v934
      %v943 = vsel %vm741, 1, 0
      %v944 = vsel %vm742, 1, 0
      %v945 = vsel %vm743, 1, 0
      %v946 = vsel %vm744, 1, 0
      %v947 = vsel %vm745, 1, 0
      %v948 = vsel %vm746, 1, 0
      %v949 = vsel %vm747, 1, 0
      %v950 = vsel %vm748, 1, 0
      %vm951 = vcmp.eq.s32.totalorder %v943, 1
      %vm952 = vcmp.eq.s32.totalorder %v944, 1
      %vm953 = vcmp.eq.s32.totalorder %v945, 1
      %vm954 = vcmp.eq.s32.totalorder %v946, 1
      %vm955 = vcmp.eq.s32.totalorder %v947, 1
      %vm956 = vcmp.eq.s32.totalorder %v948, 1
      %vm957 = vcmp.eq.s32.totalorder %v949, 1
      %vm958 = vcmp.eq.s32.totalorder %v950, 1
      %v959 = vsel %vm951, %v873, 0.0
      %v960 = vsel %vm952, %v874, 0.0
      %v961 = vsel %vm953, %v875, 0.0
      %v962 = vsel %vm954, %v876, 0.0
      %v963 = vsel %vm955, %v877, 0.0
      %v964 = vsel %vm956, %v878, 0.0
      %v965 = vsel %vm957, %v879, 0.0
      %v966 = vsel %vm958, %v880, 0.0
      %v967 = vadd.f32 %v811, %v959
      %v968 = vadd.f32 %v812, %v960
      %v969 = vadd.f32 %v813, %v961
      %v970 = vadd.f32 %v814, %v962
      %v971 = vadd.f32 %v815, %v963
      %v972 = vadd.f32 %v816, %v964
      %v973 = vadd.f32 %v817, %v965
      %v974 = vadd.f32 %v818, %v966
      %v975 = vsel %vm749, 1, 0
      %v976 = vsel %vm750, 1, 0
      %v977 = vsel %vm751, 1, 0
      %v978 = vsel %vm752, 1, 0
      %v979 = vsel %vm753, 1, 0
      %v980 = vsel %vm754, 1, 0
      %v981 = vsel %vm755, 1, 0
      %v982 = vsel %vm756, 1, 0
      %vm983 = vcmp.eq.s32.totalorder %v975, 1
      %vm984 = vcmp.eq.s32.totalorder %v976, 1
      %vm985 = vcmp.eq.s32.totalorder %v977, 1
      %vm986 = vcmp.eq.s32.totalorder %v978, 1
      %vm987 = vcmp.eq.s32.totalorder %v979, 1
      %vm988 = vcmp.eq.s32.totalorder %v980, 1
      %vm989 = vcmp.eq.s32.totalorder %v981, 1
      %vm990 = vcmp.eq.s32.totalorder %v982, 1
      %v991 = vsel %vm983, %v935, 0.0
      %v992 = vsel %vm984, %v936, 0.0
      %v993 = vsel %vm985, %v937, 0.0
      %v994 = vsel %vm986, %v938, 0.0
      %v995 = vsel %vm987, %v939, 0.0
      %v996 = vsel %vm988, %v940, 0.0
      %v997 = vsel %vm989, %v941, 0.0
      %v998 = vsel %vm990, %v942, 0.0
      %v999 = vadd.f32 %v967, %v991
      %v1000 = vadd.f32 %v968, %v992
      %v1001 = vadd.f32 %v969, %v993
      %v1002 = vadd.f32 %v970, %v994
      %v1003 = vadd.f32 %v971, %v995
      %v1004 = vadd.f32 %v972, %v996
      %v1005 = vadd.f32 %v973, %v997
      %v1006 = vadd.f32 %v974, %v998
      %v1007 = vld [vmem:[%s6] sm:$0x1]
      %v1009 = vlaneseq
      %v1010 = vshrl.u32 %v1009, 7
      %v1011 = vsub.s32 0, %v1010
      %v1012 = vrot.slane %v1007, %v1011
      %v1014 = vadd.f32 %v999, %v1012
      %v1015 = vadd.f32 %v1000, %v1012
      %v1016 = vadd.f32 %v1001, %v1012
      %v1017 = vadd.f32 %v1002, %v1012
      %v1018 = vadd.f32 %v1003, %v1012
      %v1019 = vadd.f32 %v1004, %v1012
      %v1020 = vadd.f32 %v1005, %v1012
      %v1021 = vadd.f32 %v1006, %v1012
      %v1022 = vmul.f32 %v1014, 0.5
      %v1023 = vmul.f32 %v1015, 0.5
      %v1024 = vmul.f32 %v1016, 0.5
      %v1025 = vmul.f32 %v1017, 0.5
      %v1026 = vmul.f32 %v1018, 0.5
      %v1027 = vmul.f32 %v1019, 0.5
      %v1028 = vmul.f32 %v1020, 0.5
      %v1029 = vmul.f32 %v1021, 0.5
      %v1030 = vmul.f32 %v1014, 0.70710677
      %v1031 = vmul.f32 %v1015, 0.70710677
      %v1032 = vmul.f32 %v1016, 0.70710677
      %v1033 = vmul.f32 %v1017, 0.70710677
      %v1034 = vmul.f32 %v1018, 0.70710677
      %v1035 = vmul.f32 %v1019, 0.70710677
      %v1036 = vmul.f32 %v1020, 0.70710677
      %v1037 = vmul.f32 %v1021, 0.70710677
      %v1038 = verf.f32.pop %v1030
      %v1039 = verf.f32.pop %v1031
      %v1040 = verf.f32.pop %v1032
      %v1041 = verf.f32.pop %v1033
      %v1042 = verf.f32.pop %v1034
      %v1043 = verf.f32.pop %v1035
      %v1044 = verf.f32.pop %v1036
      %v1045 = verf.f32.pop %v1037
      %v1046 = vadd.f32 %v1038, 1.0
      %v1047 = vadd.f32 %v1039, 1.0
      %v1048 = vadd.f32 %v1040, 1.0
      %v1049 = vadd.f32 %v1041, 1.0
      %v1050 = vadd.f32 %v1042, 1.0
      %v1051 = vadd.f32 %v1043, 1.0
      %v1052 = vadd.f32 %v1044, 1.0
      %v1053 = vadd.f32 %v1045, 1.0
      %v1054 = vmul.f32 %v1022, %v1046
      %v1055 = vmul.f32 %v1023, %v1047
      %v1056 = vmul.f32 %v1024, %v1048
      %v1057 = vmul.f32 %v1025, %v1049
      %v1058 = vmul.f32 %v1026, %v1050
      %v1059 = vmul.f32 %v1027, %v1051
      %v1060 = vmul.f32 %v1028, %v1052
      %v1061 = vmul.f32 %v1029, %v1053
      %v1062 = vpack.c.bf16 %v1055, %v1054
      %v1063 = vpack.c.bf16 %v1057, %v1056
      %v1064 = vpack.c.bf16 %v1059, %v1058
      %v1065 = vpack.c.bf16 %v1061, %v1060
      %v1066 = vld [vmem:[%s7] sm:$0xf]
      %v1067 = vld [vmem:[%s7 + $0x4] sm:$0xf]
      %v1068 = vld [vmem:[%s7 + $0x8] sm:$0xf]
      %v1069 = vld [vmem:[%s7 + $0xc] sm:$0xf]
      %v1070 = vld [vmem:[%s7 + $0x10] sm:$0xf]
      %v1071 = vld [vmem:[%s7 + $0x14] sm:$0xf]
      %v1072 = vld [vmem:[%s7 + $0x18] sm:$0xf]
      %v1073 = vld [vmem:[%s7 + $0x1c] sm:$0xf]
      %v1074 = vld [vmem:[%s7 + $0x20] sm:$0xf]
      %v1075 = vld [vmem:[%s7 + $0x24] sm:$0xf]
      %v1076 = vld [vmem:[%s7 + $0x28] sm:$0xf]
      %v1077 = vld [vmem:[%s7 + $0x2c] sm:$0xf]
      %v1078 = vld [vmem:[%s7 + $0x30] sm:$0xf]
      %v1079 = vld [vmem:[%s7 + $0x34] sm:$0xf]
      %v1080 = vld [vmem:[%s7 + $0x38] sm:$0xf]
      %v1081 = vld [vmem:[%s7 + $0x3c] sm:$0xf]
      %v1082 = vld [vmem:[%s8] sm:$0x1]
      %v1084 = vlaneseq
      %v1085 = vshrl.u32 %v1084, 7
      %v1086 = vsub.s32 0, %v1085
      %v1087 = vrot.slane %v1082, %v1086
      %v1105 = vunpack.c.l.b16 %v1066
      %v1106 = vunpack.c.l.b16 %v1067
      %v1107 = vunpack.c.l.b16 %v1068
      %v1108 = vunpack.c.l.b16 %v1069
      %v1109 = vunpack.c.l.b16 %v1070
      %v1110 = vunpack.c.l.b16 %v1071
      %v1111 = vunpack.c.l.b16 %v1072
      %v1112 = vunpack.c.l.b16 %v1073
      %v1113 = vunpack.c.l.b16 %v1074
      %v1114 = vunpack.c.l.b16 %v1075
      %v1115 = vunpack.c.l.b16 %v1076
      %v1116 = vunpack.c.l.b16 %v1077
      %v1117 = vunpack.c.l.b16 %v1078
      %v1118 = vunpack.c.l.b16 %v1079
      %v1119 = vunpack.c.l.b16 %v1080
      %v1120 = vunpack.c.l.b16 %v1081
      %v1121 = vpack.c.b16 %v1106, %v1105
      %v1122 = vpack.c.b16 %v1108, %v1107
      %v1123 = vpack.c.b16 %v1110, %v1109
      %v1124 = vpack.c.b16 %v1112, %v1111
      %v1125 = vpack.c.b16 %v1114, %v1113
      %v1126 = vpack.c.b16 %v1116, %v1115
      %v1127 = vpack.c.b16 %v1118, %v1117
      %v1128 = vpack.c.b16 %v1120, %v1119
      %1137 = vmatprep.subr.bf16.mxu0 0
      %1138 = vmatpush1.bf16.msra.mxu0 %v1121
      %1139 = vmatprep.subr.bf16.mxu0 0
      %1140 = vmatpush1.bf16.msra.mxu0 %v1122
      %1141 = vmatprep.subr.bf16.mxu0 0
      %1142 = vmatpush1.bf16.msra.mxu0 %v1123
      %1143 = vmatprep.subr.bf16.mxu0 0
      %1144 = vmatpush1.bf16.msra.mxu0 %v1124
      %1145 = vmatprep.subr.bf16.mxu0 0
      %1146 = vmatpush1.bf16.msra.mxu0 %v1125
      %1147 = vmatprep.subr.bf16.mxu0 0
      %1148 = vmatpush1.bf16.msra.mxu0 %v1126
      %1149 = vmatprep.subr.bf16.mxu0 0
      %1150 = vmatpush1.bf16.msra.mxu0 %v1127
      %1151 = vmatprep.subr.bf16.mxu0 0
      %1152 = vmatpush1.bf16.msra.mxu0 %v1128
      %1153 = vmatprep.subr.bf16.mxu0 0
      %1154 = vmatpush1.bf16.msra.mxu0 0
      %1155 = vmatprep.subr.bf16.mxu0 0
      %1156 = vmatpush1.bf16.msra.mxu0 0
      %1157 = vmatprep.subr.bf16.mxu0 0
      %1158 = vmatpush1.bf16.msra.mxu0 0
      %1159 = vmatprep.subr.bf16.mxu0 0
      %1160 = vmatpush1.bf16.msra.mxu0 0
      %1161 = vmatprep.subr.bf16.mxu0 0
      %1162 = vmatpush1.bf16.msra.mxu0 0
      %1163 = vmatprep.subr.bf16.mxu0 0
      %1164 = vmatpush1.bf16.msra.mxu0 0
      %1165 = vmatprep.subr.bf16.mxu0 0
      %1166 = vmatpush1.bf16.msra.mxu0 0
      %1167 = vmatprep.subr.bf16.mxu0 0
      %1168 = vmatpush1.bf16.msra.mxu0 0
      %1169 = vmatprep.mubr.bf16.mxu0 0
      %1170 = vmatmul.mubr.bf16.gmra.mrb[0].mxu0 %v1062
      %v1171 = vpop.f32.mrb[0].mxu0
      %v1172 = vadd.f32 %v1087, %v1171
      %v1173 = vpop.f32.mrb[0].mxu0
      %v1174 = vpop.f32.mrb[0].mxu0
      %v1175 = vadd.f32 %v1087, %v1174
      %v1176 = vpop.f32.mrb[0].mxu0
      %1177 = vmatprep.mubr.bf16.mxu0 0
      %1178 = vmatmul.mubr.bf16.gmra.mrb[0].mxu0 %v1063
      %v1179 = vpop.f32.mrb[0].mxu0
      %v1180 = vadd.f32 %v1087, %v1179
      %v1181 = vpop.f32.mrb[0].mxu0
      %v1182 = vpop.f32.mrb[0].mxu0
      %v1183 = vadd.f32 %v1087, %v1182
      %v1184 = vpop.f32.mrb[0].mxu0
      %1185 = vmatprep.mubr.bf16.mxu0 0
      %1186 = vmatmul.mubr.bf16.gmra.mrb[0].mxu0 %v1064
      %v1187 = vpop.f32.mrb[0].mxu0
      %v1188 = vadd.f32 %v1087, %v1187
      %v1189 = vpop.f32.mrb[0].mxu0
      %v1190 = vpop.f32.mrb[0].mxu0
      %v1191 = vadd.f32 %v1087, %v1190
      %v1192 = vpop.f32.mrb[0].mxu0
      %1193 = vmatprep.mubr.bf16.mxu0 0
      %1194 = vmatmul.mubr.bf16.gmra.mrb[0].mxu0 %v1065
      %v1195 = vpop.f32.mrb[0].mxu0
      %v1196 = vadd.f32 %v1087, %v1195
      %v1197 = vpop.f32.mrb[0].mxu0
      %v1198 = vpop.f32.mrb[0].mxu0
      %v1199 = vadd.f32 %v1087, %v1198
      %v1200 = vpop.f32.mrb[0].mxu0
      %1201 = vdwg.mxu0
      %1202 = vst.msk [vmem:[%s488] sm:$0xff] %vm529, %v1172
      %1203 = vst.msk [vmem:[%s488 + $0x8] sm:$0xff] %vm529, %v1175
      %1204 = vst.msk [vmem:[%s488 + $0x10] sm:$0xff] %vm529, %v1180
      %1205 = vst.msk [vmem:[%s488 + $0x18] sm:$0xff] %vm529, %v1183
      %1206 = vst.msk [vmem:[%s488 + $0x20] sm:$0xff] %vm529, %v1188
      %1207 = vst.msk [vmem:[%s488 + $0x28] sm:$0xff] %vm529, %v1191
      %1208 = vst.msk [vmem:[%s488 + $0x30] sm:$0xff] %vm529, %v1196
      %1209 = vst.msk [vmem:[%s488 + $0x38] sm:$0xff] %vm529, %v1199
      %s1210 = smul.u32 8, %s25
      %p1211 = scmp.lt.s32.totalorder %s24, 1
      %s1212 = scalar_select %p1211, %s24, 1
      %p1213 = scmp.lt.s32.totalorder %s1210, 7
      %s1214 = scalar_select %p1213, %s1210, 7
      %s1215 = smul.addr %s1212, 8
      %s1216 = sadd.s32 %s1214, %s1215
      %s1217 = smul.addr %s1216, 8
      %s1218 = scalar_lea.vmem %s9, %s1217
      // Predicated region
      $region61: #{tpu_custom_call.1} parent=55 // pred_check
        %p1219 = pneg %p278
      $region62: #{tpu_custom_call.1} parent=55 // pred_check_branch
        %1221 = sbr.rel (%p1219) target = $region64
      $region63: #{tpu_custom_call.1} parent=55 // pred_region
        %s1222 = smul.u32 8, %s25
      $region64: #{tpu_custom_call.1} parent=55 // pred_fallthru
        _
    $region56: #{tpu_custom_call.1} parent=5 // pred_fallthru
      _
    %p1223 = scmp.le.s32.totalorder 2, %s15
    // Predicated region
    $region65: #{tpu_custom_call.1} parent=5 // pred_check
      %p1224 = pneg %p1223
    $region66: #{tpu_custom_call.1} parent=5 // pred_check_branch
      %1226 = sbr.rel (%p1224) target = $region68
    $region67: #{tpu_custom_call.1} parent=5 // pred_region
      %s1227 = ssub.s32 %s15, 2
      // Predicated region
      $region69: #{tpu_custom_call.1} parent=67 // pred_check
        %p1228 = pneg %p284
      $region70: #{tpu_custom_call.1} parent=67 // pred_check_branch
        %1230 = sbr.rel (%p1228) target = $region72
      $region71: #{tpu_custom_call.1} parent=67 // pred_region
        %s1231 = smul.u32 8, %s27
        %p1232 = scmp.lt.s32.totalorder %s26, 1
        %s1233 = scalar_select %p1232, %s26, 1
        %p1234 = scmp.lt.s32.totalorder %s1231, 7
        %s1235 = scalar_select %p1234, %s1231, 7
        %s1236 = smul.addr %s1233, 8
        %s1237 = sadd.s32 %s1235, %s1236
        %s1238 = smul.addr %s1237, 8
        %s1239 = scalar_lea.vmem %s9, %s1238
      $region72: #{tpu_custom_call.1} parent=67 // pred_fallthru
        _
    $region68: #{tpu_custom_call.1} parent=5 // pred_fallthru
      _
  $region6: #{tpu_custom_call.1} parent=0 // loop_footer
    %s19 = sadd.s32 1, %s15
  $region7: #{tpu_custom_call.1} parent=0 // loop_footer_branch
    %14 = sbr.rel target = $region3
  $region8: #{tpu_custom_call.1} parent=0 // loop_exit
    _

</llo_original>
